<compile_context>
chip_gen: v6e
topology: v6e:2x2x1
jax: 0.10.0
libtpu: 0.0.40
codegen_flags: <defaults>
</compile_context>

<pallas_src>
import functools

import jax
import jax.numpy as jnp
from jax import lax
from jax.experimental import pallas as pl
from jax.experimental.pallas import tpu as pltpu


# -----------------------------------------------------------------------------
# Parameter preparation (plain JAX, done once outside the kernel).
# -----------------------------------------------------------------------------
def prepare_params(torch_params, D):
    """Convert PyTorch-layout DeepConvLSTM weights into the kernel layout.

    Conv2d(kernel=(K,1)) on (B, Cin, T, D) is, per sensor channel d, a temporal
    conv with weights shared across d.  We fold the D axis onto lanes
    (feature f = d*C + c, matching torch's permute(2,0,3,1).reshape) by
    building a block-diagonal (per-d) weight of shape (K*D*Cin, D*Cout), so
    each conv layer becomes one lane-dense MXU matmul over an im2col window.
    LSTM gate columns are permuted from torch's (i|f|g|o) to (i|f|o|g) so the
    kernel applies one sigmoid region + one tanh region per step.
    """
    p = {}

    def conv_block(w, b):
        # w: (Cout, Cin, K, 1) torch layout; b: (Cout,)
        Cout, Cin, Kf, _ = w.shape
        wk = jnp.transpose(w[..., 0], (2, 1, 0))              # (K, Cin, Cout)
        eye = jnp.eye(D, dtype=w.dtype)
        # wb[k, d, ci, d', co] = (d == d') * w[co, ci, k]
        wb = jnp.einsum("de,kio->kdieo", eye, wk)              # (K, D, Cin, D, Cout)
        w_cat = wb.reshape(Kf * D * Cin, D * Cout)             # rows: k-major, (d,ci)-minor
        b_tiled = jnp.tile(b, D).reshape(1, D * Cout)          # b_tiled[d*Cout+co] = b[co]
        return w_cat, b_tiled

    def lstm_layer(w_ih, w_hh, b_ih, b_hh):
        # torch stacks gate rows as (i|f|g|o); reorder to (i|f|o|g), transpose
        # so the kernel right-multiplies (x @ W).
        Hh = w_hh.shape[1]
        perm = jnp.concatenate([jnp.arange(0, 2 * Hh),
                                jnp.arange(3 * Hh, 4 * Hh),
                                jnp.arange(2 * Hh, 3 * Hh)])
        return (w_ih[perm].T, w_hh[perm].T,
                (b_ih + b_hh)[perm].reshape(1, 4 * Hh))

    for i in (1, 2, 3, 4):
        p[f"wc{i}"], p[f"bc{i}"] = conv_block(torch_params[f"conv{i}_w"],
                                              torch_params[f"conv{i}_b"])

    p["wih0"], p["whh0"], p["bl0"] = lstm_layer(torch_params["lstm_w_ih_l0"],
                                                torch_params["lstm_w_hh_l0"],
                                                torch_params["lstm_b_ih_l0"],
                                                torch_params["lstm_b_hh_l0"])
    wih1, whh1, p["bl1"] = lstm_layer(torch_params["lstm_w_ih_l1"],
                                      torch_params["lstm_w_hh_l1"],
                                      torch_params["lstm_b_ih_l1"],
                                      torch_params["lstm_b_hh_l1"])
    # Layer-1 gates computed as one matmul per step: [h0_new | h1] @ [Wih1 ; Whh1]
    p["w1cat"] = jnp.concatenate([wih1, whh1], axis=0)         # (2H, 4H)

    p["wcl"] = torch_params["cls_w"].T                         # (H, NC)
    p["bcl"] = torch_params["cls_b"].reshape(1, -1)            # (1, NC)
    return p


# -----------------------------------------------------------------------------
# Fused kernel: conv stack (im2col matmuls) + 2-layer LSTM + L2-norm + Linear.
# All tensors kept 2D inside the kernel (rows = t-major, b-minor) -> no in-kernel
# reshapes/transposes; only static row slices, lane concat and 2D MXU dots.
# -----------------------------------------------------------------------------
def deepconvlstm_kernel(K, B,
                        x_ref,
                        wc1_ref, bc1_ref, wc2_ref, bc2_ref,
                        wc3_ref, bc3_ref, wc4_ref, bc4_ref,
                        wih0_ref, whh0_ref, bl0_ref,
                        w1cat_ref, bl1_ref,
                        wcl_ref, bcl_ref,
                        z_ref, out_ref):
    H = whh0_ref.shape[0]

    def conv_relu(x2d, w_ref, b_ref):
        # x2d: (T_in*B, Fin) with rows t-major/b-minor; w: (K*Fin, Fout) block-diag.
        rows, Fin = x2d.shape
        T_in = rows // B
        T_out = T_in - K + 1
        # im2col: concat the K shifted row-windows along lanes -> (T_out*B, K*Fin)
        xcat = jnp.concatenate(
            [x2d[k * B:(k + T_out) * B, :] for k in range(K)], axis=-1)
        y = jnp.dot(xcat, w_ref[...], preferred_element_type=jnp.float32)
        return jnp.maximum(y + b_ref[...], 0.0)                # bias + ReLU

    h = conv_relu(x_ref[...], wc1_ref, bc1_ref)                # (T1*B, D*C)
    h = conv_relu(h, wc2_ref, bc2_ref)
    h = conv_relu(h, wc3_ref, bc3_ref)
    h = conv_relu(h, wc4_ref, bc4_ref)                         # (T'*B, D*C) == LSTM input
    # TODO(synk): nn.Dropout(0.5) before the LSTM is identity at eval time; omitted.

    Tp = h.shape[0] // B

    # Hoisted LSTM layer-0 input projection (no recurrent dependency):
    # one (T'*B, F) @ (F, 4H) matmul, bias (b_ih + b_hh) folded in.
    gx = jnp.dot(h, wih0_ref[...], preferred_element_type=jnp.float32) + bl0_ref[...]

    whh0 = whh0_ref[...]
    w1cat = w1cat_ref[...]
    bl1 = bl1_ref[...]

    def gates(g):
        # gate columns pre-permuted to (i | f | o | g):
        # one sigmoid region (3H lanes) + one tanh region (H lanes), both on EUP.
        s = jax.nn.sigmoid(g[:, :3 * H])
        i_g = s[:, :H]
        f_g = s[:, H:2 * H]
        o_g = s[:, 2 * H:3 * H]
        g_g = jnp.tanh(g[:, 3 * H:])
        return i_g, f_g, o_g, g_g

    h0 = jnp.zeros((B, H), jnp.float32)
    c0 = jnp.zeros((B, H), jnp.float32)
    h1 = jnp.zeros((B, H), jnp.float32)
    c1 = jnp.zeros((B, H), jnp.float32)

    # Fully unrolled time recurrence (T' is small and static): static row slices
    # of the precomputed gx, one MXU matmul per layer per step.
    for t in range(Tp):
        g0 = gx[t * B:(t + 1) * B, :] + jnp.dot(
            h0, whh0, preferred_element_type=jnp.float32)
        i0, f0, o0, gg0 = gates(g0)
        c0 = f0 * c0 + i0 * gg0
        h0 = o0 * jnp.tanh(c0)

        g1 = jnp.dot(jnp.concatenate([h0, h1], axis=-1), w1cat,
                     preferred_element_type=jnp.float32) + bl1
        i1, f1, o1, gg1 = gates(g1)
        c1 = f1 * c1 + i1 * gg1
        h1 = o1 * jnp.tanh(c1)

    # z = h1 / ||h1||_2 (rsqrt on EUP; eps guards an all-zero hidden row)
    inv = lax.rsqrt(jnp.sum(h1 * h1, axis=1, keepdims=True) + 1e-24)
    z_ref[...] = (h1 * inv).astype(z_ref.dtype)
    out_ref[...] = (jnp.dot(h1, wcl_ref[...], preferred_element_type=jnp.float32)
                    + bcl_ref[...]).astype(out_ref.dtype)


# -----------------------------------------------------------------------------
# Wrapper: layout prep in plain JAX, single fused pallas_call.
# -----------------------------------------------------------------------------
def deepconvlstm_forward(x, params, *, filter_size):
    # torch: x.unsqueeze(1) -> (B, 1, T, D).  Kernel layout: rows t-major/b-minor,
    # features on lanes -> (T*B, D).
    B, T, D = x.shape
    x2d = jnp.transpose(x, (1, 0, 2)).reshape(T * B, D).astype(jnp.float32)

    H = params["whh0"].shape[0]
    NC = params["wcl"].shape[1]

    args = (x2d,
            params["wc1"], params["bc1"], params["wc2"], params["bc2"],
            params["wc3"], params["bc3"], params["wc4"], params["bc4"],
            params["wih0"], params["whh0"], params["bl0"],
            params["w1cat"], params["bl1"],
            params["wcl"], params["bcl"])

    vmem = lambda: pl.BlockSpec(memory_space=pltpu.MemorySpace.VMEM)
    # Grid-less call: the whole working set is a few hundred KiB, well under the
    # scoped VMEM default on v5e/v6e/v7x.  If batch is ever scaled up, add a grid
    # over B with dimension_semantics=("parallel",) to split across TensorCores.
    z, out = pl.pallas_call(
        functools.partial(deepconvlstm_kernel, filter_size, B),
        out_shape=(jax.ShapeDtypeStruct((B, H), jnp.float32),
                   jax.ShapeDtypeStruct((B, NC), jnp.float32)),
        in_specs=[vmem() for _ in args],
        out_specs=(vmem(), vmem()),
    )(*args)
    return z, out


if __name__ == "__main__":
    # Small shapes consistent with the module's forward:
    B, T, D = 2, 16, 8      # batch, window length, input_dim (sensor channels)
    C = 8                   # filter_num
    K = 3                   # filter_size  -> T' = T - 4*(K-1) = 8
    H = 32                  # hidden_dim
    NC = 6                  # num_class
    F = D * C

    key = jax.random.PRNGKey(0)
    ks = jax.random.split(key, 24)
    s = 0.1
    # Parameters in native PyTorch layouts; prepare_params maps them to the
    # kernel layout (block-diag conv weights, gate-permuted LSTM weights).
    torch_params = {
        "conv1_w": jax.random.normal(ks[0], (C, 1, K, 1), jnp.float32) * s,
        "conv1_b": jax.random.normal(ks[1], (C,), jnp.float32) * s,
        "conv2_w": jax.random.normal(ks[2], (C, C, K, 1), jnp.float32) * s,
        "conv2_b": jax.random.normal(ks[3], (C,), jnp.float32) * s,
        "conv3_w": jax.random.normal(ks[4], (C, C, K, 1), jnp.float32) * s,
        "conv3_b": jax.random.normal(ks[5], (C,), jnp.float32) * s,
        "conv4_w": jax.random.normal(ks[6], (C, C, K, 1), jnp.float32) * s,
        "conv4_b": jax.random.normal(ks[7], (C,), jnp.float32) * s,
        "lstm_w_ih_l0": jax.random.normal(ks[8], (4 * H, F), jnp.float32) * s,
        "lstm_w_hh_l0": jax.random.normal(ks[9], (4 * H, H), jnp.float32) * s,
        "lstm_b_ih_l0": jax.random.normal(ks[10], (4 * H,), jnp.float32) * s,
        "lstm_b_hh_l0": jax.random.normal(ks[11], (4 * H,), jnp.float32) * s,
        "lstm_w_ih_l1": jax.random.normal(ks[12], (4 * H, H), jnp.float32) * s,
        "lstm_w_hh_l1": jax.random.normal(ks[13], (4 * H, H), jnp.float32) * s,
        "lstm_b_ih_l1": jax.random.normal(ks[14], (4 * H,), jnp.float32) * s,
        "lstm_b_hh_l1": jax.random.normal(ks[15], (4 * H,), jnp.float32) * s,
        "cls_w": jax.random.normal(ks[16], (NC, H), jnp.float32) * s,
        "cls_b": jax.random.normal(ks[17], (NC,), jnp.float32) * s,
    }
    params = prepare_params(torch_params, D)
    x = jax.random.normal(ks[18], (B, T, D), jnp.float32)

    fwd = jax.jit(functools.partial(deepconvlstm_forward, filter_size=K))
    z, out = fwd(x, params)
    jax.block_until_ready((z, out))

    assert z.shape == (B, H) and out.shape == (B, NC)
    assert bool(jnp.all(jnp.isfinite(z))) and bool(jnp.all(jnp.isfinite(out)))
    print("KERNEL_OK")
</pallas_src>

<mosaic_0001>
module attributes {stable_mosaic.version = 11 : i64} {
  func.func @deepconvlstm_kernel(%arg0: memref<32x8xf32, #tpu.memory_space<vmem>>, %arg1: memref<24x64xf32, #tpu.memory_space<vmem>>, %arg2: memref<1x64xf32, #tpu.memory_space<vmem>>, %arg3: memref<192x64xf32, #tpu.memory_space<vmem>>, %arg4: memref<1x64xf32, #tpu.memory_space<vmem>>, %arg5: memref<192x64xf32, #tpu.memory_space<vmem>>, %arg6: memref<1x64xf32, #tpu.memory_space<vmem>>, %arg7: memref<192x64xf32, #tpu.memory_space<vmem>>, %arg8: memref<1x64xf32, #tpu.memory_space<vmem>>, %arg9: memref<64x128xf32, #tpu.memory_space<vmem>>, %arg10: memref<32x128xf32, #tpu.memory_space<vmem>>, %arg11: memref<1x128xf32, #tpu.memory_space<vmem>>, %arg12: memref<64x128xf32, #tpu.memory_space<vmem>>, %arg13: memref<1x128xf32, #tpu.memory_space<vmem>>, %arg14: memref<32x6xf32, #tpu.memory_space<vmem>>, %arg15: memref<1x6xf32, #tpu.memory_space<vmem>>, %arg16: memref<2x32xf32, #tpu.memory_space<vmem>>, %arg17: memref<2x6xf32, #tpu.memory_space<vmem>>) attributes {dimension_semantics = [], scalar_prefetch = 0 : i64, scratch_operands = 0 : i64, tpu.core_type = #tpu.core_type<tc>} {
    %c0 = arith.constant 0 : index
    %c0_0 = arith.constant 0 : index
    %0 = vector.load %arg0[%c0, %c0_0] : memref<32x8xf32, #tpu.memory_space<vmem>>, vector<32x8xf32>
    %1 = vector.extract_strided_slice %0 {offsets = [0, 0], sizes = [28, 8], strides = [1, 1]} : vector<32x8xf32> to vector<28x8xf32>
    %2 = vector.extract_strided_slice %0 {offsets = [2, 0], sizes = [28, 8], strides = [1, 1]} : vector<32x8xf32> to vector<28x8xf32>
    %3 = vector.extract_strided_slice %0 {offsets = [4, 0], sizes = [28, 8], strides = [1, 1]} : vector<32x8xf32> to vector<28x8xf32>
    %4 = tpu.concatenate %1, %2, %3 in 1 : vector<28x8xf32>, vector<28x8xf32>, vector<28x8xf32> -> vector<28x24xf32>
    %c0_1 = arith.constant 0 : index
    %c0_2 = arith.constant 0 : index
    %5 = vector.load %arg1[%c0_1, %c0_2] : memref<24x64xf32, #tpu.memory_space<vmem>>, vector<24x64xf32>
    %cst = arith.constant dense<0.000000e+00> : vector<28x64xf32>
    %6 = tpu.matmul %4, %5, %cst {dimension_numbers = #tpu.dot_dimension_numbers<[1], [0], [0], [1], [0, 0, 1, 1], [], []>} : vector<28x24xf32>, vector<24x64xf32>, vector<28x64xf32> -> vector<28x64xf32>
    %c0_3 = arith.constant 0 : index
    %c0_4 = arith.constant 0 : index
    %7 = vector.load %arg2[%c0_3, %c0_4] : memref<1x64xf32, #tpu.memory_space<vmem>>, vector<1x64xf32>
    %8 = vector.broadcast %7 : vector<1x64xf32> to vector<28x64xf32>
    %9 = arith.addf %6, %8 : vector<28x64xf32>
    %cst_5 = arith.constant 0.000000e+00 : f32
    %10 = vector.broadcast %cst_5 : f32 to vector<28x64xf32>
    %11 = arith.maximumf %9, %10 : vector<28x64xf32>
    %12 = vector.extract_strided_slice %11 {offsets = [0, 0], sizes = [24, 64], strides = [1, 1]} : vector<28x64xf32> to vector<24x64xf32>
    %13 = vector.extract_strided_slice %11 {offsets = [2, 0], sizes = [24, 64], strides = [1, 1]} : vector<28x64xf32> to vector<24x64xf32>
    %14 = vector.extract_strided_slice %11 {offsets = [4, 0], sizes = [24, 64], strides = [1, 1]} : vector<28x64xf32> to vector<24x64xf32>
    %15 = tpu.concatenate %12, %13, %14 in 1 : vector<24x64xf32>, vector<24x64xf32>, vector<24x64xf32> -> vector<24x192xf32>
    %c0_6 = arith.constant 0 : index
    %c0_7 = arith.constant 0 : index
    %16 = vector.load %arg3[%c0_6, %c0_7] : memref<192x64xf32, #tpu.memory_space<vmem>>, vector<192x64xf32>
    %cst_8 = arith.constant dense<0.000000e+00> : vector<24x64xf32>
    %17 = tpu.matmul %15, %16, %cst_8 {dimension_numbers = #tpu.dot_dimension_numbers<[1], [0], [0], [1], [0, 0, 1, 1], [], []>} : vector<24x192xf32>, vector<192x64xf32>, vector<24x64xf32> -> vector<24x64xf32>
    %c0_9 = arith.constant 0 : index
    %c0_10 = arith.constant 0 : index
    %18 = vector.load %arg4[%c0_9, %c0_10] : memref<1x64xf32, #tpu.memory_space<vmem>>, vector<1x64xf32>
    %19 = vector.broadcast %18 : vector<1x64xf32> to vector<24x64xf32>
    %20 = arith.addf %17, %19 : vector<24x64xf32>
    %cst_11 = arith.constant 0.000000e+00 : f32
    %21 = vector.broadcast %cst_11 : f32 to vector<24x64xf32>
    %22 = arith.maximumf %20, %21 : vector<24x64xf32>
    %23 = vector.extract_strided_slice %22 {offsets = [0, 0], sizes = [20, 64], strides = [1, 1]} : vector<24x64xf32> to vector<20x64xf32>
    %24 = vector.extract_strided_slice %22 {offsets = [2, 0], sizes = [20, 64], strides = [1, 1]} : vector<24x64xf32> to vector<20x64xf32>
    %25 = vector.extract_strided_slice %22 {offsets = [4, 0], sizes = [20, 64], strides = [1, 1]} : vector<24x64xf32> to vector<20x64xf32>
    %26 = tpu.concatenate %23, %24, %25 in 1 : vector<20x64xf32>, vector<20x64xf32>, vector<20x64xf32> -> vector<20x192xf32>
    %c0_12 = arith.constant 0 : index
    %c0_13 = arith.constant 0 : index
    %27 = vector.load %arg5[%c0_12, %c0_13] : memref<192x64xf32, #tpu.memory_space<vmem>>, vector<192x64xf32>
    %cst_14 = arith.constant dense<0.000000e+00> : vector<20x64xf32>
    %28 = tpu.matmul %26, %27, %cst_14 {dimension_numbers = #tpu.dot_dimension_numbers<[1], [0], [0], [1], [0, 0, 1, 1], [], []>} : vector<20x192xf32>, vector<192x64xf32>, vector<20x64xf32> -> vector<20x64xf32>
    %c0_15 = arith.constant 0 : index
    %c0_16 = arith.constant 0 : index
    %29 = vector.load %arg6[%c0_15, %c0_16] : memref<1x64xf32, #tpu.memory_space<vmem>>, vector<1x64xf32>
    %30 = vector.broadcast %29 : vector<1x64xf32> to vector<20x64xf32>
    %31 = arith.addf %28, %30 : vector<20x64xf32>
    %cst_17 = arith.constant 0.000000e+00 : f32
    %32 = vector.broadcast %cst_17 : f32 to vector<20x64xf32>
    %33 = arith.maximumf %31, %32 : vector<20x64xf32>
    %34 = vector.extract_strided_slice %33 {offsets = [0, 0], sizes = [16, 64], strides = [1, 1]} : vector<20x64xf32> to vector<16x64xf32>
    %35 = vector.extract_strided_slice %33 {offsets = [2, 0], sizes = [16, 64], strides = [1, 1]} : vector<20x64xf32> to vector<16x64xf32>
    %36 = vector.extract_strided_slice %33 {offsets = [4, 0], sizes = [16, 64], strides = [1, 1]} : vector<20x64xf32> to vector<16x64xf32>
    %37 = tpu.concatenate %34, %35, %36 in 1 : vector<16x64xf32>, vector<16x64xf32>, vector<16x64xf32> -> vector<16x192xf32>
    %c0_18 = arith.constant 0 : index
    %c0_19 = arith.constant 0 : index
    %38 = vector.load %arg7[%c0_18, %c0_19] : memref<192x64xf32, #tpu.memory_space<vmem>>, vector<192x64xf32>
    %cst_20 = arith.constant dense<0.000000e+00> : vector<16x64xf32>
    %39 = tpu.matmul %37, %38, %cst_20 {dimension_numbers = #tpu.dot_dimension_numbers<[1], [0], [0], [1], [0, 0, 1, 1], [], []>} : vector<16x192xf32>, vector<192x64xf32>, vector<16x64xf32> -> vector<16x64xf32>
    %c0_21 = arith.constant 0 : index
    %c0_22 = arith.constant 0 : index
    %40 = vector.load %arg8[%c0_21, %c0_22] : memref<1x64xf32, #tpu.memory_space<vmem>>, vector<1x64xf32>
    %41 = vector.broadcast %40 : vector<1x64xf32> to vector<16x64xf32>
    %42 = arith.addf %39, %41 : vector<16x64xf32>
    %cst_23 = arith.constant 0.000000e+00 : f32
    %43 = vector.broadcast %cst_23 : f32 to vector<16x64xf32>
    %44 = arith.maximumf %42, %43 : vector<16x64xf32>
    %c0_24 = arith.constant 0 : index
    %c0_25 = arith.constant 0 : index
    %45 = vector.load %arg9[%c0_24, %c0_25] : memref<64x128xf32, #tpu.memory_space<vmem>>, vector<64x128xf32>
    %cst_26 = arith.constant dense<0.000000e+00> : vector<16x128xf32>
    %46 = tpu.matmul %44, %45, %cst_26 {dimension_numbers = #tpu.dot_dimension_numbers<[1], [0], [0], [1], [0, 0, 1, 1], [], []>} : vector<16x64xf32>, vector<64x128xf32>, vector<16x128xf32> -> vector<16x128xf32>
    %c0_27 = arith.constant 0 : index
    %c0_28 = arith.constant 0 : index
    %47 = vector.load %arg11[%c0_27, %c0_28] : memref<1x128xf32, #tpu.memory_space<vmem>>, vector<1x128xf32>
    %48 = vector.broadcast %47 : vector<1x128xf32> to vector<16x128xf32>
    %49 = arith.addf %46, %48 : vector<16x128xf32>
    %c0_29 = arith.constant 0 : index
    %c0_30 = arith.constant 0 : index
    %50 = vector.load %arg10[%c0_29, %c0_30] : memref<32x128xf32, #tpu.memory_space<vmem>>, vector<32x128xf32>
    %c0_31 = arith.constant 0 : index
    %c0_32 = arith.constant 0 : index
    %51 = vector.load %arg12[%c0_31, %c0_32] : memref<64x128xf32, #tpu.memory_space<vmem>>, vector<64x128xf32>
    %c0_33 = arith.constant 0 : index
    %c0_34 = arith.constant 0 : index
    %52 = vector.load %arg13[%c0_33, %c0_34] : memref<1x128xf32, #tpu.memory_space<vmem>>, vector<1x128xf32>
    %cst_35 = arith.constant 0.000000e+00 : f32
    %53 = vector.broadcast %cst_35 : f32 to vector<2x32xf32>
    %cst_36 = arith.constant 0.000000e+00 : f32
    %54 = vector.broadcast %cst_36 : f32 to vector<2x32xf32>
    %cst_37 = arith.constant 0.000000e+00 : f32
    %55 = vector.broadcast %cst_37 : f32 to vector<2x32xf32>
    %cst_38 = arith.constant 0.000000e+00 : f32
    %56 = vector.broadcast %cst_38 : f32 to vector<2x32xf32>
    %57 = vector.extract_strided_slice %49 {offsets = [0, 0], sizes = [2, 128], strides = [1, 1]} : vector<16x128xf32> to vector<2x128xf32>
    %cst_39 = arith.constant dense<0.000000e+00> : vector<2x128xf32>
    %58 = tpu.matmul %53, %50, %cst_39 {dimension_numbers = #tpu.dot_dimension_numbers<[1], [0], [0], [1], [0, 0, 1, 1], [], []>} : vector<2x32xf32>, vector<32x128xf32>, vector<2x128xf32> -> vector<2x128xf32>
    %59 = arith.addf %57, %58 : vector<2x128xf32>
    %60 = vector.extract_strided_slice %59 {offsets = [0, 0], sizes = [2, 96], strides = [1, 1]} : vector<2x128xf32> to vector<2x96xf32>
    %61 = arith.negf %60 : vector<2x96xf32>
    %62 = math.exp %61 : vector<2x96xf32>
    %cst_40 = arith.constant 1.000000e+00 : f32
    %63 = vector.broadcast %cst_40 : f32 to vector<2x96xf32>
    %64 = arith.addf %63, %62 : vector<2x96xf32>
    %65 = arith.divf %63, %64 : vector<2x96xf32>
    %66 = vector.extract_strided_slice %65 {offsets = [0, 0], sizes = [2, 32], strides = [1, 1]} : vector<2x96xf32> to vector<2x32xf32>
    %67 = vector.extract_strided_slice %65 {offsets = [0, 32], sizes = [2, 32], strides = [1, 1]} : vector<2x96xf32> to vector<2x32xf32>
    %68 = vector.extract_strided_slice %65 {offsets = [0, 64], sizes = [2, 32], strides = [1, 1]} : vector<2x96xf32> to vector<2x32xf32>
    %69 = vector.extract_strided_slice %59 {offsets = [0, 96], sizes = [2, 32], strides = [1, 1]} : vector<2x128xf32> to vector<2x32xf32>
    %70 = math.tanh %69 : vector<2x32xf32>
    %71 = arith.mulf %67, %54 : vector<2x32xf32>
    %72 = arith.mulf %66, %70 : vector<2x32xf32>
    %73 = arith.addf %71, %72 : vector<2x32xf32>
    %74 = math.tanh %73 : vector<2x32xf32>
    %75 = arith.mulf %68, %74 : vector<2x32xf32>
    %76 = tpu.concatenate %75, %55 in 1 : vector<2x32xf32>, vector<2x32xf32> -> vector<2x64xf32>
    %cst_41 = arith.constant dense<0.000000e+00> : vector<2x128xf32>
    %77 = tpu.matmul %76, %51, %cst_41 {dimension_numbers = #tpu.dot_dimension_numbers<[1], [0], [0], [1], [0, 0, 1, 1], [], []>} : vector<2x64xf32>, vector<64x128xf32>, vector<2x128xf32> -> vector<2x128xf32>
    %78 = vector.broadcast %52 : vector<1x128xf32> to vector<2x128xf32>
    %79 = arith.addf %77, %78 : vector<2x128xf32>
    %80 = vector.extract_strided_slice %79 {offsets = [0, 0], sizes = [2, 96], strides = [1, 1]} : vector<2x128xf32> to vector<2x96xf32>
    %81 = arith.negf %80 : vector<2x96xf32>
    %82 = math.exp %81 : vector<2x96xf32>
    %cst_42 = arith.constant 1.000000e+00 : f32
    %83 = vector.broadcast %cst_42 : f32 to vector<2x96xf32>
    %84 = arith.addf %83, %82 : vector<2x96xf32>
    %85 = arith.divf %83, %84 : vector<2x96xf32>
    %86 = vector.extract_strided_slice %85 {offsets = [0, 0], sizes = [2, 32], strides = [1, 1]} : vector<2x96xf32> to vector<2x32xf32>
    %87 = vector.extract_strided_slice %85 {offsets = [0, 32], sizes = [2, 32], strides = [1, 1]} : vector<2x96xf32> to vector<2x32xf32>
    %88 = vector.extract_strided_slice %85 {offsets = [0, 64], sizes = [2, 32], strides = [1, 1]} : vector<2x96xf32> to vector<2x32xf32>
    %89 = vector.extract_strided_slice %79 {offsets = [0, 96], sizes = [2, 32], strides = [1, 1]} : vector<2x128xf32> to vector<2x32xf32>
    %90 = math.tanh %89 : vector<2x32xf32>
    %91 = arith.mulf %87, %56 : vector<2x32xf32>
    %92 = arith.mulf %86, %90 : vector<2x32xf32>
    %93 = arith.addf %91, %92 : vector<2x32xf32>
    %94 = math.tanh %93 : vector<2x32xf32>
    %95 = arith.mulf %88, %94 : vector<2x32xf32>
    %96 = vector.extract_strided_slice %49 {offsets = [2, 0], sizes = [2, 128], strides = [1, 1]} : vector<16x128xf32> to vector<2x128xf32>
    %cst_43 = arith.constant dense<0.000000e+00> : vector<2x128xf32>
    %97 = tpu.matmul %75, %50, %cst_43 {dimension_numbers = #tpu.dot_dimension_numbers<[1], [0], [0], [1], [0, 0, 1, 1], [], []>} : vector<2x32xf32>, vector<32x128xf32>, vector<2x128xf32> -> vector<2x128xf32>
    %98 = arith.addf %96, %97 : vector<2x128xf32>
    %99 = vector.extract_strided_slice %98 {offsets = [0, 0], sizes = [2, 96], strides = [1, 1]} : vector<2x128xf32> to vector<2x96xf32>
    %100 = arith.negf %99 : vector<2x96xf32>
    %101 = math.exp %100 : vector<2x96xf32>
    %cst_44 = arith.constant 1.000000e+00 : f32
    %102 = vector.broadcast %cst_44 : f32 to vector<2x96xf32>
    %103 = arith.addf %102, %101 : vector<2x96xf32>
    %104 = arith.divf %102, %103 : vector<2x96xf32>
    %105 = vector.extract_strided_slice %104 {offsets = [0, 0], sizes = [2, 32], strides = [1, 1]} : vector<2x96xf32> to vector<2x32xf32>
    %106 = vector.extract_strided_slice %104 {offsets = [0, 32], sizes = [2, 32], strides = [1, 1]} : vector<2x96xf32> to vector<2x32xf32>
    %107 = vector.extract_strided_slice %104 {offsets = [0, 64], sizes = [2, 32], strides = [1, 1]} : vector<2x96xf32> to vector<2x32xf32>
    %108 = vector.extract_strided_slice %98 {offsets = [0, 96], sizes = [2, 32], strides = [1, 1]} : vector<2x128xf32> to vector<2x32xf32>
    %109 = math.tanh %108 : vector<2x32xf32>
    %110 = arith.mulf %106, %73 : vector<2x32xf32>
    %111 = arith.mulf %105, %109 : vector<2x32xf32>
    %112 = arith.addf %110, %111 : vector<2x32xf32>
    %113 = math.tanh %112 : vector<2x32xf32>
    %114 = arith.mulf %107, %113 : vector<2x32xf32>
    %115 = tpu.concatenate %114, %95 in 1 : vector<2x32xf32>, vector<2x32xf32> -> vector<2x64xf32>
    %cst_45 = arith.constant dense<0.000000e+00> : vector<2x128xf32>
    %116 = tpu.matmul %115, %51, %cst_45 {dimension_numbers = #tpu.dot_dimension_numbers<[1], [0], [0], [1], [0, 0, 1, 1], [], []>} : vector<2x64xf32>, vector<64x128xf32>, vector<2x128xf32> -> vector<2x128xf32>
    %117 = vector.broadcast %52 : vector<1x128xf32> to vector<2x128xf32>
    %118 = arith.addf %116, %117 : vector<2x128xf32>
    %119 = vector.extract_strided_slice %118 {offsets = [0, 0], sizes = [2, 96], strides = [1, 1]} : vector<2x128xf32> to vector<2x96xf32>
    %120 = arith.negf %119 : vector<2x96xf32>
    %121 = math.exp %120 : vector<2x96xf32>
    %cst_46 = arith.constant 1.000000e+00 : f32
    %122 = vector.broadcast %cst_46 : f32 to vector<2x96xf32>
    %123 = arith.addf %122, %121 : vector<2x96xf32>
    %124 = arith.divf %122, %123 : vector<2x96xf32>
    %125 = vector.extract_strided_slice %124 {offsets = [0, 0], sizes = [2, 32], strides = [1, 1]} : vector<2x96xf32> to vector<2x32xf32>
    %126 = vector.extract_strided_slice %124 {offsets = [0, 32], sizes = [2, 32], strides = [1, 1]} : vector<2x96xf32> to vector<2x32xf32>
    %127 = vector.extract_strided_slice %124 {offsets = [0, 64], sizes = [2, 32], strides = [1, 1]} : vector<2x96xf32> to vector<2x32xf32>
    %128 = vector.extract_strided_slice %118 {offsets = [0, 96], sizes = [2, 32], strides = [1, 1]} : vector<2x128xf32> to vector<2x32xf32>
    %129 = math.tanh %128 : vector<2x32xf32>
    %130 = arith.mulf %126, %93 : vector<2x32xf32>
    %131 = arith.mulf %125, %129 : vector<2x32xf32>
    %132 = arith.addf %130, %131 : vector<2x32xf32>
    %133 = math.tanh %132 : vector<2x32xf32>
    %134 = arith.mulf %127, %133 : vector<2x32xf32>
    %135 = vector.extract_strided_slice %49 {offsets = [4, 0], sizes = [2, 128], strides = [1, 1]} : vector<16x128xf32> to vector<2x128xf32>
    %cst_47 = arith.constant dense<0.000000e+00> : vector<2x128xf32>
    %136 = tpu.matmul %114, %50, %cst_47 {dimension_numbers = #tpu.dot_dimension_numbers<[1], [0], [0], [1], [0, 0, 1, 1], [], []>} : vector<2x32xf32>, vector<32x128xf32>, vector<2x128xf32> -> vector<2x128xf32>
    %137 = arith.addf %135, %136 : vector<2x128xf32>
    %138 = vector.extract_strided_slice %137 {offsets = [0, 0], sizes = [2, 96], strides = [1, 1]} : vector<2x128xf32> to vector<2x96xf32>
    %139 = arith.negf %138 : vector<2x96xf32>
    %140 = math.exp %139 : vector<2x96xf32>
    %cst_48 = arith.constant 1.000000e+00 : f32
    %141 = vector.broadcast %cst_48 : f32 to vector<2x96xf32>
    %142 = arith.addf %141, %140 : vector<2x96xf32>
    %143 = arith.divf %141, %142 : vector<2x96xf32>
    %144 = vector.extract_strided_slice %143 {offsets = [0, 0], sizes = [2, 32], strides = [1, 1]} : vector<2x96xf32> to vector<2x32xf32>
    %145 = vector.extract_strided_slice %143 {offsets = [0, 32], sizes = [2, 32], strides = [1, 1]} : vector<2x96xf32> to vector<2x32xf32>
    %146 = vector.extract_strided_slice %143 {offsets = [0, 64], sizes = [2, 32], strides = [1, 1]} : vector<2x96xf32> to vector<2x32xf32>
    %147 = vector.extract_strided_slice %137 {offsets = [0, 96], sizes = [2, 32], strides = [1, 1]} : vector<2x128xf32> to vector<2x32xf32>
    %148 = math.tanh %147 : vector<2x32xf32>
    %149 = arith.mulf %145, %112 : vector<2x32xf32>
    %150 = arith.mulf %144, %148 : vector<2x32xf32>
    %151 = arith.addf %149, %150 : vector<2x32xf32>
    %152 = math.tanh %151 : vector<2x32xf32>
    %153 = arith.mulf %146, %152 : vector<2x32xf32>
    %154 = tpu.concatenate %153, %134 in 1 : vector<2x32xf32>, vector<2x32xf32> -> vector<2x64xf32>
    %cst_49 = arith.constant dense<0.000000e+00> : vector<2x128xf32>
    %155 = tpu.matmul %154, %51, %cst_49 {dimension_numbers = #tpu.dot_dimension_numbers<[1], [0], [0], [1], [0, 0, 1, 1], [], []>} : vector<2x64xf32>, vector<64x128xf32>, vector<2x128xf32> -> vector<2x128xf32>
    %156 = vector.broadcast %52 : vector<1x128xf32> to vector<2x128xf32>
    %157 = arith.addf %155, %156 : vector<2x128xf32>
    %158 = vector.extract_strided_slice %157 {offsets = [0, 0], sizes = [2, 96], strides = [1, 1]} : vector<2x128xf32> to vector<2x96xf32>
    %159 = arith.negf %158 : vector<2x96xf32>
    %160 = math.exp %159 : vector<2x96xf32>
    %cst_50 = arith.constant 1.000000e+00 : f32
    %161 = vector.broadcast %cst_50 : f32 to vector<2x96xf32>
    %162 = arith.addf %161, %160 : vector<2x96xf32>
    %163 = arith.divf %161, %162 : vector<2x96xf32>
    %164 = vector.extract_strided_slice %163 {offsets = [0, 0], sizes = [2, 32], strides = [1, 1]} : vector<2x96xf32> to vector<2x32xf32>
    %165 = vector.extract_strided_slice %163 {offsets = [0, 32], sizes = [2, 32], strides = [1, 1]} : vector<2x96xf32> to vector<2x32xf32>
    %166 = vector.extract_strided_slice %163 {offsets = [0, 64], sizes = [2, 32], strides = [1, 1]} : vector<2x96xf32> to vector<2x32xf32>
    %167 = vector.extract_strided_slice %157 {offsets = [0, 96], sizes = [2, 32], strides = [1, 1]} : vector<2x128xf32> to vector<2x32xf32>
    %168 = math.tanh %167 : vector<2x32xf32>
    %169 = arith.mulf %165, %132 : vector<2x32xf32>
    %170 = arith.mulf %164, %168 : vector<2x32xf32>
    %171 = arith.addf %169, %170 : vector<2x32xf32>
    %172 = math.tanh %171 : vector<2x32xf32>
    %173 = arith.mulf %166, %172 : vector<2x32xf32>
    %174 = vector.extract_strided_slice %49 {offsets = [6, 0], sizes = [2, 128], strides = [1, 1]} : vector<16x128xf32> to vector<2x128xf32>
    %cst_51 = arith.constant dense<0.000000e+00> : vector<2x128xf32>
    %175 = tpu.matmul %153, %50, %cst_51 {dimension_numbers = #tpu.dot_dimension_numbers<[1], [0], [0], [1], [0, 0, 1, 1], [], []>} : vector<2x32xf32>, vector<32x128xf32>, vector<2x128xf32> -> vector<2x128xf32>
    %176 = arith.addf %174, %175 : vector<2x128xf32>
    %177 = vector.extract_strided_slice %176 {offsets = [0, 0], sizes = [2, 96], strides = [1, 1]} : vector<2x128xf32> to vector<2x96xf32>
    %178 = arith.negf %177 : vector<2x96xf32>
    %179 = math.exp %178 : vector<2x96xf32>
    %cst_52 = arith.constant 1.000000e+00 : f32
    %180 = vector.broadcast %cst_52 : f32 to vector<2x96xf32>
    %181 = arith.addf %180, %179 : vector<2x96xf32>
    %182 = arith.divf %180, %181 : vector<2x96xf32>
    %183 = vector.extract_strided_slice %182 {offsets = [0, 0], sizes = [2, 32], strides = [1, 1]} : vector<2x96xf32> to vector<2x32xf32>
    %184 = vector.extract_strided_slice %182 {offsets = [0, 32], sizes = [2, 32], strides = [1, 1]} : vector<2x96xf32> to vector<2x32xf32>
    %185 = vector.extract_strided_slice %182 {offsets = [0, 64], sizes = [2, 32], strides = [1, 1]} : vector<2x96xf32> to vector<2x32xf32>
    %186 = vector.extract_strided_slice %176 {offsets = [0, 96], sizes = [2, 32], strides = [1, 1]} : vector<2x128xf32> to vector<2x32xf32>
    %187 = math.tanh %186 : vector<2x32xf32>
    %188 = arith.mulf %184, %151 : vector<2x32xf32>
    %189 = arith.mulf %183, %187 : vector<2x32xf32>
    %190 = arith.addf %188, %189 : vector<2x32xf32>
    %191 = math.tanh %190 : vector<2x32xf32>
    %192 = arith.mulf %185, %191 : vector<2x32xf32>
    %193 = tpu.concatenate %192, %173 in 1 : vector<2x32xf32>, vector<2x32xf32> -> vector<2x64xf32>
    %cst_53 = arith.constant dense<0.000000e+00> : vector<2x128xf32>
    %194 = tpu.matmul %193, %51, %cst_53 {dimension_numbers = #tpu.dot_dimension_numbers<[1], [0], [0], [1], [0, 0, 1, 1], [], []>} : vector<2x64xf32>, vector<64x128xf32>, vector<2x128xf32> -> vector<2x128xf32>
    %195 = vector.broadcast %52 : vector<1x128xf32> to vector<2x128xf32>
    %196 = arith.addf %194, %195 : vector<2x128xf32>
    %197 = vector.extract_strided_slice %196 {offsets = [0, 0], sizes = [2, 96], strides = [1, 1]} : vector<2x128xf32> to vector<2x96xf32>
    %198 = arith.negf %197 : vector<2x96xf32>
    %199 = math.exp %198 : vector<2x96xf32>
    %cst_54 = arith.constant 1.000000e+00 : f32
    %200 = vector.broadcast %cst_54 : f32 to vector<2x96xf32>
    %201 = arith.addf %200, %199 : vector<2x96xf32>
    %202 = arith.divf %200, %201 : vector<2x96xf32>
    %203 = vector.extract_strided_slice %202 {offsets = [0, 0], sizes = [2, 32], strides = [1, 1]} : vector<2x96xf32> to vector<2x32xf32>
    %204 = vector.extract_strided_slice %202 {offsets = [0, 32], sizes = [2, 32], strides = [1, 1]} : vector<2x96xf32> to vector<2x32xf32>
    %205 = vector.extract_strided_slice %202 {offsets = [0, 64], sizes = [2, 32], strides = [1, 1]} : vector<2x96xf32> to vector<2x32xf32>
    %206 = vector.extract_strided_slice %196 {offsets = [0, 96], sizes = [2, 32], strides = [1, 1]} : vector<2x128xf32> to vector<2x32xf32>
    %207 = math.tanh %206 : vector<2x32xf32>
    %208 = arith.mulf %204, %171 : vector<2x32xf32>
    %209 = arith.mulf %203, %207 : vector<2x32xf32>
    %210 = arith.addf %208, %209 : vector<2x32xf32>
    %211 = math.tanh %210 : vector<2x32xf32>
    %212 = arith.mulf %205, %211 : vector<2x32xf32>
    %213 = vector.extract_strided_slice %49 {offsets = [8, 0], sizes = [2, 128], strides = [1, 1]} : vector<16x128xf32> to vector<2x128xf32>
    %cst_55 = arith.constant dense<0.000000e+00> : vector<2x128xf32>
    %214 = tpu.matmul %192, %50, %cst_55 {dimension_numbers = #tpu.dot_dimension_numbers<[1], [0], [0], [1], [0, 0, 1, 1], [], []>} : vector<2x32xf32>, vector<32x128xf32>, vector<2x128xf32> -> vector<2x128xf32>
    %215 = arith.addf %213, %214 : vector<2x128xf32>
    %216 = vector.extract_strided_slice %215 {offsets = [0, 0], sizes = [2, 96], strides = [1, 1]} : vector<2x128xf32> to vector<2x96xf32>
    %217 = arith.negf %216 : vector<2x96xf32>
    %218 = math.exp %217 : vector<2x96xf32>
    %cst_56 = arith.constant 1.000000e+00 : f32
    %219 = vector.broadcast %cst_56 : f32 to vector<2x96xf32>
    %220 = arith.addf %219, %218 : vector<2x96xf32>
    %221 = arith.divf %219, %220 : vector<2x96xf32>
    %222 = vector.extract_strided_slice %221 {offsets = [0, 0], sizes = [2, 32], strides = [1, 1]} : vector<2x96xf32> to vector<2x32xf32>
    %223 = vector.extract_strided_slice %221 {offsets = [0, 32], sizes = [2, 32], strides = [1, 1]} : vector<2x96xf32> to vector<2x32xf32>
    %224 = vector.extract_strided_slice %221 {offsets = [0, 64], sizes = [2, 32], strides = [1, 1]} : vector<2x96xf32> to vector<2x32xf32>
    %225 = vector.extract_strided_slice %215 {offsets = [0, 96], sizes = [2, 32], strides = [1, 1]} : vector<2x128xf32> to vector<2x32xf32>
    %226 = math.tanh %225 : vector<2x32xf32>
    %227 = arith.mulf %223, %190 : vector<2x32xf32>
    %228 = arith.mulf %222, %226 : vector<2x32xf32>
    %229 = arith.addf %227, %228 : vector<2x32xf32>
    %230 = math.tanh %229 : vector<2x32xf32>
    %231 = arith.mulf %224, %230 : vector<2x32xf32>
    %232 = tpu.concatenate %231, %212 in 1 : vector<2x32xf32>, vector<2x32xf32> -> vector<2x64xf32>
    %cst_57 = arith.constant dense<0.000000e+00> : vector<2x128xf32>
    %233 = tpu.matmul %232, %51, %cst_57 {dimension_numbers = #tpu.dot_dimension_numbers<[1], [0], [0], [1], [0, 0, 1, 1], [], []>} : vector<2x64xf32>, vector<64x128xf32>, vector<2x128xf32> -> vector<2x128xf32>
    %234 = vector.broadcast %52 : vector<1x128xf32> to vector<2x128xf32>
    %235 = arith.addf %233, %234 : vector<2x128xf32>
    %236 = vector.extract_strided_slice %235 {offsets = [0, 0], sizes = [2, 96], strides = [1, 1]} : vector<2x128xf32> to vector<2x96xf32>
    %237 = arith.negf %236 : vector<2x96xf32>
    %238 = math.exp %237 : vector<2x96xf32>
    %cst_58 = arith.constant 1.000000e+00 : f32
    %239 = vector.broadcast %cst_58 : f32 to vector<2x96xf32>
    %240 = arith.addf %239, %238 : vector<2x96xf32>
    %241 = arith.divf %239, %240 : vector<2x96xf32>
    %242 = vector.extract_strided_slice %241 {offsets = [0, 0], sizes = [2, 32], strides = [1, 1]} : vector<2x96xf32> to vector<2x32xf32>
    %243 = vector.extract_strided_slice %241 {offsets = [0, 32], sizes = [2, 32], strides = [1, 1]} : vector<2x96xf32> to vector<2x32xf32>
    %244 = vector.extract_strided_slice %241 {offsets = [0, 64], sizes = [2, 32], strides = [1, 1]} : vector<2x96xf32> to vector<2x32xf32>
    %245 = vector.extract_strided_slice %235 {offsets = [0, 96], sizes = [2, 32], strides = [1, 1]} : vector<2x128xf32> to vector<2x32xf32>
    %246 = math.tanh %245 : vector<2x32xf32>
    %247 = arith.mulf %243, %210 : vector<2x32xf32>
    %248 = arith.mulf %242, %246 : vector<2x32xf32>
    %249 = arith.addf %247, %248 : vector<2x32xf32>
    %250 = math.tanh %249 : vector<2x32xf32>
    %251 = arith.mulf %244, %250 : vector<2x32xf32>
    %252 = vector.extract_strided_slice %49 {offsets = [10, 0], sizes = [2, 128], strides = [1, 1]} : vector<16x128xf32> to vector<2x128xf32>
    %cst_59 = arith.constant dense<0.000000e+00> : vector<2x128xf32>
    %253 = tpu.matmul %231, %50, %cst_59 {dimension_numbers = #tpu.dot_dimension_numbers<[1], [0], [0], [1], [0, 0, 1, 1], [], []>} : vector<2x32xf32>, vector<32x128xf32>, vector<2x128xf32> -> vector<2x128xf32>
    %254 = arith.addf %252, %253 : vector<2x128xf32>
    %255 = vector.extract_strided_slice %254 {offsets = [0, 0], sizes = [2, 96], strides = [1, 1]} : vector<2x128xf32> to vector<2x96xf32>
    %256 = arith.negf %255 : vector<2x96xf32>
    %257 = math.exp %256 : vector<2x96xf32>
    %cst_60 = arith.constant 1.000000e+00 : f32
    %258 = vector.broadcast %cst_60 : f32 to vector<2x96xf32>
    %259 = arith.addf %258, %257 : vector<2x96xf32>
    %260 = arith.divf %258, %259 : vector<2x96xf32>
    %261 = vector.extract_strided_slice %260 {offsets = [0, 0], sizes = [2, 32], strides = [1, 1]} : vector<2x96xf32> to vector<2x32xf32>
    %262 = vector.extract_strided_slice %260 {offsets = [0, 32], sizes = [2, 32], strides = [1, 1]} : vector<2x96xf32> to vector<2x32xf32>
    %263 = vector.extract_strided_slice %260 {offsets = [0, 64], sizes = [2, 32], strides = [1, 1]} : vector<2x96xf32> to vector<2x32xf32>
    %264 = vector.extract_strided_slice %254 {offsets = [0, 96], sizes = [2, 32], strides = [1, 1]} : vector<2x128xf32> to vector<2x32xf32>
    %265 = math.tanh %264 : vector<2x32xf32>
    %266 = arith.mulf %262, %229 : vector<2x32xf32>
    %267 = arith.mulf %261, %265 : vector<2x32xf32>
    %268 = arith.addf %266, %267 : vector<2x32xf32>
    %269 = math.tanh %268 : vector<2x32xf32>
    %270 = arith.mulf %263, %269 : vector<2x32xf32>
    %271 = tpu.concatenate %270, %251 in 1 : vector<2x32xf32>, vector<2x32xf32> -> vector<2x64xf32>
    %cst_61 = arith.constant dense<0.000000e+00> : vector<2x128xf32>
    %272 = tpu.matmul %271, %51, %cst_61 {dimension_numbers = #tpu.dot_dimension_numbers<[1], [0], [0], [1], [0, 0, 1, 1], [], []>} : vector<2x64xf32>, vector<64x128xf32>, vector<2x128xf32> -> vector<2x128xf32>
    %273 = vector.broadcast %52 : vector<1x128xf32> to vector<2x128xf32>
    %274 = arith.addf %272, %273 : vector<2x128xf32>
    %275 = vector.extract_strided_slice %274 {offsets = [0, 0], sizes = [2, 96], strides = [1, 1]} : vector<2x128xf32> to vector<2x96xf32>
    %276 = arith.negf %275 : vector<2x96xf32>
    %277 = math.exp %276 : vector<2x96xf32>
    %cst_62 = arith.constant 1.000000e+00 : f32
    %278 = vector.broadcast %cst_62 : f32 to vector<2x96xf32>
    %279 = arith.addf %278, %277 : vector<2x96xf32>
    %280 = arith.divf %278, %279 : vector<2x96xf32>
    %281 = vector.extract_strided_slice %280 {offsets = [0, 0], sizes = [2, 32], strides = [1, 1]} : vector<2x96xf32> to vector<2x32xf32>
    %282 = vector.extract_strided_slice %280 {offsets = [0, 32], sizes = [2, 32], strides = [1, 1]} : vector<2x96xf32> to vector<2x32xf32>
    %283 = vector.extract_strided_slice %280 {offsets = [0, 64], sizes = [2, 32], strides = [1, 1]} : vector<2x96xf32> to vector<2x32xf32>
    %284 = vector.extract_strided_slice %274 {offsets = [0, 96], sizes = [2, 32], strides = [1, 1]} : vector<2x128xf32> to vector<2x32xf32>
    %285 = math.tanh %284 : vector<2x32xf32>
    %286 = arith.mulf %282, %249 : vector<2x32xf32>
    %287 = arith.mulf %281, %285 : vector<2x32xf32>
    %288 = arith.addf %286, %287 : vector<2x32xf32>
    %289 = math.tanh %288 : vector<2x32xf32>
    %290 = arith.mulf %283, %289 : vector<2x32xf32>
    %291 = vector.extract_strided_slice %49 {offsets = [12, 0], sizes = [2, 128], strides = [1, 1]} : vector<16x128xf32> to vector<2x128xf32>
    %cst_63 = arith.constant dense<0.000000e+00> : vector<2x128xf32>
    %292 = tpu.matmul %270, %50, %cst_63 {dimension_numbers = #tpu.dot_dimension_numbers<[1], [0], [0], [1], [0, 0, 1, 1], [], []>} : vector<2x32xf32>, vector<32x128xf32>, vector<2x128xf32> -> vector<2x128xf32>
    %293 = arith.addf %291, %292 : vector<2x128xf32>
    %294 = vector.extract_strided_slice %293 {offsets = [0, 0], sizes = [2, 96], strides = [1, 1]} : vector<2x128xf32> to vector<2x96xf32>
    %295 = arith.negf %294 : vector<2x96xf32>
    %296 = math.exp %295 : vector<2x96xf32>
    %cst_64 = arith.constant 1.000000e+00 : f32
    %297 = vector.broadcast %cst_64 : f32 to vector<2x96xf32>
    %298 = arith.addf %297, %296 : vector<2x96xf32>
    %299 = arith.divf %297, %298 : vector<2x96xf32>
    %300 = vector.extract_strided_slice %299 {offsets = [0, 0], sizes = [2, 32], strides = [1, 1]} : vector<2x96xf32> to vector<2x32xf32>
    %301 = vector.extract_strided_slice %299 {offsets = [0, 32], sizes = [2, 32], strides = [1, 1]} : vector<2x96xf32> to vector<2x32xf32>
    %302 = vector.extract_strided_slice %299 {offsets = [0, 64], sizes = [2, 32], strides = [1, 1]} : vector<2x96xf32> to vector<2x32xf32>
    %303 = vector.extract_strided_slice %293 {offsets = [0, 96], sizes = [2, 32], strides = [1, 1]} : vector<2x128xf32> to vector<2x32xf32>
    %304 = math.tanh %303 : vector<2x32xf32>
    %305 = arith.mulf %301, %268 : vector<2x32xf32>
    %306 = arith.mulf %300, %304 : vector<2x32xf32>
    %307 = arith.addf %305, %306 : vector<2x32xf32>
    %308 = math.tanh %307 : vector<2x32xf32>
    %309 = arith.mulf %302, %308 : vector<2x32xf32>
    %310 = tpu.concatenate %309, %290 in 1 : vector<2x32xf32>, vector<2x32xf32> -> vector<2x64xf32>
    %cst_65 = arith.constant dense<0.000000e+00> : vector<2x128xf32>
    %311 = tpu.matmul %310, %51, %cst_65 {dimension_numbers = #tpu.dot_dimension_numbers<[1], [0], [0], [1], [0, 0, 1, 1], [], []>} : vector<2x64xf32>, vector<64x128xf32>, vector<2x128xf32> -> vector<2x128xf32>
    %312 = vector.broadcast %52 : vector<1x128xf32> to vector<2x128xf32>
    %313 = arith.addf %311, %312 : vector<2x128xf32>
    %314 = vector.extract_strided_slice %313 {offsets = [0, 0], sizes = [2, 96], strides = [1, 1]} : vector<2x128xf32> to vector<2x96xf32>
    %315 = arith.negf %314 : vector<2x96xf32>
    %316 = math.exp %315 : vector<2x96xf32>
    %cst_66 = arith.constant 1.000000e+00 : f32
    %317 = vector.broadcast %cst_66 : f32 to vector<2x96xf32>
    %318 = arith.addf %317, %316 : vector<2x96xf32>
    %319 = arith.divf %317, %318 : vector<2x96xf32>
    %320 = vector.extract_strided_slice %319 {offsets = [0, 0], sizes = [2, 32], strides = [1, 1]} : vector<2x96xf32> to vector<2x32xf32>
    %321 = vector.extract_strided_slice %319 {offsets = [0, 32], sizes = [2, 32], strides = [1, 1]} : vector<2x96xf32> to vector<2x32xf32>
    %322 = vector.extract_strided_slice %319 {offsets = [0, 64], sizes = [2, 32], strides = [1, 1]} : vector<2x96xf32> to vector<2x32xf32>
    %323 = vector.extract_strided_slice %313 {offsets = [0, 96], sizes = [2, 32], strides = [1, 1]} : vector<2x128xf32> to vector<2x32xf32>
    %324 = math.tanh %323 : vector<2x32xf32>
    %325 = arith.mulf %321, %288 : vector<2x32xf32>
    %326 = arith.mulf %320, %324 : vector<2x32xf32>
    %327 = arith.addf %325, %326 : vector<2x32xf32>
    %328 = math.tanh %327 : vector<2x32xf32>
    %329 = arith.mulf %322, %328 : vector<2x32xf32>
    %330 = vector.extract_strided_slice %49 {offsets = [14, 0], sizes = [2, 128], strides = [1, 1]} : vector<16x128xf32> to vector<2x128xf32>
    %cst_67 = arith.constant dense<0.000000e+00> : vector<2x128xf32>
    %331 = tpu.matmul %309, %50, %cst_67 {dimension_numbers = #tpu.dot_dimension_numbers<[1], [0], [0], [1], [0, 0, 1, 1], [], []>} : vector<2x32xf32>, vector<32x128xf32>, vector<2x128xf32> -> vector<2x128xf32>
    %332 = arith.addf %330, %331 : vector<2x128xf32>
    %333 = vector.extract_strided_slice %332 {offsets = [0, 0], sizes = [2, 96], strides = [1, 1]} : vector<2x128xf32> to vector<2x96xf32>
    %334 = arith.negf %333 : vector<2x96xf32>
    %335 = math.exp %334 : vector<2x96xf32>
    %cst_68 = arith.constant 1.000000e+00 : f32
    %336 = vector.broadcast %cst_68 : f32 to vector<2x96xf32>
    %337 = arith.addf %336, %335 : vector<2x96xf32>
    %338 = arith.divf %336, %337 : vector<2x96xf32>
    %339 = vector.extract_strided_slice %338 {offsets = [0, 0], sizes = [2, 32], strides = [1, 1]} : vector<2x96xf32> to vector<2x32xf32>
    %340 = vector.extract_strided_slice %338 {offsets = [0, 32], sizes = [2, 32], strides = [1, 1]} : vector<2x96xf32> to vector<2x32xf32>
    %341 = vector.extract_strided_slice %338 {offsets = [0, 64], sizes = [2, 32], strides = [1, 1]} : vector<2x96xf32> to vector<2x32xf32>
    %342 = vector.extract_strided_slice %332 {offsets = [0, 96], sizes = [2, 32], strides = [1, 1]} : vector<2x128xf32> to vector<2x32xf32>
    %343 = math.tanh %342 : vector<2x32xf32>
    %344 = arith.mulf %340, %307 : vector<2x32xf32>
    %345 = arith.mulf %339, %343 : vector<2x32xf32>
    %346 = arith.addf %344, %345 : vector<2x32xf32>
    %347 = math.tanh %346 : vector<2x32xf32>
    %348 = arith.mulf %341, %347 : vector<2x32xf32>
    %349 = tpu.concatenate %348, %329 in 1 : vector<2x32xf32>, vector<2x32xf32> -> vector<2x64xf32>
    %cst_69 = arith.constant dense<0.000000e+00> : vector<2x128xf32>
    %350 = tpu.matmul %349, %51, %cst_69 {dimension_numbers = #tpu.dot_dimension_numbers<[1], [0], [0], [1], [0, 0, 1, 1], [], []>} : vector<2x64xf32>, vector<64x128xf32>, vector<2x128xf32> -> vector<2x128xf32>
    %351 = vector.broadcast %52 : vector<1x128xf32> to vector<2x128xf32>
    %352 = arith.addf %350, %351 : vector<2x128xf32>
    %353 = vector.extract_strided_slice %352 {offsets = [0, 0], sizes = [2, 96], strides = [1, 1]} : vector<2x128xf32> to vector<2x96xf32>
    %354 = arith.negf %353 : vector<2x96xf32>
    %355 = math.exp %354 : vector<2x96xf32>
    %cst_70 = arith.constant 1.000000e+00 : f32
    %356 = vector.broadcast %cst_70 : f32 to vector<2x96xf32>
    %357 = arith.addf %356, %355 : vector<2x96xf32>
    %358 = arith.divf %356, %357 : vector<2x96xf32>
    %359 = vector.extract_strided_slice %358 {offsets = [0, 0], sizes = [2, 32], strides = [1, 1]} : vector<2x96xf32> to vector<2x32xf32>
    %360 = vector.extract_strided_slice %358 {offsets = [0, 32], sizes = [2, 32], strides = [1, 1]} : vector<2x96xf32> to vector<2x32xf32>
    %361 = vector.extract_strided_slice %358 {offsets = [0, 64], sizes = [2, 32], strides = [1, 1]} : vector<2x96xf32> to vector<2x32xf32>
    %362 = vector.extract_strided_slice %352 {offsets = [0, 96], sizes = [2, 32], strides = [1, 1]} : vector<2x128xf32> to vector<2x32xf32>
    %363 = math.tanh %362 : vector<2x32xf32>
    %364 = arith.mulf %360, %327 : vector<2x32xf32>
    %365 = arith.mulf %359, %363 : vector<2x32xf32>
    %366 = arith.addf %364, %365 : vector<2x32xf32>
    %367 = math.tanh %366 : vector<2x32xf32>
    %368 = arith.mulf %361, %367 : vector<2x32xf32>
    %369 = arith.mulf %368, %368 : vector<2x32xf32>
    %cst_71 = arith.constant dense<0.000000e+00> : vector<2xf32>
    %370 = vector.multi_reduction <add>, %369, %cst_71 [1] : vector<2x32xf32> to vector<2xf32>
    %371 = vector.shape_cast %370 : vector<2xf32> to vector<2x1xf32>
    %cst_72 = arith.constant 1.000000e-24 : f32
    %372 = vector.broadcast %cst_72 : f32 to vector<2x1xf32>
    %373 = arith.addf %371, %372 : vector<2x1xf32>
    %374 = math.rsqrt %373 : vector<2x1xf32>
    %375 = vector.broadcast %374 : vector<2x1xf32> to vector<2x32xf32>
    %376 = arith.mulf %368, %375 : vector<2x32xf32>
    %c0_73 = arith.constant 0 : index
    %c0_74 = arith.constant 0 : index
    %377 = vector.load %arg16[%c0_73, %c0_74] : memref<2x32xf32, #tpu.memory_space<vmem>>, vector<2x32xf32>
    tpu.vector_store %arg16[%c0_73, %c0_74], %376 {strides = array<i32>} : memref<2x32xf32, #tpu.memory_space<vmem>>, vector<2x32xf32>,
    %c0_75 = arith.constant 0 : index
    %c0_76 = arith.constant 0 : index
    %378 = vector.load %arg14[%c0_75, %c0_76] : memref<32x6xf32, #tpu.memory_space<vmem>>, vector<32x6xf32>
    %cst_77 = arith.constant dense<0.000000e+00> : vector<2x6xf32>
    %379 = tpu.matmul %368, %378, %cst_77 {dimension_numbers = #tpu.dot_dimension_numbers<[1], [0], [0], [1], [0, 0, 1, 1], [], []>} : vector<2x32xf32>, vector<32x6xf32>, vector<2x6xf32> -> vector<2x6xf32>
    %c0_78 = arith.constant 0 : index
    %c0_79 = arith.constant 0 : index
    %380 = vector.load %arg15[%c0_78, %c0_79] : memref<1x6xf32, #tpu.memory_space<vmem>>, vector<1x6xf32>
    %381 = vector.broadcast %380 : vector<1x6xf32> to vector<2x6xf32>
    %382 = arith.addf %379, %381 : vector<2x6xf32>
    %c0_80 = arith.constant 0 : index
    %c0_81 = arith.constant 0 : index
    %383 = vector.load %arg17[%c0_80, %c0_81] : memref<2x6xf32, #tpu.memory_space<vmem>>, vector<2x6xf32>
    tpu.vector_store %arg17[%c0_80, %c0_81], %382 {strides = array<i32>} : memref<2x6xf32, #tpu.memory_space<vmem>>, vector<2x6xf32>,
    return
  }
}

</mosaic_0001>

<llo_original>
// kernel: deepconvlstm_forward.1
$region0: #{deepconvlstm_forward.1}
  #allocation0 [shape = 'u32[]', space=smem, size = 0x4, offset = 0x4, fixed_abs, tag = 'smem constant byte address 0x4 - core index']
  #allocation1 [shape = 'u32[144,128]{1,0:T(1,128)}', space=vmem, size = 0x12000, scoped, tag = 'internal scratch']
  %s0 = inlined_call_operand.vmem [shape: f32[32,8], index: 0, kind: input, shape index: {}]
  %s1 = inlined_call_operand.vmem [shape: f32[24,64], index: 1, kind: input, shape index: {}]
  %s2 = inlined_call_operand.vmem [shape: f32[1,64], index: 2, kind: input, shape index: {}]
  %s3 = inlined_call_operand.vmem [shape: f32[192,64], index: 3, kind: input, shape index: {}]
  %s4 = inlined_call_operand.vmem [shape: f32[1,64], index: 4, kind: input, shape index: {}]
  %s5 = inlined_call_operand.vmem [shape: f32[192,64], index: 5, kind: input, shape index: {}]
  %s6 = inlined_call_operand.vmem [shape: f32[1,64], index: 6, kind: input, shape index: {}]
  %s7 = inlined_call_operand.vmem [shape: f32[192,64], index: 7, kind: input, shape index: {}]
  %s8 = inlined_call_operand.vmem [shape: f32[1,64], index: 8, kind: input, shape index: {}]
  %s9 = inlined_call_operand.vmem [shape: f32[64,128], index: 9, kind: input, shape index: {}]
  %s10 = inlined_call_operand.vmem [shape: f32[32,128], index: 10, kind: input, shape index: {}]
  %s11 = inlined_call_operand.vmem [shape: f32[1,128], index: 11, kind: input, shape index: {}]
  %s12 = inlined_call_operand.vmem [shape: f32[64,128], index: 12, kind: input, shape index: {}]
  %s13 = inlined_call_operand.vmem [shape: f32[1,128], index: 13, kind: input, shape index: {}]
  %s14 = inlined_call_operand.vmem [shape: f32[32,6], index: 14, kind: input, shape index: {}]
  %s15 = inlined_call_operand.vmem [shape: f32[1,6], index: 15, kind: input, shape index: {}]
  %s16 = inlined_call_operand.hbm [shape: f32[2,32], index: 16, kind: output, shape index: {0}]
  %s17 = inlined_call_operand.hbm [shape: f32[2,6], index: 17, kind: output, shape index: {1}]
  %18 = xla_tuple %s16, %s17
  %s19 = sld [smem:[#allocation0]]
  $region82: #{deepconvlstm_forward.1} parent=0
    _
  %s21 = ssub.s32 1, %s19
  %s22 = scalar_select 0, %s21, %s19
  $region1: #{deepconvlstm_forward.1} parent=0
    #allocation2 [shape = 'u8[1024]{0}', space=vmem, size = 0x400, scoped, tag = 'output window, operand 0, single buffered']
    #allocation3 [shape = 's32[1]{0}', space=sflag, size = 0x4, scoped, tag = 'scoped memory for deepconvlstm_forward.1']
    #allocation4 [shape = 'u8[1024]{0}', space=vmem, size = 0x400, scoped, tag = 'output window, operand 1, single buffered']
    #allocation5 [shape = 's32[1]{0}', space=sflag, size = 0x4, scoped, tag = 'scoped memory for deepconvlstm_forward.1']
    %23 = vsyncpa [#allocation3], 0
    %24 = vsyncpa [#allocation5], 0
    // Predicated region
    $region2: #{deepconvlstm_forward.1} parent=1 // pred_check
      _
    $region3: #{deepconvlstm_forward.1} parent=1 // pred_check_branch
      %26 = sbr.rel (0) target = $region5
    $region4: #{deepconvlstm_forward.1} parent=1 // pred_region
      _
    $region5: #{deepconvlstm_forward.1} parent=1 // pred_fallthru
      _
    // Predicated region
    $region6: #{deepconvlstm_forward.1} parent=1 // pred_check
      _
    $region7: #{deepconvlstm_forward.1} parent=1 // pred_check_branch
      %28 = sbr.rel (0) target = $region9
    $region8: #{deepconvlstm_forward.1} parent=1 // pred_region
      _
    $region9: #{deepconvlstm_forward.1} parent=1 // pred_fallthru
      _
    // Predicated region
    $region10: #{deepconvlstm_forward.1} parent=1 // pred_check
      _
    $region11: #{deepconvlstm_forward.1} parent=1 // pred_check_branch
      %30 = sbr.rel (0) target = $region13
    $region12: #{deepconvlstm_forward.1} parent=1 // pred_region
      _
    $region13: #{deepconvlstm_forward.1} parent=1 // pred_fallthru
      _
    // Predicated region
    $region14: #{deepconvlstm_forward.1} parent=1 // pred_check
      _
    $region15: #{deepconvlstm_forward.1} parent=1 // pred_check_branch
      %32 = sbr.rel (0) target = $region17
    $region16: #{deepconvlstm_forward.1} parent=1 // pred_region
      _
    $region17: #{deepconvlstm_forward.1} parent=1 // pred_fallthru
      _
    // Predicated region
    $region18: #{deepconvlstm_forward.1} parent=1 // pred_check
      _
    $region19: #{deepconvlstm_forward.1} parent=1 // pred_check_branch
      %34 = sbr.rel (0) target = $region21
    $region20: #{deepconvlstm_forward.1} parent=1 // pred_region
      _
    $region21: #{deepconvlstm_forward.1} parent=1 // pred_fallthru
      _
    // Predicated region
    $region22: #{deepconvlstm_forward.1} parent=1 // pred_check
      _
    $region23: #{deepconvlstm_forward.1} parent=1 // pred_check_branch
      %36 = sbr.rel (0) target = $region25
    $region24: #{deepconvlstm_forward.1} parent=1 // pred_region
      _
    $region25: #{deepconvlstm_forward.1} parent=1 // pred_fallthru
      _
    // Predicated region
    $region26: #{deepconvlstm_forward.1} parent=1 // pred_check
      _
    $region27: #{deepconvlstm_forward.1} parent=1 // pred_check_branch
      %38 = sbr.rel (0) target = $region29
    $region28: #{deepconvlstm_forward.1} parent=1 // pred_region
      _
    $region29: #{deepconvlstm_forward.1} parent=1 // pred_fallthru
      _
    // Predicated region
    $region30: #{deepconvlstm_forward.1} parent=1 // pred_check
      _
    $region31: #{deepconvlstm_forward.1} parent=1 // pred_check_branch
      %40 = sbr.rel (0) target = $region33
    $region32: #{deepconvlstm_forward.1} parent=1 // pred_region
      _
    $region33: #{deepconvlstm_forward.1} parent=1 // pred_fallthru
      _
    // Predicated region
    $region34: #{deepconvlstm_forward.1} parent=1 // pred_check
      _
    $region35: #{deepconvlstm_forward.1} parent=1 // pred_check_branch
      %42 = sbr.rel (0) target = $region37
    $region36: #{deepconvlstm_forward.1} parent=1 // pred_region
      _
    $region37: #{deepconvlstm_forward.1} parent=1 // pred_fallthru
      _
    // Predicated region
    $region38: #{deepconvlstm_forward.1} parent=1 // pred_check
      _
    $region39: #{deepconvlstm_forward.1} parent=1 // pred_check_branch
      %44 = sbr.rel (0) target = $region41
    $region40: #{deepconvlstm_forward.1} parent=1 // pred_region
      _
    $region41: #{deepconvlstm_forward.1} parent=1 // pred_fallthru
      _
    // Predicated region
    $region42: #{deepconvlstm_forward.1} parent=1 // pred_check
      _
    $region43: #{deepconvlstm_forward.1} parent=1 // pred_check_branch
      %46 = sbr.rel (0) target = $region45
    $region44: #{deepconvlstm_forward.1} parent=1 // pred_region
      _
    $region45: #{deepconvlstm_forward.1} parent=1 // pred_fallthru
      _
    // Predicated region
    $region46: #{deepconvlstm_forward.1} parent=1 // pred_check
      _
    $region47: #{deepconvlstm_forward.1} parent=1 // pred_check_branch
      %48 = sbr.rel (0) target = $region49
    $region48: #{deepconvlstm_forward.1} parent=1 // pred_region
      _
    $region49: #{deepconvlstm_forward.1} parent=1 // pred_fallthru
      _
    // Predicated region
    $region50: #{deepconvlstm_forward.1} parent=1 // pred_check
      _
    $region51: #{deepconvlstm_forward.1} parent=1 // pred_check_branch
      %50 = sbr.rel (0) target = $region53
    $region52: #{deepconvlstm_forward.1} parent=1 // pred_region
      _
    $region53: #{deepconvlstm_forward.1} parent=1 // pred_fallthru
      _
    // Predicated region
    $region54: #{deepconvlstm_forward.1} parent=1 // pred_check
      _
    $region55: #{deepconvlstm_forward.1} parent=1 // pred_check_branch
      %52 = sbr.rel (0) target = $region57
    $region56: #{deepconvlstm_forward.1} parent=1 // pred_region
      _
    $region57: #{deepconvlstm_forward.1} parent=1 // pred_fallthru
      _
    // Predicated region
    $region58: #{deepconvlstm_forward.1} parent=1 // pred_check
      _
    $region59: #{deepconvlstm_forward.1} parent=1 // pred_check_branch
      %54 = sbr.rel (0) target = $region61
    $region60: #{deepconvlstm_forward.1} parent=1 // pred_region
      _
    $region61: #{deepconvlstm_forward.1} parent=1 // pred_fallthru
      _
    // Predicated region
    $region62: #{deepconvlstm_forward.1} parent=1 // pred_check
      _
    $region63: #{deepconvlstm_forward.1} parent=1 // pred_check_branch
      %56 = sbr.rel (0) target = $region65
    $region64: #{deepconvlstm_forward.1} parent=1 // pred_region
      _
    $region65: #{deepconvlstm_forward.1} parent=1 // pred_fallthru
      _
    %v57 = vld [vmem:[%s0] sm:$0xff]
    %v58 = vld [vmem:[%s0 + $0x8] sm:$0xff]
    %v59 = vld [vmem:[%s0 + $0x10] sm:$0xff]
    %v60 = vld [vmem:[%s0 + $0x18] sm:$0xff]
    %vm65 = vcmask 1045504
    %v66 = vrot.slane %v57, 2
    %v67 = vrot.slane %v58, 2
    %v68 = vsel %vm65, %v66, %v67
    %v69 = vrot.slane %v59, 2
    %v70 = vsel %vm65, %v67, %v69
    %v71 = vrot.slane %v60, 2
    %v72 = vsel %vm65, %v69, %v71
    %73 = vrot.lane.b32.xlu0 %v68, 8
    %v74 = vpop.permute.xlu0 %73
    %75 = vrot.lane.b32.xlu0 %v70, 8
    %v76 = vpop.permute.xlu0 %75
    %77 = vrot.lane.b32.xlu0 %v72, 8
    %v78 = vpop.permute.xlu0 %77
    %79 = vrot.lane.b32.xlu0 %v71, 8
    %v80 = vpop.permute.xlu0 %79
    %vm85 = vcmask 1043456
    %v86 = vrot.slane %v57, 4
    %v87 = vrot.slane %v58, 4
    %v88 = vsel %vm85, %v86, %v87
    %v89 = vrot.slane %v59, 4
    %v90 = vsel %vm85, %v87, %v89
    %v91 = vrot.slane %v60, 4
    %v92 = vsel %vm85, %v89, %v91
    %93 = vrot.lane.b32.xlu0 %v88, 16
    %v94 = vpop.permute.xlu0 %93
    %95 = vrot.lane.b32.xlu0 %v90, 16
    %v96 = vpop.permute.xlu0 %95
    %97 = vrot.lane.b32.xlu0 %v92, 16
    %v98 = vpop.permute.xlu0 %97
    %99 = vrot.lane.b32.xlu0 %v91, 16
    %v100 = vpop.permute.xlu0 %99
    %vm105 = vcmask 64512
    %v106 = vsel %vm105, %v57, %v74
    %v107 = vsel %vm105, %v58, %v76
    %v108 = vsel %vm105, %v59, %v78
    %v109 = vsel %vm105, %v60, %v80
    %vm110 = vcmask 130048
    %v111 = vsel %vm110, %v106, %v94
    %v112 = vsel %vm110, %v107, %v96
    %v113 = vsel %vm110, %v108, %v98
    %v114 = vsel %vm110, %v109, %v100
    %v115 = vld [vmem:[%s1] sm:$0xff]
    %v116 = vld [vmem:[%s1 + $0x8] sm:$0xff]
    %v117 = vld [vmem:[%s1 + $0x10] sm:$0xff]
    %v118 = vld [vmem:[%s2] sm:$0x1]
    %v120 = vlaneseq
    %v121 = vshrl.u32 %v120, 7
    %v122 = vsub.s32 0, %v121
    %v123 = vrot.slane %v118, %v122
    %vm125 = vcmask 195584
    %v127 = vsel %vm125, %v111, 0
    %v130 = vsel %vm125, %v112, 0
    %v133 = vsel %vm125, %v113, 0
    %v136 = vsel %vm125, %v114, 0
    %138 = vmatprep.subr.mxu0 0.0
    %139 = vmatpush1.msra.mxu0 0.0
    %140 = vmatprep.subr.mxu0 0.0
    %141 = vmatpush1.msra.mxu0 0.0
    %142 = vmatprep.subr.mxu0 0.0
    %143 = vmatpush1.msra.mxu0 0.0
    %144 = vmatprep.subr.mxu0 0.0
    %145 = vmatpush1.msra.mxu0 0.0
    %146 = vmatprep.subr.mxu0 0.0
    %147 = vmatpush1.msra.mxu0 0.0
    %148 = vmatprep.subr.mxu0 0.0
    %149 = vmatpush1.msra.mxu0 0.0
    %150 = vmatprep.subr.mxu0 0.0
    %151 = vmatpush1.msra.mxu0 0.0
    %152 = vmatprep.subr.mxu0 0.0
    %153 = vmatpush1.msra.mxu0 0.0
    %154 = vmatprep.subr.mxu0 0.0
    %155 = vmatpush1.msra.mxu0 0.0
    %156 = vmatprep.subr.mxu0 0.0
    %157 = vmatpush1.msra.mxu0 0.0
    %158 = vmatprep.subr.mxu0 0.0
    %159 = vmatpush1.msra.mxu0 0.0
    %160 = vmatprep.subr.mxu0 0.0
    %161 = vmatpush1.msra.mxu0 0.0
    %162 = vmatprep.subr.mxu0 0.0
    %163 = vmatpush1.msra.mxu0 0.0
    %164 = vmatprep.subr.mxu0 0.0
    %165 = vmatpush1.msra.mxu0 %v117
    %166 = vmatprep.subr.mxu0 0.0
    %167 = vmatpush1.msra.mxu0 %v116
    %168 = vmatprep.subr.mxu0 0.0
    %169 = vmatpush1.msra.mxu0 %v115
    %170 = vmatprep.subr.mxu0 0.0
    %171 = vmatpush2.msra.mxu0 0.0
    %172 = vmatprep.subr.mxu0 0.0
    %173 = vmatpush2.msra.mxu0 0.0
    %174 = vmatprep.subr.mxu0 0.0
    %175 = vmatpush2.msra.mxu0 0.0
    %176 = vmatprep.subr.mxu0 0.0
    %177 = vmatpush2.msra.mxu0 0.0
    %178 = vmatprep.subr.mxu0 0.0
    %179 = vmatpush2.msra.mxu0 0.0
    %180 = vmatprep.subr.mxu0 0.0
    %181 = vmatpush2.msra.mxu0 0.0
    %182 = vmatprep.subr.mxu0 0.0
    %183 = vmatpush2.msra.mxu0 0.0
    %184 = vmatprep.subr.mxu0 0.0
    %185 = vmatpush2.msra.mxu0 0.0
    %186 = vmatprep.subr.mxu0 0.0
    %187 = vmatpush2.msra.mxu0 0.0
    %188 = vmatprep.subr.mxu0 0.0
    %189 = vmatpush2.msra.mxu0 0.0
    %190 = vmatprep.subr.mxu0 0.0
    %191 = vmatpush2.msra.mxu0 0.0
    %192 = vmatprep.subr.mxu0 0.0
    %193 = vmatpush2.msra.mxu0 0.0
    %194 = vmatprep.subr.mxu0 0.0
    %195 = vmatpush2.msra.mxu0 0.0
    %196 = vmatprep.subr.mxu0 0.0
    %197 = vmatpush2.msra.mxu0 0.0
    %198 = vmatprep.subr.mxu0 0.0
    %199 = vmatpush2.msra.mxu0 0.0
    %200 = vmatprep.subr.mxu0 0.0
    %201 = vmatpush2.msra.mxu0 0.0
    %202 = vmatprep.mubr.f32.mxu0 0.0
    %203 = vmatmul.mubr.f32.gmra.mxu0 %v127
    %v204 = vpop.f32.mrf.mxu0
    %v205 = vadd.f32 %v123, %v204
    %v206 = vpop.f32.mrf.mxu0
    %207 = vmatprep.mubr.f32.mxu0 0.0
    %208 = vmatmul.mubr.f32.gmra.mxu0 %v130
    %v209 = vpop.f32.mrf.mxu0
    %v210 = vadd.f32 %v123, %v209
    %v211 = vpop.f32.mrf.mxu0
    %212 = vmatprep.mubr.f32.mxu0 0.0
    %213 = vmatmul.mubr.f32.gmra.mxu0 %v133
    %v214 = vpop.f32.mrf.mxu0
    %v215 = vadd.f32 %v123, %v214
    %v216 = vpop.f32.mrf.mxu0
    %217 = vmatprep.mubr.f32.mxu0 0.0
    %218 = vmatmul.mubr.f32.gmra.mxu0 %v136
    %v219 = vpop.f32.mrf.mxu0
    %v220 = vadd.f32 %v123, %v219
    %v221 = vpop.f32.mrf.mxu0
    %222 = vdwg.mxu0
    %v223 = vmax.f32 %v205, 0.0
    %v224 = vmax.f32 %v210, 0.0
    %v225 = vmax.f32 %v215, 0.0
    %v226 = vmax.f32 %v220, 0.0
    %v231 = vrot.slane %v223, 2
    %v232 = vrot.slane %v224, 2
    %v233 = vsel %vm65, %v231, %v232
    %v234 = vrot.slane %v225, 2
    %v235 = vsel %vm65, %v232, %v234
    %v236 = vrot.slane %v226, 2
    %v237 = vsel %vm65, %v234, %v236
    %238 = vrot.lane.b32.xlu0 %v233, 64
    %v239 = vpop.permute.xlu0 %238
    %240 = vrot.lane.b32.xlu0 %v235, 64
    %v241 = vpop.permute.xlu0 %240
    %242 = vrot.lane.b32.xlu0 %v237, 64
    %v243 = vpop.permute.xlu0 %242
    %v247 = vrot.slane %v223, 4
    %v248 = vrot.slane %v224, 4
    %v249 = vsel %vm85, %v247, %v248
    %v250 = vrot.slane %v225, 4
    %v251 = vsel %vm85, %v248, %v250
    %v252 = vrot.slane %v226, 4
    %v253 = vsel %vm85, %v250, %v252
    %vm254 = vcmask 523264
    %v255 = vsel %vm254, %v223, %v239
    %v256 = vsel %vm254, %v224, %v241
    %v257 = vsel %vm254, %v225, %v243
    %v258 = vld [vmem:[%s3] sm:$0xff]
    %v259 = vld [vmem:[%s3 + $0x8] sm:$0xff]
    %v260 = vld [vmem:[%s3 + $0x10] sm:$0xff]
    %v261 = vld [vmem:[%s3 + $0x18] sm:$0xff]
    %v262 = vld [vmem:[%s3 + $0x20] sm:$0xff]
    %v263 = vld [vmem:[%s3 + $0x28] sm:$0xff]
    %v264 = vld [vmem:[%s3 + $0x30] sm:$0xff]
    %v265 = vld [vmem:[%s3 + $0x38] sm:$0xff]
    %v266 = vld [vmem:[%s3 + $0x40] sm:$0xff]
    %v267 = vld [vmem:[%s3 + $0x48] sm:$0xff]
    %v268 = vld [vmem:[%s3 + $0x50] sm:$0xff]
    %v269 = vld [vmem:[%s3 + $0x58] sm:$0xff]
    %v270 = vld [vmem:[%s3 + $0x60] sm:$0xff]
    %v271 = vld [vmem:[%s3 + $0x68] sm:$0xff]
    %v272 = vld [vmem:[%s3 + $0x70] sm:$0xff]
    %v273 = vld [vmem:[%s3 + $0x78] sm:$0xff]
    %v274 = vld [vmem:[%s3 + $0x80] sm:$0xff]
    %v275 = vld [vmem:[%s3 + $0x88] sm:$0xff]
    %v276 = vld [vmem:[%s3 + $0x90] sm:$0xff]
    %v277 = vld [vmem:[%s3 + $0x98] sm:$0xff]
    %v278 = vld [vmem:[%s3 + $0xa0] sm:$0xff]
    %v279 = vld [vmem:[%s3 + $0xa8] sm:$0xff]
    %v280 = vld [vmem:[%s3 + $0xb0] sm:$0xff]
    %v281 = vld [vmem:[%s3 + $0xb8] sm:$0xff]
    %v282 = vld [vmem:[%s4] sm:$0x1]
    %v284 = vlaneseq
    %v285 = vshrl.u32 %v284, 7
    %v286 = vsub.s32 0, %v285
    %v287 = vrot.slane %v282, %v286
    %v289 = vsel %vm254, %v249, 0
    %v291 = vsel %vm254, %v251, 0
    %v293 = vsel %vm254, %v253, 0
    %295 = vmatprep.subr.mxu0 0.0
    %296 = vmatpush1.msra.mxu0 %v273
    %297 = vmatprep.subr.mxu0 0.0
    %298 = vmatpush1.msra.mxu0 %v272
    %299 = vmatprep.subr.mxu0 0.0
    %300 = vmatpush1.msra.mxu0 %v271
    %301 = vmatprep.subr.mxu0 0.0
    %302 = vmatpush1.msra.mxu0 %v270
    %303 = vmatprep.subr.mxu0 0.0
    %304 = vmatpush1.msra.mxu0 %v269
    %305 = vmatprep.subr.mxu0 0.0
    %306 = vmatpush1.msra.mxu0 %v268
    %307 = vmatprep.subr.mxu0 0.0
    %308 = vmatpush1.msra.mxu0 %v267
    %309 = vmatprep.subr.mxu0 0.0
    %310 = vmatpush1.msra.mxu0 %v266
    %311 = vmatprep.subr.mxu0 0.0
    %312 = vmatpush1.msra.mxu0 %v265
    %313 = vmatprep.subr.mxu0 0.0
    %314 = vmatpush1.msra.mxu0 %v264
    %315 = vmatprep.subr.mxu0 0.0
    %316 = vmatpush1.msra.mxu0 %v263
    %317 = vmatprep.subr.mxu0 0.0
    %318 = vmatpush1.msra.mxu0 %v262
    %319 = vmatprep.subr.mxu0 0.0
    %320 = vmatpush1.msra.mxu0 %v261
    %321 = vmatprep.subr.mxu0 0.0
    %322 = vmatpush1.msra.mxu0 %v260
    %323 = vmatprep.subr.mxu0 0.0
    %324 = vmatpush1.msra.mxu0 %v259
    %325 = vmatprep.subr.mxu0 0.0
    %326 = vmatpush1.msra.mxu0 %v258
    %327 = vmatprep.subr.mxu0 0.0
    %328 = vmatpush2.msra.mxu0 0.0
    %329 = vmatprep.subr.mxu0 0.0
    %330 = vmatpush2.msra.mxu0 0.0
    %331 = vmatprep.subr.mxu0 0.0
    %332 = vmatpush2.msra.mxu0 0.0
    %333 = vmatprep.subr.mxu0 0.0
    %334 = vmatpush2.msra.mxu0 0.0
    %335 = vmatprep.subr.mxu0 0.0
    %336 = vmatpush2.msra.mxu0 0.0
    %337 = vmatprep.subr.mxu0 0.0
    %338 = vmatpush2.msra.mxu0 0.0
    %339 = vmatprep.subr.mxu0 0.0
    %340 = vmatpush2.msra.mxu0 0.0
    %341 = vmatprep.subr.mxu0 0.0
    %342 = vmatpush2.msra.mxu0 0.0
    %343 = vmatprep.subr.mxu0 0.0
    %344 = vmatpush2.msra.mxu0 %v281
    %345 = vmatprep.subr.mxu0 0.0
    %346 = vmatpush2.msra.mxu0 %v280
    %347 = vmatprep.subr.mxu0 0.0
    %348 = vmatpush2.msra.mxu0 %v279
    %349 = vmatprep.subr.mxu0 0.0
    %350 = vmatpush2.msra.mxu0 %v278
    %351 = vmatprep.subr.mxu0 0.0
    %352 = vmatpush2.msra.mxu0 %v277
    %353 = vmatprep.subr.mxu0 0.0
    %354 = vmatpush2.msra.mxu0 %v276
    %355 = vmatprep.subr.mxu0 0.0
    %356 = vmatpush2.msra.mxu0 %v275
    %357 = vmatprep.subr.mxu0 0.0
    %358 = vmatpush2.msra.mxu0 %v274
    %359 = vmatprep.mubr.f32.mxu0 %v289
    %360 = vmatmul.mubr.f32.gmra.mxu0 %v255
    %v361 = vpop.f32.mrf.mxu0
    %v362 = vadd.f32 %v287, %v361
    %v363 = vpop.f32.mrf.mxu0
    %364 = vmatprep.mubr.f32.mxu0 %v291
    %365 = vmatmul.mubr.f32.gmra.mxu0 %v256
    %v366 = vpop.f32.mrf.mxu0
    %v367 = vadd.f32 %v287, %v366
    %v368 = vpop.f32.mrf.mxu0
    %369 = vmatprep.mubr.f32.mxu0 %v293
    %370 = vmatmul.mubr.f32.gmra.mxu0 %v257
    %v371 = vpop.f32.mrf.mxu0
    %v372 = vadd.f32 %v287, %v371
    %v373 = vpop.f32.mrf.mxu0
    %374 = vdwg.mxu0
    %v375 = vmax.f32 %v362, 0.0
    %v376 = vmax.f32 %v367, 0.0
    %v377 = vmax.f32 %v372, 0.0
    %v381 = vrot.slane %v375, 2
    %v382 = vrot.slane %v376, 2
    %v383 = vsel %vm65, %v381, %v382
    %v384 = vrot.slane %v377, 2
    %v385 = vsel %vm65, %v382, %v384
    %386 = vrot.lane.b32.xlu0 %v383, 64
    %v387 = vpop.permute.xlu0 %386
    %388 = vrot.lane.b32.xlu0 %v385, 64
    %v389 = vpop.permute.xlu0 %388
    %390 = vrot.lane.b32.xlu0 %v384, 64
    %v391 = vpop.permute.xlu0 %390
    %v395 = vrot.slane %v375, 4
    %v396 = vrot.slane %v376, 4
    %v397 = vsel %vm85, %v395, %v396
    %v398 = vrot.slane %v377, 4
    %v399 = vsel %vm85, %v396, %v398
    %v400 = vsel %vm254, %v375, %v387
    %v401 = vsel %vm254, %v376, %v389
    %v402 = vsel %vm254, %v377, %v391
    %v403 = vld [vmem:[%s5] sm:$0xff]
    %v404 = vld [vmem:[%s5 + $0x8] sm:$0xff]
    %v405 = vld [vmem:[%s5 + $0x10] sm:$0xff]
    %v406 = vld [vmem:[%s5 + $0x18] sm:$0xff]
    %v407 = vld [vmem:[%s5 + $0x20] sm:$0xff]
    %v408 = vld [vmem:[%s5 + $0x28] sm:$0xff]
    %v409 = vld [vmem:[%s5 + $0x30] sm:$0xff]
    %v410 = vld [vmem:[%s5 + $0x38] sm:$0xff]
    %v411 = vld [vmem:[%s5 + $0x40] sm:$0xff]
    %v412 = vld [vmem:[%s5 + $0x48] sm:$0xff]
    %v413 = vld [vmem:[%s5 + $0x50] sm:$0xff]
    %v414 = vld [vmem:[%s5 + $0x58] sm:$0xff]
    %v415 = vld [vmem:[%s5 + $0x60] sm:$0xff]
    %v416 = vld [vmem:[%s5 + $0x68] sm:$0xff]
    %v417 = vld [vmem:[%s5 + $0x70] sm:$0xff]
    %v418 = vld [vmem:[%s5 + $0x78] sm:$0xff]
    %v419 = vld [vmem:[%s5 + $0x80] sm:$0xff]
    %v420 = vld [vmem:[%s5 + $0x88] sm:$0xff]
    %v421 = vld [vmem:[%s5 + $0x90] sm:$0xff]
    %v422 = vld [vmem:[%s5 + $0x98] sm:$0xff]
    %v423 = vld [vmem:[%s5 + $0xa0] sm:$0xff]
    %v424 = vld [vmem:[%s5 + $0xa8] sm:$0xff]
    %v425 = vld [vmem:[%s5 + $0xb0] sm:$0xff]
    %v426 = vld [vmem:[%s5 + $0xb8] sm:$0xff]
    %v427 = vld [vmem:[%s6] sm:$0x1]
    %v429 = vlaneseq
    %v430 = vshrl.u32 %v429, 7
    %v431 = vsub.s32 0, %v430
    %v432 = vrot.slane %v427, %v431
    %v434 = vsel %vm254, %v397, 0
    %v436 = vsel %vm254, %v399, 0
    %v438 = vsel %vm254, %v398, 0
    %440 = vmatprep.subr.mxu0 0.0
    %441 = vmatpush1.msra.mxu0 %v418
    %442 = vmatprep.subr.mxu0 0.0
    %443 = vmatpush1.msra.mxu0 %v417
    %444 = vmatprep.subr.mxu0 0.0
    %445 = vmatpush1.msra.mxu0 %v416
    %446 = vmatprep.subr.mxu0 0.0
    %447 = vmatpush1.msra.mxu0 %v415
    %448 = vmatprep.subr.mxu0 0.0
    %449 = vmatpush1.msra.mxu0 %v414
    %450 = vmatprep.subr.mxu0 0.0
    %451 = vmatpush1.msra.mxu0 %v413
    %452 = vmatprep.subr.mxu0 0.0
    %453 = vmatpush1.msra.mxu0 %v412
    %454 = vmatprep.subr.mxu0 0.0
    %455 = vmatpush1.msra.mxu0 %v411
    %456 = vmatprep.subr.mxu0 0.0
    %457 = vmatpush1.msra.mxu0 %v410
    %458 = vmatprep.subr.mxu0 0.0
    %459 = vmatpush1.msra.mxu0 %v409
    %460 = vmatprep.subr.mxu0 0.0
    %461 = vmatpush1.msra.mxu0 %v408
    %462 = vmatprep.subr.mxu0 0.0
    %463 = vmatpush1.msra.mxu0 %v407
    %464 = vmatprep.subr.mxu0 0.0
    %465 = vmatpush1.msra.mxu0 %v406
    %466 = vmatprep.subr.mxu0 0.0
    %467 = vmatpush1.msra.mxu0 %v405
    %468 = vmatprep.subr.mxu0 0.0
    %469 = vmatpush1.msra.mxu0 %v404
    %470 = vmatprep.subr.mxu0 0.0
    %471 = vmatpush1.msra.mxu0 %v403
    %472 = vmatprep.subr.mxu0 0.0
    %473 = vmatpush2.msra.mxu0 0.0
    %474 = vmatprep.subr.mxu0 0.0
    %475 = vmatpush2.msra.mxu0 0.0
    %476 = vmatprep.subr.mxu0 0.0
    %477 = vmatpush2.msra.mxu0 0.0
    %478 = vmatprep.subr.mxu0 0.0
    %479 = vmatpush2.msra.mxu0 0.0
    %480 = vmatprep.subr.mxu0 0.0
    %481 = vmatpush2.msra.mxu0 0.0
    %482 = vmatprep.subr.mxu0 0.0
    %483 = vmatpush2.msra.mxu0 0.0
    %484 = vmatprep.subr.mxu0 0.0
    %485 = vmatpush2.msra.mxu0 0.0
    %486 = vmatprep.subr.mxu0 0.0
    %487 = vmatpush2.msra.mxu0 0.0
    %488 = vmatprep.subr.mxu0 0.0
    %489 = vmatpush2.msra.mxu0 %v426
    %490 = vmatprep.subr.mxu0 0.0
    %491 = vmatpush2.msra.mxu0 %v425
    %492 = vmatprep.subr.mxu0 0.0
    %493 = vmatpush2.msra.mxu0 %v424
    %494 = vmatprep.subr.mxu0 0.0
    %495 = vmatpush2.msra.mxu0 %v423
    %496 = vmatprep.subr.mxu0 0.0
    %497 = vmatpush2.msra.mxu0 %v422
    %498 = vmatprep.subr.mxu0 0.0
    %499 = vmatpush2.msra.mxu0 %v421
    %500 = vmatprep.subr.mxu0 0.0
    %501 = vmatpush2.msra.mxu0 %v420
    %502 = vmatprep.subr.mxu0 0.0
    %503 = vmatpush2.msra.mxu0 %v419
    %504 = vmatprep.mubr.f32.mxu0 %v434
    %505 = vmatmul.mubr.f32.gmra.mxu0 %v400
    %v506 = vpop.f32.mrf.mxu0
    %v507 = vadd.f32 %v432, %v506
    %v508 = vpop.f32.mrf.mxu0
    %509 = vmatprep.mubr.f32.mxu0 %v436
    %510 = vmatmul.mubr.f32.gmra.mxu0 %v401
    %v511 = vpop.f32.mrf.mxu0
    %v512 = vadd.f32 %v432, %v511
    %v513 = vpop.f32.mrf.mxu0
    %514 = vmatprep.mubr.f32.mxu0 %v438
    %515 = vmatmul.mubr.f32.gmra.mxu0 %v402
    %v516 = vpop.f32.mrf.mxu0
    %v517 = vadd.f32 %v432, %v516
    %v518 = vpop.f32.mrf.mxu0
    %519 = vdwg.mxu0
    %v520 = vmax.f32 %v507, 0.0
    %v521 = vmax.f32 %v512, 0.0
    %v522 = vmax.f32 %v517, 0.0
    %v526 = vrot.slane %v520, 2
    %v527 = vrot.slane %v521, 2
    %v528 = vsel %vm65, %v526, %v527
    %v529 = vrot.slane %v522, 2
    %v530 = vsel %vm65, %v527, %v529
    %531 = vrot.lane.b32.xlu0 %v528, 64
    %v532 = vpop.permute.xlu0 %531
    %533 = vrot.lane.b32.xlu0 %v530, 64
    %v534 = vpop.permute.xlu0 %533
    %v537 = vrot.slane %v520, 4
    %v538 = vrot.slane %v521, 4
    %v539 = vsel %vm85, %v537, %v538
    %v540 = vrot.slane %v522, 4
    %v541 = vsel %vm85, %v538, %v540
    %v542 = vsel %vm254, %v520, %v532
    %v543 = vsel %vm254, %v521, %v534
    %v544 = vld [vmem:[%s7] sm:$0xff]
    %v545 = vld [vmem:[%s7 + $0x8] sm:$0xff]
    %v546 = vld [vmem:[%s7 + $0x10] sm:$0xff]
    %v547 = vld [vmem:[%s7 + $0x18] sm:$0xff]
    %v548 = vld [vmem:[%s7 + $0x20] sm:$0xff]
    %v549 = vld [vmem:[%s7 + $0x28] sm:$0xff]
    %v550 = vld [vmem:[%s7 + $0x30] sm:$0xff]
    %v551 = vld [vmem:[%s7 + $0x38] sm:$0xff]
    %v552 = vld [vmem:[%s7 + $0x40] sm:$0xff]
    %v553 = vld [vmem:[%s7 + $0x48] sm:$0xff]
    %v554 = vld [vmem:[%s7 + $0x50] sm:$0xff]
    %v555 = vld [vmem:[%s7 + $0x58] sm:$0xff]
    %v556 = vld [vmem:[%s7 + $0x60] sm:$0xff]
    %v557 = vld [vmem:[%s7 + $0x68] sm:$0xff]
    %v558 = vld [vmem:[%s7 + $0x70] sm:$0xff]
    %v559 = vld [vmem:[%s7 + $0x78] sm:$0xff]
    %v560 = vld [vmem:[%s7 + $0x80] sm:$0xff]
    %v561 = vld [vmem:[%s7 + $0x88] sm:$0xff]
    %v562 = vld [vmem:[%s7 + $0x90] sm:$0xff]
    %v563 = vld [vmem:[%s7 + $0x98] sm:$0xff]
    %v564 = vld [vmem:[%s7 + $0xa0] sm:$0xff]
    %v565 = vld [vmem:[%s7 + $0xa8] sm:$0xff]
    %v566 = vld [vmem:[%s7 + $0xb0] sm:$0xff]
    %v567 = vld [vmem:[%s7 + $0xb8] sm:$0xff]
    %v568 = vld [vmem:[%s8] sm:$0x1]
    %v570 = vlaneseq
    %v571 = vshrl.u32 %v570, 7
    %v572 = vsub.s32 0, %v571
    %v573 = vrot.slane %v568, %v572
    %v575 = vsel %vm254, %v539, 0
    %v577 = vsel %vm254, %v541, 0
    %579 = vmatprep.subr.mxu0 0.0
    %580 = vmatpush1.msra.mxu0 %v559
    %581 = vmatprep.subr.mxu0 0.0
    %582 = vmatpush1.msra.mxu0 %v558
    %583 = vmatprep.subr.mxu0 0.0
    %584 = vmatpush1.msra.mxu0 %v557
    %585 = vmatprep.subr.mxu0 0.0
    %586 = vmatpush1.msra.mxu0 %v556
    %587 = vmatprep.subr.mxu0 0.0
    %588 = vmatpush1.msra.mxu0 %v555
    %589 = vmatprep.subr.mxu0 0.0
    %590 = vmatpush1.msra.mxu0 %v554
    %591 = vmatprep.subr.mxu0 0.0
    %592 = vmatpush1.msra.mxu0 %v553
    %593 = vmatprep.subr.mxu0 0.0
    %594 = vmatpush1.msra.mxu0 %v552
    %595 = vmatprep.subr.mxu0 0.0
    %596 = vmatpush1.msra.mxu0 %v551
    %597 = vmatprep.subr.mxu0 0.0
    %598 = vmatpush1.msra.mxu0 %v550
    %599 = vmatprep.subr.mxu0 0.0
    %600 = vmatpush1.msra.mxu0 %v549
    %601 = vmatprep.subr.mxu0 0.0
    %602 = vmatpush1.msra.mxu0 %v548
    %603 = vmatprep.subr.mxu0 0.0
    %604 = vmatpush1.msra.mxu0 %v547
    %605 = vmatprep.subr.mxu0 0.0
    %606 = vmatpush1.msra.mxu0 %v546
    %607 = vmatprep.subr.mxu0 0.0
    %608 = vmatpush1.msra.mxu0 %v545
    %609 = vmatprep.subr.mxu0 0.0
    %610 = vmatpush1.msra.mxu0 %v544
    %611 = vmatprep.subr.mxu0 0.0
    %612 = vmatpush2.msra.mxu0 0.0
    %613 = vmatprep.subr.mxu0 0.0
    %614 = vmatpush2.msra.mxu0 0.0
    %615 = vmatprep.subr.mxu0 0.0
    %616 = vmatpush2.msra.mxu0 0.0
    %617 = vmatprep.subr.mxu0 0.0
    %618 = vmatpush2.msra.mxu0 0.0
    %619 = vmatprep.subr.mxu0 0.0
    %620 = vmatpush2.msra.mxu0 0.0
    %621 = vmatprep.subr.mxu0 0.0
    %622 = vmatpush2.msra.mxu0 0.0
    %623 = vmatprep.subr.mxu0 0.0
    %624 = vmatpush2.msra.mxu0 0.0
    %625 = vmatprep.subr.mxu0 0.0
    %626 = vmatpush2.msra.mxu0 0.0
    %627 = vmatprep.subr.mxu0 0.0
    %628 = vmatpush2.msra.mxu0 %v567
    %629 = vmatprep.subr.mxu0 0.0
    %630 = vmatpush2.msra.mxu0 %v566
    %631 = vmatprep.subr.mxu0 0.0
    %632 = vmatpush2.msra.mxu0 %v565
    %633 = vmatprep.subr.mxu0 0.0
    %634 = vmatpush2.msra.mxu0 %v564
    %635 = vmatprep.subr.mxu0 0.0
    %636 = vmatpush2.msra.mxu0 %v563
    %637 = vmatprep.subr.mxu0 0.0
    %638 = vmatpush2.msra.mxu0 %v562
    %639 = vmatprep.subr.mxu0 0.0
    %640 = vmatpush2.msra.mxu0 %v561
    %641 = vmatprep.subr.mxu0 0.0
    %642 = vmatpush2.msra.mxu0 %v560
    %643 = vmatprep.mubr.f32.mxu0 %v575
    %644 = vmatmul.mubr.f32.gmra.mxu0 %v542
    %v645 = vpop.f32.mrf.mxu0
    %v646 = vadd.f32 %v573, %v645
    %v647 = vpop.f32.mrf.mxu0
    %648 = vmatprep.mubr.f32.mxu0 %v577
    %649 = vmatmul.mubr.f32.gmra.mxu0 %v543
    %v650 = vpop.f32.mrf.mxu0
    %v651 = vadd.f32 %v573, %v650
    %v652 = vpop.f32.mrf.mxu0
    %653 = vdwg.mxu0
    %v654 = vmax.f32 %v646, 0.0
    %v655 = vmax.f32 %v651, 0.0
    %v656 = vld [vmem:[%s9] sm:$0xff]
    %v657 = vld [vmem:[%s9 + $0x8] sm:$0xff]
    %v658 = vld [vmem:[%s9 + $0x10] sm:$0xff]
    %v659 = vld [vmem:[%s9 + $0x18] sm:$0xff]
    %v660 = vld [vmem:[%s9 + $0x20] sm:$0xff]
    %v661 = vld [vmem:[%s9 + $0x28] sm:$0xff]
    %v662 = vld [vmem:[%s9 + $0x30] sm:$0xff]
    %v663 = vld [vmem:[%s9 + $0x38] sm:$0xff]
    %v664 = vld [vmem:[%s11] sm:$0x1]
    %v666 = vlaneseq
    %v667 = vshrl.u32 %v666, 7
    %v668 = vsub.s32 0, %v667
    %v669 = vrot.slane %v664, %v668
    %v672 = vsel %vm254, %v654, 0
    %v675 = vsel %vm254, %v655, 0
    %677 = vmatprep.subr.mxu0 0.0
    %678 = vmatpush1.msra.mxu0 0.0
    %679 = vmatprep.subr.mxu0 0.0
    %680 = vmatpush1.msra.mxu0 0.0
    %681 = vmatprep.subr.mxu0 0.0
    %682 = vmatpush1.msra.mxu0 0.0
    %683 = vmatprep.subr.mxu0 0.0
    %684 = vmatpush1.msra.mxu0 0.0
    %685 = vmatprep.subr.mxu0 0.0
    %686 = vmatpush1.msra.mxu0 0.0
    %687 = vmatprep.subr.mxu0 0.0
    %688 = vmatpush1.msra.mxu0 0.0
    %689 = vmatprep.subr.mxu0 0.0
    %690 = vmatpush1.msra.mxu0 0.0
    %691 = vmatprep.subr.mxu0 0.0
    %692 = vmatpush1.msra.mxu0 0.0
    %693 = vmatprep.subr.mxu0 0.0
    %694 = vmatpush1.msra.mxu0 %v663
    %695 = vmatprep.subr.mxu0 0.0
    %696 = vmatpush1.msra.mxu0 %v662
    %697 = vmatprep.subr.mxu0 0.0
    %698 = vmatpush1.msra.mxu0 %v661
    %699 = vmatprep.subr.mxu0 0.0
    %700 = vmatpush1.msra.mxu0 %v660
    %701 = vmatprep.subr.mxu0 0.0
    %702 = vmatpush1.msra.mxu0 %v659
    %703 = vmatprep.subr.mxu0 0.0
    %704 = vmatpush1.msra.mxu0 %v658
    %705 = vmatprep.subr.mxu0 0.0
    %706 = vmatpush1.msra.mxu0 %v657
    %707 = vmatprep.subr.mxu0 0.0
    %708 = vmatpush1.msra.mxu0 %v656
    %709 = vmatprep.subr.mxu0 0.0
    %710 = vmatpush2.msra.mxu0 0.0
    %711 = vmatprep.subr.mxu0 0.0
    %712 = vmatpush2.msra.mxu0 0.0
    %713 = vmatprep.subr.mxu0 0.0
    %714 = vmatpush2.msra.mxu0 0.0
    %715 = vmatprep.subr.mxu0 0.0
    %716 = vmatpush2.msra.mxu0 0.0
    %717 = vmatprep.subr.mxu0 0.0
    %718 = vmatpush2.msra.mxu0 0.0
    %719 = vmatprep.subr.mxu0 0.0
    %720 = vmatpush2.msra.mxu0 0.0
    %721 = vmatprep.subr.mxu0 0.0
    %722 = vmatpush2.msra.mxu0 0.0
    %723 = vmatprep.subr.mxu0 0.0
    %724 = vmatpush2.msra.mxu0 0.0
    %725 = vmatprep.subr.mxu0 0.0
    %726 = vmatpush2.msra.mxu0 0.0
    %727 = vmatprep.subr.mxu0 0.0
    %728 = vmatpush2.msra.mxu0 0.0
    %729 = vmatprep.subr.mxu0 0.0
    %730 = vmatpush2.msra.mxu0 0.0
    %731 = vmatprep.subr.mxu0 0.0
    %732 = vmatpush2.msra.mxu0 0.0
    %733 = vmatprep.subr.mxu0 0.0
    %734 = vmatpush2.msra.mxu0 0.0
    %735 = vmatprep.subr.mxu0 0.0
    %736 = vmatpush2.msra.mxu0 0.0
    %737 = vmatprep.subr.mxu0 0.0
    %738 = vmatpush2.msra.mxu0 0.0
    %739 = vmatprep.subr.mxu0 0.0
    %740 = vmatpush2.msra.mxu0 0.0
    %741 = vmatprep.mubr.f32.mxu0 0.0
    %742 = vmatmul.mubr.f32.gmra.mxu0 %v672
    %v743 = vpop.f32.mrf.mxu0
    %v744 = vadd.f32 %v669, %v743
    %v745 = vpop.f32.mrf.mxu0
    %746 = vmatprep.mubr.f32.mxu0 0.0
    %747 = vmatmul.mubr.f32.gmra.mxu0 %v675
    %v748 = vpop.f32.mrf.mxu0
    %v749 = vadd.f32 %v669, %v748
    %v750 = vpop.f32.mrf.mxu0
    %751 = vdwg.mxu0
    %v752 = vld [vmem:[%s10] sm:$0xff]
    %v753 = vld [vmem:[%s10 + $0x8] sm:$0xff]
    %v754 = vld [vmem:[%s10 + $0x10] sm:$0xff]
    %v755 = vld [vmem:[%s10 + $0x18] sm:$0xff]
    %v756 = vld [vmem:[%s12] sm:$0xff]
    %v757 = vld [vmem:[%s12 + $0x8] sm:$0xff]
    %v758 = vld [vmem:[%s12 + $0x10] sm:$0xff]
    %v759 = vld [vmem:[%s12 + $0x18] sm:$0xff]
    %v760 = vld [vmem:[%s12 + $0x20] sm:$0xff]
    %v761 = vld [vmem:[%s12 + $0x28] sm:$0xff]
    %v762 = vld [vmem:[%s12 + $0x30] sm:$0xff]
    %v763 = vld [vmem:[%s12 + $0x38] sm:$0xff]
    %v764 = vld [vmem:[%s13] sm:$0x1]
    %vm765 = vcmask 261120
    %v767 = vsel %vm765, 0.0, 0
    %769 = vmatprep.subr.mxu0 0.0
    %770 = vmatpush1.msra.mxu0 0.0
    %771 = vmatprep.subr.mxu0 0.0
    %772 = vmatpush1.msra.mxu0 0.0
    %773 = vmatprep.subr.mxu0 0.0
    %774 = vmatpush1.msra.mxu0 0.0
    %775 = vmatprep.subr.mxu0 0.0
    %776 = vmatpush1.msra.mxu0 0.0
    %777 = vmatprep.subr.mxu0 0.0
    %778 = vmatpush1.msra.mxu0 0.0
    %779 = vmatprep.subr.mxu0 0.0
    %780 = vmatpush1.msra.mxu0 0.0
    %781 = vmatprep.subr.mxu0 0.0
    %782 = vmatpush1.msra.mxu0 0.0
    %783 = vmatprep.subr.mxu0 0.0
    %784 = vmatpush1.msra.mxu0 0.0
    %785 = vmatprep.subr.mxu0 0.0
    %786 = vmatpush1.msra.mxu0 0.0
    %787 = vmatprep.subr.mxu0 0.0
    %788 = vmatpush1.msra.mxu0 0.0
    %789 = vmatprep.subr.mxu0 0.0
    %790 = vmatpush1.msra.mxu0 0.0
    %791 = vmatprep.subr.mxu0 0.0
    %792 = vmatpush1.msra.mxu0 0.0
    %793 = vmatprep.subr.mxu0 0.0
    %794 = vmatpush1.msra.mxu0 %v755
    %795 = vmatprep.subr.mxu0 0.0
    %796 = vmatpush1.msra.mxu0 %v754
    %797 = vmatprep.subr.mxu0 0.0
    %798 = vmatpush1.msra.mxu0 %v753
    %799 = vmatprep.subr.mxu0 0.0
    %800 = vmatpush1.msra.mxu0 %v752
    %801 = vmatprep.subr.mxu0 0.0
    %802 = vmatpush2.msra.mxu0 0.0
    %803 = vmatprep.subr.mxu0 0.0
    %804 = vmatpush2.msra.mxu0 0.0
    %805 = vmatprep.subr.mxu0 0.0
    %806 = vmatpush2.msra.mxu0 0.0
    %807 = vmatprep.subr.mxu0 0.0
    %808 = vmatpush2.msra.mxu0 0.0
    %809 = vmatprep.subr.mxu0 0.0
    %810 = vmatpush2.msra.mxu0 0.0
    %811 = vmatprep.subr.mxu0 0.0
    %812 = vmatpush2.msra.mxu0 0.0
    %813 = vmatprep.subr.mxu0 0.0
    %814 = vmatpush2.msra.mxu0 0.0
    %815 = vmatprep.subr.mxu0 0.0
    %816 = vmatpush2.msra.mxu0 0.0
    %817 = vmatprep.subr.mxu0 0.0
    %818 = vmatpush2.msra.mxu0 0.0
    %819 = vmatprep.subr.mxu0 0.0
    %820 = vmatpush2.msra.mxu0 0.0
    %821 = vmatprep.subr.mxu0 0.0
    %822 = vmatpush2.msra.mxu0 0.0
    %823 = vmatprep.subr.mxu0 0.0
    %824 = vmatpush2.msra.mxu0 0.0
    %825 = vmatprep.subr.mxu0 0.0
    %826 = vmatpush2.msra.mxu0 0.0
    %827 = vmatprep.subr.mxu0 0.0
    %828 = vmatpush2.msra.mxu0 0.0
    %829 = vmatprep.subr.mxu0 0.0
    %830 = vmatpush2.msra.mxu0 0.0
    %831 = vmatprep.subr.mxu0 0.0
    %832 = vmatpush2.msra.mxu0 0.0
    %833 = vmatprep.mubr.f32.mxu0 0.0
    %834 = vmatmul.mubr.f32.gmra.mxu0 %v767
    %v835 = vpop.f32.mrf.mxu0
    %v836 = vadd.f32 0.0, %v835
    %v837 = vpop.f32.mrf.mxu0
    %838 = vdwg.mxu0
    %v839 = vadd.f32 %v744, %v836
    %v840 = vxor.u32 %v839, 2147483648
    %v841 = vmul.f32 %v840, 1.442695
    %v842 = vpow.pop %v841
    %v843 = vadd.f32 %v842, 1.0
    %v844 = vrcp.pop %v843
    %v845 = vmul.f32 1.0, %v844
    %v846 = vtanh.pop %v839
    %v847 = vmul.f32 %v845, 0.0
    %849 = vrot.lane.b32.xlu0 %v846, 32
    %v850 = vpop.permute.xlu0 %849
    %v852 = vmul.f32 %v845, %v850
    %854 = vrot.lane.b32.xlu0 %v852, 32
    %v855 = vpop.permute.xlu0 %854
    %v857 = vadd.f32 %v847, %v855
    %v858 = vtanh.pop %v857
    %860 = vrot.lane.b32.xlu0 %v858, 32
    %v861 = vpop.permute.xlu0 %860
    %v863 = vmul.f32 %v845, %v861
    %865 = vrot.lane.b32.xlu0 %v863, 64
    %v866 = vpop.permute.xlu0 %865
    %v868 = vsel %vm765, %v866, 0.0
    %v870 = vlaneseq
    %v871 = vshrl.u32 %v870, 7
    %v872 = vsub.s32 0, %v871
    %v873 = vrot.slane %v764, %v872
    %v876 = vsel %vm254, %v868, 0
    %878 = vmatprep.subr.mxu0 0.0
    %879 = vmatpush1.msra.mxu0 0.0
    %880 = vmatprep.subr.mxu0 0.0
    %881 = vmatpush1.msra.mxu0 0.0
    %882 = vmatprep.subr.mxu0 0.0
    %883 = vmatpush1.msra.mxu0 0.0
    %884 = vmatprep.subr.mxu0 0.0
    %885 = vmatpush1.msra.mxu0 0.0
    %886 = vmatprep.subr.mxu0 0.0
    %887 = vmatpush1.msra.mxu0 0.0
    %888 = vmatprep.subr.mxu0 0.0
    %889 = vmatpush1.msra.mxu0 0.0
    %890 = vmatprep.subr.mxu0 0.0
    %891 = vmatpush1.msra.mxu0 0.0
    %892 = vmatprep.subr.mxu0 0.0
    %893 = vmatpush1.msra.mxu0 0.0
    %894 = vmatprep.subr.mxu0 0.0
    %895 = vmatpush1.msra.mxu0 %v763
    %896 = vmatprep.subr.mxu0 0.0
    %897 = vmatpush1.msra.mxu0 %v762
    %898 = vmatprep.subr.mxu0 0.0
    %899 = vmatpush1.msra.mxu0 %v761
    %900 = vmatprep.subr.mxu0 0.0
    %901 = vmatpush1.msra.mxu0 %v760
    %902 = vmatprep.subr.mxu0 0.0
    %903 = vmatpush1.msra.mxu0 %v759
    %904 = vmatprep.subr.mxu0 0.0
    %905 = vmatpush1.msra.mxu0 %v758
    %906 = vmatprep.subr.mxu0 0.0
    %907 = vmatpush1.msra.mxu0 %v757
    %908 = vmatprep.subr.mxu0 0.0
    %909 = vmatpush1.msra.mxu0 %v756
    %910 = vmatprep.subr.mxu0 0.0
    %911 = vmatpush2.msra.mxu0 0.0
    %912 = vmatprep.subr.mxu0 0.0
    %913 = vmatpush2.msra.mxu0 0.0
    %914 = vmatprep.subr.mxu0 0.0
    %915 = vmatpush2.msra.mxu0 0.0
    %916 = vmatprep.subr.mxu0 0.0
    %917 = vmatpush2.msra.mxu0 0.0
    %918 = vmatprep.subr.mxu0 0.0
    %919 = vmatpush2.msra.mxu0 0.0
    %920 = vmatprep.subr.mxu0 0.0
    %921 = vmatpush2.msra.mxu0 0.0
    %922 = vmatprep.subr.mxu0 0.0
    %923 = vmatpush2.msra.mxu0 0.0
    %924 = vmatprep.subr.mxu0 0.0
    %925 = vmatpush2.msra.mxu0 0.0
    %926 = vmatprep.subr.mxu0 0.0
    %927 = vmatpush2.msra.mxu0 0.0
    %928 = vmatprep.subr.mxu0 0.0
    %929 = vmatpush2.msra.mxu0 0.0
    %930 = vmatprep.subr.mxu0 0.0
    %931 = vmatpush2.msra.mxu0 0.0
    %932 = vmatprep.subr.mxu0 0.0
    %933 = vmatpush2.msra.mxu0 0.0
    %934 = vmatprep.subr.mxu0 0.0
    %935 = vmatpush2.msra.mxu0 0.0
    %936 = vmatprep.subr.mxu0 0.0
    %937 = vmatpush2.msra.mxu0 0.0
    %938 = vmatprep.subr.mxu0 0.0
    %939 = vmatpush2.msra.mxu0 0.0
    %940 = vmatprep.subr.mxu0 0.0
    %941 = vmatpush2.msra.mxu0 0.0
    %942 = vmatprep.mubr.f32.mxu0 0.0
    %943 = vmatmul.mubr.f32.gmra.mxu0 %v876
    %v944 = vpop.f32.mrf.mxu0
    %v945 = vadd.f32 %v873, %v944
    %v946 = vpop.f32.mrf.mxu0
    %947 = vdwg.mxu0
    %v948 = vxor.u32 %v945, 2147483648
    %v949 = vmul.f32 %v948, 1.442695
    %v950 = vpow.pop %v949
    %v951 = vadd.f32 %v950, 1.0
    %v952 = vrcp.pop %v951
    %v953 = vmul.f32 1.0, %v952
    %v954 = vtanh.pop %v945
    %v955 = vmul.f32 %v953, 0.0
    %957 = vrot.lane.b32.xlu0 %v954, 32
    %v958 = vpop.permute.xlu0 %957
    %v960 = vmul.f32 %v953, %v958
    %962 = vrot.lane.b32.xlu0 %v960, 32
    %v963 = vpop.permute.xlu0 %962
    %v965 = vadd.f32 %v955, %v963
    %v966 = vtanh.pop %v965
    %968 = vrot.lane.b32.xlu0 %v966, 32
    %v969 = vpop.permute.xlu0 %968
    %v971 = vmul.f32 %v953, %v969
    %v972 = vsel %vm765, %v866, 0
    %974 = vmatprep.subr.mxu0 0.0
    %975 = vmatpush1.msra.mxu0 0.0
    %976 = vmatprep.subr.mxu0 0.0
    %977 = vmatpush1.msra.mxu0 0.0
    %978 = vmatprep.subr.mxu0 0.0
    %979 = vmatpush1.msra.mxu0 0.0
    %980 = vmatprep.subr.mxu0 0.0
    %981 = vmatpush1.msra.mxu0 0.0
    %982 = vmatprep.subr.mxu0 0.0
    %983 = vmatpush1.msra.mxu0 0.0
    %984 = vmatprep.subr.mxu0 0.0
    %985 = vmatpush1.msra.mxu0 0.0
    %986 = vmatprep.subr.mxu0 0.0
    %987 = vmatpush1.msra.mxu0 0.0
    %988 = vmatprep.subr.mxu0 0.0
    %989 = vmatpush1.msra.mxu0 0.0
    %990 = vmatprep.subr.mxu0 0.0
    %991 = vmatpush1.msra.mxu0 0.0
    %992 = vmatprep.subr.mxu0 0.0
    %993 = vmatpush1.msra.mxu0 0.0
    %994 = vmatprep.subr.mxu0 0.0
    %995 = vmatpush1.msra.mxu0 0.0
    %996 = vmatprep.subr.mxu0 0.0
    %997 = vmatpush1.msra.mxu0 0.0
    %998 = vmatprep.subr.mxu0 0.0
    %999 = vmatpush1.msra.mxu0 %v755
    %1000 = vmatprep.subr.mxu0 0.0
    %1001 = vmatpush1.msra.mxu0 %v754
    %1002 = vmatprep.subr.mxu0 0.0
    %1003 = vmatpush1.msra.mxu0 %v753
    %1004 = vmatprep.subr.mxu0 0.0
    %1005 = vmatpush1.msra.mxu0 %v752
    %1006 = vmatprep.subr.mxu0 0.0
    %1007 = vmatpush2.msra.mxu0 0.0
    %1008 = vmatprep.subr.mxu0 0.0
    %1009 = vmatpush2.msra.mxu0 0.0
    %1010 = vmatprep.subr.mxu0 0.0
    %1011 = vmatpush2.msra.mxu0 0.0
    %1012 = vmatprep.subr.mxu0 0.0
    %1013 = vmatpush2.msra.mxu0 0.0
    %1014 = vmatprep.subr.mxu0 0.0
    %1015 = vmatpush2.msra.mxu0 0.0
    %1016 = vmatprep.subr.mxu0 0.0
    %1017 = vmatpush2.msra.mxu0 0.0
    %1018 = vmatprep.subr.mxu0 0.0
    %1019 = vmatpush2.msra.mxu0 0.0
    %1020 = vmatprep.subr.mxu0 0.0
    %1021 = vmatpush2.msra.mxu0 0.0
    %1022 = vmatprep.subr.mxu0 0.0
    %1023 = vmatpush2.msra.mxu0 0.0
    %1024 = vmatprep.subr.mxu0 0.0
    %1025 = vmatpush2.msra.mxu0 0.0
    %1026 = vmatprep.subr.mxu0 0.0
    %1027 = vmatpush2.msra.mxu0 0.0
    %1028 = vmatprep.subr.mxu0 0.0
    %1029 = vmatpush2.msra.mxu0 0.0
    %1030 = vmatprep.subr.mxu0 0.0
    %1031 = vmatpush2.msra.mxu0 0.0
    %1032 = vmatprep.subr.mxu0 0.0
    %1033 = vmatpush2.msra.mxu0 0.0
    %1034 = vmatprep.subr.mxu0 0.0
    %1035 = vmatpush2.msra.mxu0 0.0
    %1036 = vmatprep.subr.mxu0 0.0
    %1037 = vmatpush2.msra.mxu0 0.0
    %1038 = vmatprep.mubr.f32.mxu0 0.0
    %1039 = vmatmul.mubr.f32.gmra.mxu0 %v972
    %v1040 = vpop.f32.mrf.mxu0
    %v1041 = vadd.f32 0.0, %v1040
    %v1042 = vpop.f32.mrf.mxu0
    %1043 = vdwg.mxu0
    %v1045 = vrot.slane %v1041, 6
    %v1047 = vadd.f32 %v744, %v1045
    %v1048 = vxor.u32 %v1047, 2147483648
    %v1049 = vmul.f32 %v1048, 1.442695
    %v1050 = vpow.pop %v1049
    %v1051 = vadd.f32 %v1050, 1.0
    %v1052 = vrcp.pop %v1051
    %v1053 = vmul.f32 1.0, %v1052
    %v1054 = vtanh.pop %v1047
    %v1056 = vrot.slane %v857, 6
    %v1058 = vmul.f32 %v1053, %v1056
    %1060 = vrot.lane.b32.xlu0 %v1054, 32
    %v1061 = vpop.permute.xlu0 %1060
    %v1063 = vmul.f32 %v1053, %v1061
    %1065 = vrot.lane.b32.xlu0 %v1063, 32
    %v1066 = vpop.permute.xlu0 %1065
    %v1068 = vadd.f32 %v1058, %v1066
    %v1069 = vtanh.pop %v1068
    %1071 = vrot.lane.b32.xlu0 %v1069, 32
    %v1072 = vpop.permute.xlu0 %1071
    %v1074 = vmul.f32 %v1053, %v1072
    %1076 = vrot.lane.b32.xlu0 %v1074, 64
    %v1077 = vpop.permute.xlu0 %1076
    %v1080 = vrot.slane %v971, 6
    %1081 = vrot.lane.b32.xlu0 %v1080, 96
    %v1082 = vpop.permute.xlu0 %1081
    %v1084 = vsel %vm765, %v1077, %v1082
    %v1086 = vrot.slane %v1084, 2
    %v1087 = vsel %vm254, %v1086, 0
    %1089 = vmatprep.subr.mxu0 0.0
    %1090 = vmatpush1.msra.mxu0 0.0
    %1091 = vmatprep.subr.mxu0 0.0
    %1092 = vmatpush1.msra.mxu0 0.0
    %1093 = vmatprep.subr.mxu0 0.0
    %1094 = vmatpush1.msra.mxu0 0.0
    %1095 = vmatprep.subr.mxu0 0.0
    %1096 = vmatpush1.msra.mxu0 0.0
    %1097 = vmatprep.subr.mxu0 0.0
    %1098 = vmatpush1.msra.mxu0 0.0
    %1099 = vmatprep.subr.mxu0 0.0
    %1100 = vmatpush1.msra.mxu0 0.0
    %1101 = vmatprep.subr.mxu0 0.0
    %1102 = vmatpush1.msra.mxu0 0.0
    %1103 = vmatprep.subr.mxu0 0.0
    %1104 = vmatpush1.msra.mxu0 0.0
    %1105 = vmatprep.subr.mxu0 0.0
    %1106 = vmatpush1.msra.mxu0 %v763
    %1107 = vmatprep.subr.mxu0 0.0
    %1108 = vmatpush1.msra.mxu0 %v762
    %1109 = vmatprep.subr.mxu0 0.0
    %1110 = vmatpush1.msra.mxu0 %v761
    %1111 = vmatprep.subr.mxu0 0.0
    %1112 = vmatpush1.msra.mxu0 %v760
    %1113 = vmatprep.subr.mxu0 0.0
    %1114 = vmatpush1.msra.mxu0 %v759
    %1115 = vmatprep.subr.mxu0 0.0
    %1116 = vmatpush1.msra.mxu0 %v758
    %1117 = vmatprep.subr.mxu0 0.0
    %1118 = vmatpush1.msra.mxu0 %v757
    %1119 = vmatprep.subr.mxu0 0.0
    %1120 = vmatpush1.msra.mxu0 %v756
    %1121 = vmatprep.subr.mxu0 0.0
    %1122 = vmatpush2.msra.mxu0 0.0
    %1123 = vmatprep.subr.mxu0 0.0
    %1124 = vmatpush2.msra.mxu0 0.0
    %1125 = vmatprep.subr.mxu0 0.0
    %1126 = vmatpush2.msra.mxu0 0.0
    %1127 = vmatprep.subr.mxu0 0.0
    %1128 = vmatpush2.msra.mxu0 0.0
    %1129 = vmatprep.subr.mxu0 0.0
    %1130 = vmatpush2.msra.mxu0 0.0
    %1131 = vmatprep.subr.mxu0 0.0
    %1132 = vmatpush2.msra.mxu0 0.0
    %1133 = vmatprep.subr.mxu0 0.0
    %1134 = vmatpush2.msra.mxu0 0.0
    %1135 = vmatprep.subr.mxu0 0.0
    %1136 = vmatpush2.msra.mxu0 0.0
    %1137 = vmatprep.subr.mxu0 0.0
    %1138 = vmatpush2.msra.mxu0 0.0
    %1139 = vmatprep.subr.mxu0 0.0
    %1140 = vmatpush2.msra.mxu0 0.0
    %1141 = vmatprep.subr.mxu0 0.0
    %1142 = vmatpush2.msra.mxu0 0.0
    %1143 = vmatprep.subr.mxu0 0.0
    %1144 = vmatpush2.msra.mxu0 0.0
    %1145 = vmatprep.subr.mxu0 0.0
    %1146 = vmatpush2.msra.mxu0 0.0
    %1147 = vmatprep.subr.mxu0 0.0
    %1148 = vmatpush2.msra.mxu0 0.0
    %1149 = vmatprep.subr.mxu0 0.0
    %1150 = vmatpush2.msra.mxu0 0.0
    %1151 = vmatprep.subr.mxu0 0.0
    %1152 = vmatpush2.msra.mxu0 0.0
    %1153 = vmatprep.mubr.f32.mxu0 0.0
    %1154 = vmatmul.mubr.f32.gmra.mxu0 %v1087
    %v1155 = vpop.f32.mrf.mxu0
    %v1156 = vadd.f32 %v873, %v1155
    %v1157 = vpop.f32.mrf.mxu0
    %1158 = vdwg.mxu0
    %v1159 = vxor.u32 %v1156, 2147483648
    %v1160 = vmul.f32 %v1159, 1.442695
    %v1161 = vpow.pop %v1160
    %v1162 = vadd.f32 %v1161, 1.0
    %v1163 = vrcp.pop %v1162
    %v1164 = vmul.f32 1.0, %v1163
    %v1165 = vtanh.pop %v1156
    %v1166 = vmul.f32 %v1164, %v965
    %1168 = vrot.lane.b32.xlu0 %v1165, 32
    %v1169 = vpop.permute.xlu0 %1168
    %v1171 = vmul.f32 %v1164, %v1169
    %1173 = vrot.lane.b32.xlu0 %v1171, 32
    %v1174 = vpop.permute.xlu0 %1173
    %v1176 = vadd.f32 %v1166, %v1174
    %v1177 = vtanh.pop %v1176
    %1179 = vrot.lane.b32.xlu0 %v1177, 32
    %v1180 = vpop.permute.xlu0 %1179
    %v1182 = vmul.f32 %v1164, %v1180
    %v1183 = vrot.slane %v1074, 2
    %1184 = vrot.lane.b32.xlu0 %v1183, 64
    %v1185 = vpop.permute.xlu0 %1184
    %v1186 = vsel %vm765, %v1185, 0
    %1188 = vmatprep.subr.mxu0 0.0
    %1189 = vmatpush1.msra.mxu0 0.0
    %1190 = vmatprep.subr.mxu0 0.0
    %1191 = vmatpush1.msra.mxu0 0.0
    %1192 = vmatprep.subr.mxu0 0.0
    %1193 = vmatpush1.msra.mxu0 0.0
    %1194 = vmatprep.subr.mxu0 0.0
    %1195 = vmatpush1.msra.mxu0 0.0
    %1196 = vmatprep.subr.mxu0 0.0
    %1197 = vmatpush1.msra.mxu0 0.0
    %1198 = vmatprep.subr.mxu0 0.0
    %1199 = vmatpush1.msra.mxu0 0.0
    %1200 = vmatprep.subr.mxu0 0.0
    %1201 = vmatpush1.msra.mxu0 0.0
    %1202 = vmatprep.subr.mxu0 0.0
    %1203 = vmatpush1.msra.mxu0 0.0
    %1204 = vmatprep.subr.mxu0 0.0
    %1205 = vmatpush1.msra.mxu0 0.0
    %1206 = vmatprep.subr.mxu0 0.0
    %1207 = vmatpush1.msra.mxu0 0.0
    %1208 = vmatprep.subr.mxu0 0.0
    %1209 = vmatpush1.msra.mxu0 0.0
    %1210 = vmatprep.subr.mxu0 0.0
    %1211 = vmatpush1.msra.mxu0 0.0
    %1212 = vmatprep.subr.mxu0 0.0
    %1213 = vmatpush1.msra.mxu0 %v755
    %1214 = vmatprep.subr.mxu0 0.0
    %1215 = vmatpush1.msra.mxu0 %v754
    %1216 = vmatprep.subr.mxu0 0.0
    %1217 = vmatpush1.msra.mxu0 %v753
    %1218 = vmatprep.subr.mxu0 0.0
    %1219 = vmatpush1.msra.mxu0 %v752
    %1220 = vmatprep.subr.mxu0 0.0
    %1221 = vmatpush2.msra.mxu0 0.0
    %1222 = vmatprep.subr.mxu0 0.0
    %1223 = vmatpush2.msra.mxu0 0.0
    %1224 = vmatprep.subr.mxu0 0.0
    %1225 = vmatpush2.msra.mxu0 0.0
    %1226 = vmatprep.subr.mxu0 0.0
    %1227 = vmatpush2.msra.mxu0 0.0
    %1228 = vmatprep.subr.mxu0 0.0
    %1229 = vmatpush2.msra.mxu0 0.0
    %1230 = vmatprep.subr.mxu0 0.0
    %1231 = vmatpush2.msra.mxu0 0.0
    %1232 = vmatprep.subr.mxu0 0.0
    %1233 = vmatpush2.msra.mxu0 0.0
    %1234 = vmatprep.subr.mxu0 0.0
    %1235 = vmatpush2.msra.mxu0 0.0
    %1236 = vmatprep.subr.mxu0 0.0
    %1237 = vmatpush2.msra.mxu0 0.0
    %1238 = vmatprep.subr.mxu0 0.0
    %1239 = vmatpush2.msra.mxu0 0.0
    %1240 = vmatprep.subr.mxu0 0.0
    %1241 = vmatpush2.msra.mxu0 0.0
    %1242 = vmatprep.subr.mxu0 0.0
    %1243 = vmatpush2.msra.mxu0 0.0
    %1244 = vmatprep.subr.mxu0 0.0
    %1245 = vmatpush2.msra.mxu0 0.0
    %1246 = vmatprep.subr.mxu0 0.0
    %1247 = vmatpush2.msra.mxu0 0.0
    %1248 = vmatprep.subr.mxu0 0.0
    %1249 = vmatpush2.msra.mxu0 0.0
    %1250 = vmatprep.subr.mxu0 0.0
    %1251 = vmatpush2.msra.mxu0 0.0
    %1252 = vmatprep.mubr.f32.mxu0 0.0
    %1253 = vmatmul.mubr.f32.gmra.mxu0 %v1186
    %v1254 = vpop.f32.mrf.mxu0
    %v1255 = vadd.f32 0.0, %v1254
    %v1256 = vpop.f32.mrf.mxu0
    %1257 = vdwg.mxu0
    %v1259 = vrot.slane %v1255, 4
    %v1261 = vadd.f32 %v744, %v1259
    %v1262 = vxor.u32 %v1261, 2147483648
    %v1263 = vmul.f32 %v1262, 1.442695
    %v1264 = vpow.pop %v1263
    %v1265 = vadd.f32 %v1264, 1.0
    %v1266 = vrcp.pop %v1265
    %v1267 = vmul.f32 1.0, %v1266
    %v1268 = vtanh.pop %v1261
    %v1270 = vrot.slane %v1068, 6
    %v1272 = vmul.f32 %v1267, %v1270
    %1274 = vrot.lane.b32.xlu0 %v1268, 32
    %v1275 = vpop.permute.xlu0 %1274
    %v1277 = vmul.f32 %v1267, %v1275
    %1279 = vrot.lane.b32.xlu0 %v1277, 32
    %v1280 = vpop.permute.xlu0 %1279
    %v1282 = vadd.f32 %v1272, %v1280
    %v1283 = vtanh.pop %v1282
    %1285 = vrot.lane.b32.xlu0 %v1283, 32
    %v1286 = vpop.permute.xlu0 %1285
    %v1288 = vmul.f32 %v1267, %v1286
    %1290 = vrot.lane.b32.xlu0 %v1288, 64
    %v1291 = vpop.permute.xlu0 %1290
    %v1294 = vrot.slane %v1182, 4
    %1295 = vrot.lane.b32.xlu0 %v1294, 96
    %v1296 = vpop.permute.xlu0 %1295
    %v1298 = vsel %vm765, %v1291, %v1296
    %v1300 = vrot.slane %v1298, 4
    %v1301 = vsel %vm254, %v1300, 0
    %1303 = vmatprep.subr.mxu0 0.0
    %1304 = vmatpush1.msra.mxu0 0.0
    %1305 = vmatprep.subr.mxu0 0.0
    %1306 = vmatpush1.msra.mxu0 0.0
    %1307 = vmatprep.subr.mxu0 0.0
    %1308 = vmatpush1.msra.mxu0 0.0
    %1309 = vmatprep.subr.mxu0 0.0
    %1310 = vmatpush1.msra.mxu0 0.0
    %1311 = vmatprep.subr.mxu0 0.0
    %1312 = vmatpush1.msra.mxu0 0.0
    %1313 = vmatprep.subr.mxu0 0.0
    %1314 = vmatpush1.msra.mxu0 0.0
    %1315 = vmatprep.subr.mxu0 0.0
    %1316 = vmatpush1.msra.mxu0 0.0
    %1317 = vmatprep.subr.mxu0 0.0
    %1318 = vmatpush1.msra.mxu0 0.0
    %1319 = vmatprep.subr.mxu0 0.0
    %1320 = vmatpush1.msra.mxu0 %v763
    %1321 = vmatprep.subr.mxu0 0.0
    %1322 = vmatpush1.msra.mxu0 %v762
    %1323 = vmatprep.subr.mxu0 0.0
    %1324 = vmatpush1.msra.mxu0 %v761
    %1325 = vmatprep.subr.mxu0 0.0
    %1326 = vmatpush1.msra.mxu0 %v760
    %1327 = vmatprep.subr.mxu0 0.0
    %1328 = vmatpush1.msra.mxu0 %v759
    %1329 = vmatprep.subr.mxu0 0.0
    %1330 = vmatpush1.msra.mxu0 %v758
    %1331 = vmatprep.subr.mxu0 0.0
    %1332 = vmatpush1.msra.mxu0 %v757
    %1333 = vmatprep.subr.mxu0 0.0
    %1334 = vmatpush1.msra.mxu0 %v756
    %1335 = vmatprep.subr.mxu0 0.0
    %1336 = vmatpush2.msra.mxu0 0.0
    %1337 = vmatprep.subr.mxu0 0.0
    %1338 = vmatpush2.msra.mxu0 0.0
    %1339 = vmatprep.subr.mxu0 0.0
    %1340 = vmatpush2.msra.mxu0 0.0
    %1341 = vmatprep.subr.mxu0 0.0
    %1342 = vmatpush2.msra.mxu0 0.0
    %1343 = vmatprep.subr.mxu0 0.0
    %1344 = vmatpush2.msra.mxu0 0.0
    %1345 = vmatprep.subr.mxu0 0.0
    %1346 = vmatpush2.msra.mxu0 0.0
    %1347 = vmatprep.subr.mxu0 0.0
    %1348 = vmatpush2.msra.mxu0 0.0
    %1349 = vmatprep.subr.mxu0 0.0
    %1350 = vmatpush2.msra.mxu0 0.0
    %1351 = vmatprep.subr.mxu0 0.0
    %1352 = vmatpush2.msra.mxu0 0.0
    %1353 = vmatprep.subr.mxu0 0.0
    %1354 = vmatpush2.msra.mxu0 0.0
    %1355 = vmatprep.subr.mxu0 0.0
    %1356 = vmatpush2.msra.mxu0 0.0
    %1357 = vmatprep.subr.mxu0 0.0
    %1358 = vmatpush2.msra.mxu0 0.0
    %1359 = vmatprep.subr.mxu0 0.0
    %1360 = vmatpush2.msra.mxu0 0.0
    %1361 = vmatprep.subr.mxu0 0.0
    %1362 = vmatpush2.msra.mxu0 0.0
    %1363 = vmatprep.subr.mxu0 0.0
    %1364 = vmatpush2.msra.mxu0 0.0
    %1365 = vmatprep.subr.mxu0 0.0
    %1366 = vmatpush2.msra.mxu0 0.0
    %1367 = vmatprep.mubr.f32.mxu0 0.0
    %1368 = vmatmul.mubr.f32.gmra.mxu0 %v1301
    %v1369 = vpop.f32.mrf.mxu0
    %v1370 = vadd.f32 %v873, %v1369
    %v1371 = vpop.f32.mrf.mxu0
    %1372 = vdwg.mxu0
    %v1373 = vxor.u32 %v1370, 2147483648
    %v1374 = vmul.f32 %v1373, 1.442695
    %v1375 = vpow.pop %v1374
    %v1376 = vadd.f32 %v1375, 1.0
    %v1377 = vrcp.pop %v1376
    %v1378 = vmul.f32 1.0, %v1377
    %v1379 = vtanh.pop %v1370
    %v1380 = vmul.f32 %v1378, %v1176
    %1382 = vrot.lane.b32.xlu0 %v1379, 32
    %v1383 = vpop.permute.xlu0 %1382
    %v1385 = vmul.f32 %v1378, %v1383
    %1387 = vrot.lane.b32.xlu0 %v1385, 32
    %v1388 = vpop.permute.xlu0 %1387
    %v1390 = vadd.f32 %v1380, %v1388
    %v1391 = vtanh.pop %v1390
    %1393 = vrot.lane.b32.xlu0 %v1391, 32
    %v1394 = vpop.permute.xlu0 %1393
    %v1396 = vmul.f32 %v1378, %v1394
    %v1397 = vrot.slane %v1288, 4
    %1398 = vrot.lane.b32.xlu0 %v1397, 64
    %v1399 = vpop.permute.xlu0 %1398
    %v1400 = vsel %vm765, %v1399, 0
    %1402 = vmatprep.subr.mxu0 0.0
    %1403 = vmatpush1.msra.mxu0 0.0
    %1404 = vmatprep.subr.mxu0 0.0
    %1405 = vmatpush1.msra.mxu0 0.0
    %1406 = vmatprep.subr.mxu0 0.0
    %1407 = vmatpush1.msra.mxu0 0.0
    %1408 = vmatprep.subr.mxu0 0.0
    %1409 = vmatpush1.msra.mxu0 0.0
    %1410 = vmatprep.subr.mxu0 0.0
    %1411 = vmatpush1.msra.mxu0 0.0
    %1412 = vmatprep.subr.mxu0 0.0
    %1413 = vmatpush1.msra.mxu0 0.0
    %1414 = vmatprep.subr.mxu0 0.0
    %1415 = vmatpush1.msra.mxu0 0.0
    %1416 = vmatprep.subr.mxu0 0.0
    %1417 = vmatpush1.msra.mxu0 0.0
    %1418 = vmatprep.subr.mxu0 0.0
    %1419 = vmatpush1.msra.mxu0 0.0
    %1420 = vmatprep.subr.mxu0 0.0
    %1421 = vmatpush1.msra.mxu0 0.0
    %1422 = vmatprep.subr.mxu0 0.0
    %1423 = vmatpush1.msra.mxu0 0.0
    %1424 = vmatprep.subr.mxu0 0.0
    %1425 = vmatpush1.msra.mxu0 0.0
    %1426 = vmatprep.subr.mxu0 0.0
    %1427 = vmatpush1.msra.mxu0 %v755
    %1428 = vmatprep.subr.mxu0 0.0
    %1429 = vmatpush1.msra.mxu0 %v754
    %1430 = vmatprep.subr.mxu0 0.0
    %1431 = vmatpush1.msra.mxu0 %v753
    %1432 = vmatprep.subr.mxu0 0.0
    %1433 = vmatpush1.msra.mxu0 %v752
    %1434 = vmatprep.subr.mxu0 0.0
    %1435 = vmatpush2.msra.mxu0 0.0
    %1436 = vmatprep.subr.mxu0 0.0
    %1437 = vmatpush2.msra.mxu0 0.0
    %1438 = vmatprep.subr.mxu0 0.0
    %1439 = vmatpush2.msra.mxu0 0.0
    %1440 = vmatprep.subr.mxu0 0.0
    %1441 = vmatpush2.msra.mxu0 0.0
    %1442 = vmatprep.subr.mxu0 0.0
    %1443 = vmatpush2.msra.mxu0 0.0
    %1444 = vmatprep.subr.mxu0 0.0
    %1445 = vmatpush2.msra.mxu0 0.0
    %1446 = vmatprep.subr.mxu0 0.0
    %1447 = vmatpush2.msra.mxu0 0.0
    %1448 = vmatprep.subr.mxu0 0.0
    %1449 = vmatpush2.msra.mxu0 0.0
    %1450 = vmatprep.subr.mxu0 0.0
    %1451 = vmatpush2.msra.mxu0 0.0
    %1452 = vmatprep.subr.mxu0 0.0
    %1453 = vmatpush2.msra.mxu0 0.0
    %1454 = vmatprep.subr.mxu0 0.0
    %1455 = vmatpush2.msra.mxu0 0.0
    %1456 = vmatprep.subr.mxu0 0.0
    %1457 = vmatpush2.msra.mxu0 0.0
    %1458 = vmatprep.subr.mxu0 0.0
    %1459 = vmatpush2.msra.mxu0 0.0
    %1460 = vmatprep.subr.mxu0 0.0
    %1461 = vmatpush2.msra.mxu0 0.0
    %1462 = vmatprep.subr.mxu0 0.0
    %1463 = vmatpush2.msra.mxu0 0.0
    %1464 = vmatprep.subr.mxu0 0.0
    %1465 = vmatpush2.msra.mxu0 0.0
    %1466 = vmatprep.mubr.f32.mxu0 0.0
    %1467 = vmatmul.mubr.f32.gmra.mxu0 %v1400
    %v1468 = vpop.f32.mrf.mxu0
    %v1469 = vadd.f32 0.0, %v1468
    %v1470 = vpop.f32.mrf.mxu0
    %1471 = vdwg.mxu0
    %v1473 = vrot.slane %v1469, 2
    %v1475 = vadd.f32 %v744, %v1473
    %v1476 = vxor.u32 %v1475, 2147483648
    %v1477 = vmul.f32 %v1476, 1.442695
    %v1478 = vpow.pop %v1477
    %v1479 = vadd.f32 %v1478, 1.0
    %v1480 = vrcp.pop %v1479
    %v1481 = vmul.f32 1.0, %v1480
    %v1482 = vtanh.pop %v1475
    %v1484 = vrot.slane %v1282, 6
    %v1486 = vmul.f32 %v1481, %v1484
    %1488 = vrot.lane.b32.xlu0 %v1482, 32
    %v1489 = vpop.permute.xlu0 %1488
    %v1491 = vmul.f32 %v1481, %v1489
    %1493 = vrot.lane.b32.xlu0 %v1491, 32
    %v1494 = vpop.permute.xlu0 %1493
    %v1496 = vadd.f32 %v1486, %v1494
    %v1497 = vtanh.pop %v1496
    %1499 = vrot.lane.b32.xlu0 %v1497, 32
    %v1500 = vpop.permute.xlu0 %1499
    %v1502 = vmul.f32 %v1481, %v1500
    %1504 = vrot.lane.b32.xlu0 %v1502, 64
    %v1505 = vpop.permute.xlu0 %1504
    %v1508 = vrot.slane %v1396, 2
    %1509 = vrot.lane.b32.xlu0 %v1508, 96
    %v1510 = vpop.permute.xlu0 %1509
    %v1512 = vsel %vm765, %v1505, %v1510
    %v1514 = vrot.slane %v1512, 6
    %v1515 = vsel %vm254, %v1514, 0
    %1517 = vmatprep.subr.mxu0 0.0
    %1518 = vmatpush1.msra.mxu0 0.0
    %1519 = vmatprep.subr.mxu0 0.0
    %1520 = vmatpush1.msra.mxu0 0.0
    %1521 = vmatprep.subr.mxu0 0.0
    %1522 = vmatpush1.msra.mxu0 0.0
    %1523 = vmatprep.subr.mxu0 0.0
    %1524 = vmatpush1.msra.mxu0 0.0
    %1525 = vmatprep.subr.mxu0 0.0
    %1526 = vmatpush1.msra.mxu0 0.0
    %1527 = vmatprep.subr.mxu0 0.0
    %1528 = vmatpush1.msra.mxu0 0.0
    %1529 = vmatprep.subr.mxu0 0.0
    %1530 = vmatpush1.msra.mxu0 0.0
    %1531 = vmatprep.subr.mxu0 0.0
    %1532 = vmatpush1.msra.mxu0 0.0
    %1533 = vmatprep.subr.mxu0 0.0
    %1534 = vmatpush1.msra.mxu0 %v763
    %1535 = vmatprep.subr.mxu0 0.0
    %1536 = vmatpush1.msra.mxu0 %v762
    %1537 = vmatprep.subr.mxu0 0.0
    %1538 = vmatpush1.msra.mxu0 %v761
    %1539 = vmatprep.subr.mxu0 0.0
    %1540 = vmatpush1.msra.mxu0 %v760
    %1541 = vmatprep.subr.mxu0 0.0
    %1542 = vmatpush1.msra.mxu0 %v759
    %1543 = vmatprep.subr.mxu0 0.0
    %1544 = vmatpush1.msra.mxu0 %v758
    %1545 = vmatprep.subr.mxu0 0.0
    %1546 = vmatpush1.msra.mxu0 %v757
    %1547 = vmatprep.subr.mxu0 0.0
    %1548 = vmatpush1.msra.mxu0 %v756
    %1549 = vmatprep.subr.mxu0 0.0
    %1550 = vmatpush2.msra.mxu0 0.0
    %1551 = vmatprep.subr.mxu0 0.0
    %1552 = vmatpush2.msra.mxu0 0.0
    %1553 = vmatprep.subr.mxu0 0.0
    %1554 = vmatpush2.msra.mxu0 0.0
    %1555 = vmatprep.subr.mxu0 0.0
    %1556 = vmatpush2.msra.mxu0 0.0
    %1557 = vmatprep.subr.mxu0 0.0
    %1558 = vmatpush2.msra.mxu0 0.0
    %1559 = vmatprep.subr.mxu0 0.0
    %1560 = vmatpush2.msra.mxu0 0.0
    %1561 = vmatprep.subr.mxu0 0.0
    %1562 = vmatpush2.msra.mxu0 0.0
    %1563 = vmatprep.subr.mxu0 0.0
    %1564 = vmatpush2.msra.mxu0 0.0
    %1565 = vmatprep.subr.mxu0 0.0
    %1566 = vmatpush2.msra.mxu0 0.0
    %1567 = vmatprep.subr.mxu0 0.0
    %1568 = vmatpush2.msra.mxu0 0.0
    %1569 = vmatprep.subr.mxu0 0.0
    %1570 = vmatpush2.msra.mxu0 0.0
    %1571 = vmatprep.subr.mxu0 0.0
    %1572 = vmatpush2.msra.mxu0 0.0
    %1573 = vmatprep.subr.mxu0 0.0
    %1574 = vmatpush2.msra.mxu0 0.0
    %1575 = vmatprep.subr.mxu0 0.0
    %1576 = vmatpush2.msra.mxu0 0.0
    %1577 = vmatprep.subr.mxu0 0.0
    %1578 = vmatpush2.msra.mxu0 0.0
    %1579 = vmatprep.subr.mxu0 0.0
    %1580 = vmatpush2.msra.mxu0 0.0
    %1581 = vmatprep.mubr.f32.mxu0 0.0
    %1582 = vmatmul.mubr.f32.gmra.mxu0 %v1515
    %v1583 = vpop.f32.mrf.mxu0
    %v1584 = vadd.f32 %v873, %v1583
    %v1585 = vpop.f32.mrf.mxu0
    %1586 = vdwg.mxu0
    %v1587 = vxor.u32 %v1584, 2147483648
    %v1588 = vmul.f32 %v1587, 1.442695
    %v1589 = vpow.pop %v1588
    %v1590 = vadd.f32 %v1589, 1.0
    %v1591 = vrcp.pop %v1590
    %v1592 = vmul.f32 1.0, %v1591
    %v1593 = vtanh.pop %v1584
    %v1594 = vmul.f32 %v1592, %v1390
    %1596 = vrot.lane.b32.xlu0 %v1593, 32
    %v1597 = vpop.permute.xlu0 %1596
    %v1599 = vmul.f32 %v1592, %v1597
    %1601 = vrot.lane.b32.xlu0 %v1599, 32
    %v1602 = vpop.permute.xlu0 %1601
    %v1604 = vadd.f32 %v1594, %v1602
    %v1605 = vtanh.pop %v1604
    %1607 = vrot.lane.b32.xlu0 %v1605, 32
    %v1608 = vpop.permute.xlu0 %1607
    %v1610 = vmul.f32 %v1592, %v1608
    %v1611 = vrot.slane %v1502, 6
    %1612 = vrot.lane.b32.xlu0 %v1611, 64
    %v1613 = vpop.permute.xlu0 %1612
    %v1614 = vsel %vm765, %v1613, 0
    %1616 = vmatprep.subr.mxu0 0.0
    %1617 = vmatpush1.msra.mxu0 0.0
    %1618 = vmatprep.subr.mxu0 0.0
    %1619 = vmatpush1.msra.mxu0 0.0
    %1620 = vmatprep.subr.mxu0 0.0
    %1621 = vmatpush1.msra.mxu0 0.0
    %1622 = vmatprep.subr.mxu0 0.0
    %1623 = vmatpush1.msra.mxu0 0.0
    %1624 = vmatprep.subr.mxu0 0.0
    %1625 = vmatpush1.msra.mxu0 0.0
    %1626 = vmatprep.subr.mxu0 0.0
    %1627 = vmatpush1.msra.mxu0 0.0
    %1628 = vmatprep.subr.mxu0 0.0
    %1629 = vmatpush1.msra.mxu0 0.0
    %1630 = vmatprep.subr.mxu0 0.0
    %1631 = vmatpush1.msra.mxu0 0.0
    %1632 = vmatprep.subr.mxu0 0.0
    %1633 = vmatpush1.msra.mxu0 0.0
    %1634 = vmatprep.subr.mxu0 0.0
    %1635 = vmatpush1.msra.mxu0 0.0
    %1636 = vmatprep.subr.mxu0 0.0
    %1637 = vmatpush1.msra.mxu0 0.0
    %1638 = vmatprep.subr.mxu0 0.0
    %1639 = vmatpush1.msra.mxu0 0.0
    %1640 = vmatprep.subr.mxu0 0.0
    %1641 = vmatpush1.msra.mxu0 %v755
    %1642 = vmatprep.subr.mxu0 0.0
    %1643 = vmatpush1.msra.mxu0 %v754
    %1644 = vmatprep.subr.mxu0 0.0
    %1645 = vmatpush1.msra.mxu0 %v753
    %1646 = vmatprep.subr.mxu0 0.0
    %1647 = vmatpush1.msra.mxu0 %v752
    %1648 = vmatprep.subr.mxu0 0.0
    %1649 = vmatpush2.msra.mxu0 0.0
    %1650 = vmatprep.subr.mxu0 0.0
    %1651 = vmatpush2.msra.mxu0 0.0
    %1652 = vmatprep.subr.mxu0 0.0
    %1653 = vmatpush2.msra.mxu0 0.0
    %1654 = vmatprep.subr.mxu0 0.0
    %1655 = vmatpush2.msra.mxu0 0.0
    %1656 = vmatprep.subr.mxu0 0.0
    %1657 = vmatpush2.msra.mxu0 0.0
    %1658 = vmatprep.subr.mxu0 0.0
    %1659 = vmatpush2.msra.mxu0 0.0
    %1660 = vmatprep.subr.mxu0 0.0
    %1661 = vmatpush2.msra.mxu0 0.0
    %1662 = vmatprep.subr.mxu0 0.0
    %1663 = vmatpush2.msra.mxu0 0.0
    %1664 = vmatprep.subr.mxu0 0.0
    %1665 = vmatpush2.msra.mxu0 0.0
    %1666 = vmatprep.subr.mxu0 0.0
    %1667 = vmatpush2.msra.mxu0 0.0
    %1668 = vmatprep.subr.mxu0 0.0
    %1669 = vmatpush2.msra.mxu0 0.0
    %1670 = vmatprep.subr.mxu0 0.0
    %1671 = vmatpush2.msra.mxu0 0.0
    %1672 = vmatprep.subr.mxu0 0.0
    %1673 = vmatpush2.msra.mxu0 0.0
    %1674 = vmatprep.subr.mxu0 0.0
    %1675 = vmatpush2.msra.mxu0 0.0
    %1676 = vmatprep.subr.mxu0 0.0
    %1677 = vmatpush2.msra.mxu0 0.0
    %1678 = vmatprep.subr.mxu0 0.0
    %1679 = vmatpush2.msra.mxu0 0.0
    %1680 = vmatprep.mubr.f32.mxu0 0.0
    %1681 = vmatmul.mubr.f32.gmra.mxu0 %v1614
    %v1682 = vpop.f32.mrf.mxu0
    %v1683 = vadd.f32 0.0, %v1682
    %v1684 = vpop.f32.mrf.mxu0
    %1685 = vdwg.mxu0
    %v1686 = vadd.f32 %v749, %v1683
    %v1687 = vxor.u32 %v1686, 2147483648
    %v1688 = vmul.f32 %v1687, 1.442695
    %v1689 = vpow.pop %v1688
    %v1690 = vadd.f32 %v1689, 1.0
    %v1691 = vrcp.pop %v1690
    %v1692 = vmul.f32 1.0, %v1691
    %v1693 = vtanh.pop %v1686
    %v1695 = vrot.slane %v1496, 6
    %v1697 = vmul.f32 %v1692, %v1695
    %1699 = vrot.lane.b32.xlu0 %v1693, 32
    %v1700 = vpop.permute.xlu0 %1699
    %v1702 = vmul.f32 %v1692, %v1700
    %1704 = vrot.lane.b32.xlu0 %v1702, 32
    %v1705 = vpop.permute.xlu0 %1704
    %v1707 = vadd.f32 %v1697, %v1705
    %v1708 = vtanh.pop %v1707
    %1710 = vrot.lane.b32.xlu0 %v1708, 32
    %v1711 = vpop.permute.xlu0 %1710
    %v1713 = vmul.f32 %v1692, %v1711
    %1715 = vrot.lane.b32.xlu0 %v1713, 64
    %v1716 = vpop.permute.xlu0 %1715
    %1719 = vrot.lane.b32.xlu0 %v1610, 96
    %v1720 = vpop.permute.xlu0 %1719
    %v1722 = vsel %vm765, %v1716, %v1720
    %v1724 = vsel %vm254, %v1722, 0
    %1726 = vmatprep.subr.mxu0 0.0
    %1727 = vmatpush1.msra.mxu0 0.0
    %1728 = vmatprep.subr.mxu0 0.0
    %1729 = vmatpush1.msra.mxu0 0.0
    %1730 = vmatprep.subr.mxu0 0.0
    %1731 = vmatpush1.msra.mxu0 0.0
    %1732 = vmatprep.subr.mxu0 0.0
    %1733 = vmatpush1.msra.mxu0 0.0
    %1734 = vmatprep.subr.mxu0 0.0
    %1735 = vmatpush1.msra.mxu0 0.0
    %1736 = vmatprep.subr.mxu0 0.0
    %1737 = vmatpush1.msra.mxu0 0.0
    %1738 = vmatprep.subr.mxu0 0.0
    %1739 = vmatpush1.msra.mxu0 0.0
    %1740 = vmatprep.subr.mxu0 0.0
    %1741 = vmatpush1.msra.mxu0 0.0
    %1742 = vmatprep.subr.mxu0 0.0
    %1743 = vmatpush1.msra.mxu0 %v763
    %1744 = vmatprep.subr.mxu0 0.0
    %1745 = vmatpush1.msra.mxu0 %v762
    %1746 = vmatprep.subr.mxu0 0.0
    %1747 = vmatpush1.msra.mxu0 %v761
    %1748 = vmatprep.subr.mxu0 0.0
    %1749 = vmatpush1.msra.mxu0 %v760
    %1750 = vmatprep.subr.mxu0 0.0
    %1751 = vmatpush1.msra.mxu0 %v759
    %1752 = vmatprep.subr.mxu0 0.0
    %1753 = vmatpush1.msra.mxu0 %v758
    %1754 = vmatprep.subr.mxu0 0.0
    %1755 = vmatpush1.msra.mxu0 %v757
    %1756 = vmatprep.subr.mxu0 0.0
    %1757 = vmatpush1.msra.mxu0 %v756
    %1758 = vmatprep.subr.mxu0 0.0
    %1759 = vmatpush2.msra.mxu0 0.0
    %1760 = vmatprep.subr.mxu0 0.0
    %1761 = vmatpush2.msra.mxu0 0.0
    %1762 = vmatprep.subr.mxu0 0.0
    %1763 = vmatpush2.msra.mxu0 0.0
    %1764 = vmatprep.subr.mxu0 0.0
    %1765 = vmatpush2.msra.mxu0 0.0
    %1766 = vmatprep.subr.mxu0 0.0
    %1767 = vmatpush2.msra.mxu0 0.0
    %1768 = vmatprep.subr.mxu0 0.0
    %1769 = vmatpush2.msra.mxu0 0.0
    %1770 = vmatprep.subr.mxu0 0.0
    %1771 = vmatpush2.msra.mxu0 0.0
    %1772 = vmatprep.subr.mxu0 0.0
    %1773 = vmatpush2.msra.mxu0 0.0
    %1774 = vmatprep.subr.mxu0 0.0
    %1775 = vmatpush2.msra.mxu0 0.0
    %1776 = vmatprep.subr.mxu0 0.0
    %1777 = vmatpush2.msra.mxu0 0.0
    %1778 = vmatprep.subr.mxu0 0.0
    %1779 = vmatpush2.msra.mxu0 0.0
    %1780 = vmatprep.subr.mxu0 0.0
    %1781 = vmatpush2.msra.mxu0 0.0
    %1782 = vmatprep.subr.mxu0 0.0
    %1783 = vmatpush2.msra.mxu0 0.0
    %1784 = vmatprep.subr.mxu0 0.0
    %1785 = vmatpush2.msra.mxu0 0.0
    %1786 = vmatprep.subr.mxu0 0.0
    %1787 = vmatpush2.msra.mxu0 0.0
    %1788 = vmatprep.subr.mxu0 0.0
    %1789 = vmatpush2.msra.mxu0 0.0
    %1790 = vmatprep.mubr.f32.mxu0 0.0
    %1791 = vmatmul.mubr.f32.gmra.mxu0 %v1724
    %v1792 = vpop.f32.mrf.mxu0
    %v1793 = vadd.f32 %v873, %v1792
    %v1794 = vpop.f32.mrf.mxu0
    %1795 = vdwg.mxu0
    %v1796 = vxor.u32 %v1793, 2147483648
    %v1797 = vmul.f32 %v1796, 1.442695
    %v1798 = vpow.pop %v1797
    %v1799 = vadd.f32 %v1798, 1.0
    %v1800 = vrcp.pop %v1799
    %v1801 = vmul.f32 1.0, %v1800
    %v1802 = vtanh.pop %v1793
    %v1803 = vmul.f32 %v1801, %v1604
    %1805 = vrot.lane.b32.xlu0 %v1802, 32
    %v1806 = vpop.permute.xlu0 %1805
    %v1808 = vmul.f32 %v1801, %v1806
    %1810 = vrot.lane.b32.xlu0 %v1808, 32
    %v1811 = vpop.permute.xlu0 %1810
    %v1813 = vadd.f32 %v1803, %v1811
    %v1814 = vtanh.pop %v1813
    %1816 = vrot.lane.b32.xlu0 %v1814, 32
    %v1817 = vpop.permute.xlu0 %1816
    %v1819 = vmul.f32 %v1801, %v1817
    %v1820 = vsel %vm765, %v1716, 0
    %1822 = vmatprep.subr.mxu0 0.0
    %1823 = vmatpush1.msra.mxu0 0.0
    %1824 = vmatprep.subr.mxu0 0.0
    %1825 = vmatpush1.msra.mxu0 0.0
    %1826 = vmatprep.subr.mxu0 0.0
    %1827 = vmatpush1.msra.mxu0 0.0
    %1828 = vmatprep.subr.mxu0 0.0
    %1829 = vmatpush1.msra.mxu0 0.0
    %1830 = vmatprep.subr.mxu0 0.0
    %1831 = vmatpush1.msra.mxu0 0.0
    %1832 = vmatprep.subr.mxu0 0.0
    %1833 = vmatpush1.msra.mxu0 0.0
    %1834 = vmatprep.subr.mxu0 0.0
    %1835 = vmatpush1.msra.mxu0 0.0
    %1836 = vmatprep.subr.mxu0 0.0
    %1837 = vmatpush1.msra.mxu0 0.0
    %1838 = vmatprep.subr.mxu0 0.0
    %1839 = vmatpush1.msra.mxu0 0.0
    %1840 = vmatprep.subr.mxu0 0.0
    %1841 = vmatpush1.msra.mxu0 0.0
    %1842 = vmatprep.subr.mxu0 0.0
    %1843 = vmatpush1.msra.mxu0 0.0
    %1844 = vmatprep.subr.mxu0 0.0
    %1845 = vmatpush1.msra.mxu0 0.0
    %1846 = vmatprep.subr.mxu0 0.0
    %1847 = vmatpush1.msra.mxu0 %v755
    %1848 = vmatprep.subr.mxu0 0.0
    %1849 = vmatpush1.msra.mxu0 %v754
    %1850 = vmatprep.subr.mxu0 0.0
    %1851 = vmatpush1.msra.mxu0 %v753
    %1852 = vmatprep.subr.mxu0 0.0
    %1853 = vmatpush1.msra.mxu0 %v752
    %1854 = vmatprep.subr.mxu0 0.0
    %1855 = vmatpush2.msra.mxu0 0.0
    %1856 = vmatprep.subr.mxu0 0.0
    %1857 = vmatpush2.msra.mxu0 0.0
    %1858 = vmatprep.subr.mxu0 0.0
    %1859 = vmatpush2.msra.mxu0 0.0
    %1860 = vmatprep.subr.mxu0 0.0
    %1861 = vmatpush2.msra.mxu0 0.0
    %1862 = vmatprep.subr.mxu0 0.0
    %1863 = vmatpush2.msra.mxu0 0.0
    %1864 = vmatprep.subr.mxu0 0.0
    %1865 = vmatpush2.msra.mxu0 0.0
    %1866 = vmatprep.subr.mxu0 0.0
    %1867 = vmatpush2.msra.mxu0 0.0
    %1868 = vmatprep.subr.mxu0 0.0
    %1869 = vmatpush2.msra.mxu0 0.0
    %1870 = vmatprep.subr.mxu0 0.0
    %1871 = vmatpush2.msra.mxu0 0.0
    %1872 = vmatprep.subr.mxu0 0.0
    %1873 = vmatpush2.msra.mxu0 0.0
    %1874 = vmatprep.subr.mxu0 0.0
    %1875 = vmatpush2.msra.mxu0 0.0
    %1876 = vmatprep.subr.mxu0 0.0
    %1877 = vmatpush2.msra.mxu0 0.0
    %1878 = vmatprep.subr.mxu0 0.0
    %1879 = vmatpush2.msra.mxu0 0.0
    %1880 = vmatprep.subr.mxu0 0.0
    %1881 = vmatpush2.msra.mxu0 0.0
    %1882 = vmatprep.subr.mxu0 0.0
    %1883 = vmatpush2.msra.mxu0 0.0
    %1884 = vmatprep.subr.mxu0 0.0
    %1885 = vmatpush2.msra.mxu0 0.0
    %1886 = vmatprep.mubr.f32.mxu0 0.0
    %1887 = vmatmul.mubr.f32.gmra.mxu0 %v1820
    %v1888 = vpop.f32.mrf.mxu0
    %v1889 = vadd.f32 0.0, %v1888
    %v1890 = vpop.f32.mrf.mxu0
    %1891 = vdwg.mxu0
    %v1893 = vrot.slane %v1889, 6
    %v1895 = vadd.f32 %v749, %v1893
    %v1896 = vxor.u32 %v1895, 2147483648
    %v1897 = vmul.f32 %v1896, 1.442695
    %v1898 = vpow.pop %v1897
    %v1899 = vadd.f32 %v1898, 1.0
    %v1900 = vrcp.pop %v1899
    %v1901 = vmul.f32 1.0, %v1900
    %v1902 = vtanh.pop %v1895
    %v1904 = vrot.slane %v1707, 6
    %v1906 = vmul.f32 %v1901, %v1904
    %1908 = vrot.lane.b32.xlu0 %v1902, 32
    %v1909 = vpop.permute.xlu0 %1908
    %v1911 = vmul.f32 %v1901, %v1909
    %1913 = vrot.lane.b32.xlu0 %v1911, 32
    %v1914 = vpop.permute.xlu0 %1913
    %v1916 = vadd.f32 %v1906, %v1914
    %v1917 = vtanh.pop %v1916
    %1919 = vrot.lane.b32.xlu0 %v1917, 32
    %v1920 = vpop.permute.xlu0 %1919
    %v1922 = vmul.f32 %v1901, %v1920
    %1924 = vrot.lane.b32.xlu0 %v1922, 64
    %v1925 = vpop.permute.xlu0 %1924
    %v1928 = vrot.slane %v1819, 6
    %1929 = vrot.lane.b32.xlu0 %v1928, 96
    %v1930 = vpop.permute.xlu0 %1929
    %v1932 = vsel %vm765, %v1925, %v1930
    %v1934 = vrot.slane %v1932, 2
    %v1935 = vsel %vm254, %v1934, 0
    %1937 = vmatprep.subr.mxu0 0.0
    %1938 = vmatpush1.msra.mxu0 0.0
    %1939 = vmatprep.subr.mxu0 0.0
    %1940 = vmatpush1.msra.mxu0 0.0
    %1941 = vmatprep.subr.mxu0 0.0
    %1942 = vmatpush1.msra.mxu0 0.0
    %1943 = vmatprep.subr.mxu0 0.0
    %1944 = vmatpush1.msra.mxu0 0.0
    %1945 = vmatprep.subr.mxu0 0.0
    %1946 = vmatpush1.msra.mxu0 0.0
    %1947 = vmatprep.subr.mxu0 0.0
    %1948 = vmatpush1.msra.mxu0 0.0
    %1949 = vmatprep.subr.mxu0 0.0
    %1950 = vmatpush1.msra.mxu0 0.0
    %1951 = vmatprep.subr.mxu0 0.0
    %1952 = vmatpush1.msra.mxu0 0.0
    %1953 = vmatprep.subr.mxu0 0.0
    %1954 = vmatpush1.msra.mxu0 %v763
    %1955 = vmatprep.subr.mxu0 0.0
    %1956 = vmatpush1.msra.mxu0 %v762
    %1957 = vmatprep.subr.mxu0 0.0
    %1958 = vmatpush1.msra.mxu0 %v761
    %1959 = vmatprep.subr.mxu0 0.0
    %1960 = vmatpush1.msra.mxu0 %v760
    %1961 = vmatprep.subr.mxu0 0.0
    %1962 = vmatpush1.msra.mxu0 %v759
    %1963 = vmatprep.subr.mxu0 0.0
    %1964 = vmatpush1.msra.mxu0 %v758
    %1965 = vmatprep.subr.mxu0 0.0
    %1966 = vmatpush1.msra.mxu0 %v757
    %1967 = vmatprep.subr.mxu0 0.0
    %1968 = vmatpush1.msra.mxu0 %v756
    %1969 = vmatprep.subr.mxu0 0.0
    %1970 = vmatpush2.msra.mxu0 0.0
    %1971 = vmatprep.subr.mxu0 0.0
    %1972 = vmatpush2.msra.mxu0 0.0
    %1973 = vmatprep.subr.mxu0 0.0
    %1974 = vmatpush2.msra.mxu0 0.0
    %1975 = vmatprep.subr.mxu0 0.0
    %1976 = vmatpush2.msra.mxu0 0.0
    %1977 = vmatprep.subr.mxu0 0.0
    %1978 = vmatpush2.msra.mxu0 0.0
    %1979 = vmatprep.subr.mxu0 0.0
    %1980 = vmatpush2.msra.mxu0 0.0
    %1981 = vmatprep.subr.mxu0 0.0
    %1982 = vmatpush2.msra.mxu0 0.0
    %1983 = vmatprep.subr.mxu0 0.0
    %1984 = vmatpush2.msra.mxu0 0.0
    %1985 = vmatprep.subr.mxu0 0.0
    %1986 = vmatpush2.msra.mxu0 0.0
    %1987 = vmatprep.subr.mxu0 0.0
    %1988 = vmatpush2.msra.mxu0 0.0
    %1989 = vmatprep.subr.mxu0 0.0
    %1990 = vmatpush2.msra.mxu0 0.0
    %1991 = vmatprep.subr.mxu0 0.0
    %1992 = vmatpush2.msra.mxu0 0.0
    %1993 = vmatprep.subr.mxu0 0.0
    %1994 = vmatpush2.msra.mxu0 0.0
    %1995 = vmatprep.subr.mxu0 0.0
    %1996 = vmatpush2.msra.mxu0 0.0
    %1997 = vmatprep.subr.mxu0 0.0
    %1998 = vmatpush2.msra.mxu0 0.0
    %1999 = vmatprep.subr.mxu0 0.0
    %2000 = vmatpush2.msra.mxu0 0.0
    %2001 = vmatprep.mubr.f32.mxu0 0.0
    %2002 = vmatmul.mubr.f32.gmra.mxu0 %v1935
    %v2003 = vpop.f32.mrf.mxu0
    %v2004 = vadd.f32 %v873, %v2003
    %v2005 = vpop.f32.mrf.mxu0
    %2006 = vdwg.mxu0
    %v2007 = vxor.u32 %v2004, 2147483648
    %v2008 = vmul.f32 %v2007, 1.442695
    %v2009 = vpow.pop %v2008
    %v2010 = vadd.f32 %v2009, 1.0
    %v2011 = vrcp.pop %v2010
    %v2012 = vmul.f32 1.0, %v2011
    %v2013 = vtanh.pop %v2004
    %v2014 = vmul.f32 %v2012, %v1813
    %2016 = vrot.lane.b32.xlu0 %v2013, 32
    %v2017 = vpop.permute.xlu0 %2016
    %v2019 = vmul.f32 %v2012, %v2017
    %2021 = vrot.lane.b32.xlu0 %v2019, 32
    %v2022 = vpop.permute.xlu0 %2021
    %v2024 = vadd.f32 %v2014, %v2022
    %v2025 = vtanh.pop %v2024
    %2027 = vrot.lane.b32.xlu0 %v2025, 32
    %v2028 = vpop.permute.xlu0 %2027
    %v2030 = vmul.f32 %v2012, %v2028
    %v2031 = vrot.slane %v1922, 2
    %2032 = vrot.lane.b32.xlu0 %v2031, 64
    %v2033 = vpop.permute.xlu0 %2032
    %v2034 = vsel %vm765, %v2033, 0
    %2036 = vmatprep.subr.mxu0 0.0
    %2037 = vmatpush1.msra.mxu0 0.0
    %2038 = vmatprep.subr.mxu0 0.0
    %2039 = vmatpush1.msra.mxu0 0.0
    %2040 = vmatprep.subr.mxu0 0.0
    %2041 = vmatpush1.msra.mxu0 0.0
    %2042 = vmatprep.subr.mxu0 0.0
    %2043 = vmatpush1.msra.mxu0 0.0
    %2044 = vmatprep.subr.mxu0 0.0
    %2045 = vmatpush1.msra.mxu0 0.0
    %2046 = vmatprep.subr.mxu0 0.0
    %2047 = vmatpush1.msra.mxu0 0.0
    %2048 = vmatprep.subr.mxu0 0.0
    %2049 = vmatpush1.msra.mxu0 0.0
    %2050 = vmatprep.subr.mxu0 0.0
    %2051 = vmatpush1.msra.mxu0 0.0
    %2052 = vmatprep.subr.mxu0 0.0
    %2053 = vmatpush1.msra.mxu0 0.0
    %2054 = vmatprep.subr.mxu0 0.0
    %2055 = vmatpush1.msra.mxu0 0.0
    %2056 = vmatprep.subr.mxu0 0.0
    %2057 = vmatpush1.msra.mxu0 0.0
    %2058 = vmatprep.subr.mxu0 0.0
    %2059 = vmatpush1.msra.mxu0 0.0
    %2060 = vmatprep.subr.mxu0 0.0
    %2061 = vmatpush1.msra.mxu0 %v755
    %2062 = vmatprep.subr.mxu0 0.0
    %2063 = vmatpush1.msra.mxu0 %v754
    %2064 = vmatprep.subr.mxu0 0.0
    %2065 = vmatpush1.msra.mxu0 %v753
    %2066 = vmatprep.subr.mxu0 0.0
    %2067 = vmatpush1.msra.mxu0 %v752
    %2068 = vmatprep.subr.mxu0 0.0
    %2069 = vmatpush2.msra.mxu0 0.0
    %2070 = vmatprep.subr.mxu0 0.0
    %2071 = vmatpush2.msra.mxu0 0.0
    %2072 = vmatprep.subr.mxu0 0.0
    %2073 = vmatpush2.msra.mxu0 0.0
    %2074 = vmatprep.subr.mxu0 0.0
    %2075 = vmatpush2.msra.mxu0 0.0
    %2076 = vmatprep.subr.mxu0 0.0
    %2077 = vmatpush2.msra.mxu0 0.0
    %2078 = vmatprep.subr.mxu0 0.0
    %2079 = vmatpush2.msra.mxu0 0.0
    %2080 = vmatprep.subr.mxu0 0.0
    %2081 = vmatpush2.msra.mxu0 0.0
    %2082 = vmatprep.subr.mxu0 0.0
    %2083 = vmatpush2.msra.mxu0 0.0
    %2084 = vmatprep.subr.mxu0 0.0
    %2085 = vmatpush2.msra.mxu0 0.0
    %2086 = vmatprep.subr.mxu0 0.0
    %2087 = vmatpush2.msra.mxu0 0.0
    %2088 = vmatprep.subr.mxu0 0.0
    %2089 = vmatpush2.msra.mxu0 0.0
    %2090 = vmatprep.subr.mxu0 0.0
    %2091 = vmatpush2.msra.mxu0 0.0
    %2092 = vmatprep.subr.mxu0 0.0
    %2093 = vmatpush2.msra.mxu0 0.0
    %2094 = vmatprep.subr.mxu0 0.0
    %2095 = vmatpush2.msra.mxu0 0.0
    %2096 = vmatprep.subr.mxu0 0.0
    %2097 = vmatpush2.msra.mxu0 0.0
    %2098 = vmatprep.subr.mxu0 0.0
    %2099 = vmatpush2.msra.mxu0 0.0
    %2100 = vmatprep.mubr.f32.mxu0 0.0
    %2101 = vmatmul.mubr.f32.gmra.mxu0 %v2034
    %v2102 = vpop.f32.mrf.mxu0
    %v2103 = vadd.f32 0.0, %v2102
    %v2104 = vpop.f32.mrf.mxu0
    %2105 = vdwg.mxu0
    %v2107 = vrot.slane %v2103, 4
    %v2109 = vadd.f32 %v749, %v2107
    %v2110 = vxor.u32 %v2109, 2147483648
    %v2111 = vmul.f32 %v2110, 1.442695
    %v2112 = vpow.pop %v2111
    %v2113 = vadd.f32 %v2112, 1.0
    %v2114 = vrcp.pop %v2113
    %v2115 = vmul.f32 1.0, %v2114
    %v2116 = vtanh.pop %v2109
    %v2118 = vrot.slane %v1916, 6
    %v2120 = vmul.f32 %v2115, %v2118
    %2122 = vrot.lane.b32.xlu0 %v2116, 32
    %v2123 = vpop.permute.xlu0 %2122
    %v2125 = vmul.f32 %v2115, %v2123
    %2127 = vrot.lane.b32.xlu0 %v2125, 32
    %v2128 = vpop.permute.xlu0 %2127
    %v2130 = vadd.f32 %v2120, %v2128
    %v2131 = vtanh.pop %v2130
    %2133 = vrot.lane.b32.xlu0 %v2131, 32
    %v2134 = vpop.permute.xlu0 %2133
    %v2136 = vmul.f32 %v2115, %v2134
    %2138 = vrot.lane.b32.xlu0 %v2136, 64
    %v2139 = vpop.permute.xlu0 %2138
    %v2142 = vrot.slane %v2030, 4
    %2143 = vrot.lane.b32.xlu0 %v2142, 96
    %v2144 = vpop.permute.xlu0 %2143
    %v2146 = vsel %vm765, %v2139, %v2144
    %v2148 = vrot.slane %v2146, 4
    %v2149 = vsel %vm254, %v2148, 0
    %2151 = vmatprep.subr.mxu0 0.0
    %2152 = vmatpush1.msra.mxu0 0.0
    %2153 = vmatprep.subr.mxu0 0.0
    %2154 = vmatpush1.msra.mxu0 0.0
    %2155 = vmatprep.subr.mxu0 0.0
    %2156 = vmatpush1.msra.mxu0 0.0
    %2157 = vmatprep.subr.mxu0 0.0
    %2158 = vmatpush1.msra.mxu0 0.0
    %2159 = vmatprep.subr.mxu0 0.0
    %2160 = vmatpush1.msra.mxu0 0.0
    %2161 = vmatprep.subr.mxu0 0.0
    %2162 = vmatpush1.msra.mxu0 0.0
    %2163 = vmatprep.subr.mxu0 0.0
    %2164 = vmatpush1.msra.mxu0 0.0
    %2165 = vmatprep.subr.mxu0 0.0
    %2166 = vmatpush1.msra.mxu0 0.0
    %2167 = vmatprep.subr.mxu0 0.0
    %2168 = vmatpush1.msra.mxu0 %v763
    %2169 = vmatprep.subr.mxu0 0.0
    %2170 = vmatpush1.msra.mxu0 %v762
    %2171 = vmatprep.subr.mxu0 0.0
    %2172 = vmatpush1.msra.mxu0 %v761
    %2173 = vmatprep.subr.mxu0 0.0
    %2174 = vmatpush1.msra.mxu0 %v760
    %2175 = vmatprep.subr.mxu0 0.0
    %2176 = vmatpush1.msra.mxu0 %v759
    %2177 = vmatprep.subr.mxu0 0.0
    %2178 = vmatpush1.msra.mxu0 %v758
    %2179 = vmatprep.subr.mxu0 0.0
    %2180 = vmatpush1.msra.mxu0 %v757
    %2181 = vmatprep.subr.mxu0 0.0
    %2182 = vmatpush1.msra.mxu0 %v756
    %2183 = vmatprep.subr.mxu0 0.0
    %2184 = vmatpush2.msra.mxu0 0.0
    %2185 = vmatprep.subr.mxu0 0.0
    %2186 = vmatpush2.msra.mxu0 0.0
    %2187 = vmatprep.subr.mxu0 0.0
    %2188 = vmatpush2.msra.mxu0 0.0
    %2189 = vmatprep.subr.mxu0 0.0
    %2190 = vmatpush2.msra.mxu0 0.0
    %2191 = vmatprep.subr.mxu0 0.0
    %2192 = vmatpush2.msra.mxu0 0.0
    %2193 = vmatprep.subr.mxu0 0.0
    %2194 = vmatpush2.msra.mxu0 0.0
    %2195 = vmatprep.subr.mxu0 0.0
    %2196 = vmatpush2.msra.mxu0 0.0
    %2197 = vmatprep.subr.mxu0 0.0
    %2198 = vmatpush2.msra.mxu0 0.0
    %2199 = vmatprep.subr.mxu0 0.0
    %2200 = vmatpush2.msra.mxu0 0.0
    %2201 = vmatprep.subr.mxu0 0.0
    %2202 = vmatpush2.msra.mxu0 0.0
    %2203 = vmatprep.subr.mxu0 0.0
    %2204 = vmatpush2.msra.mxu0 0.0
    %2205 = vmatprep.subr.mxu0 0.0
    %2206 = vmatpush2.msra.mxu0 0.0
    %2207 = vmatprep.subr.mxu0 0.0
    %2208 = vmatpush2.msra.mxu0 0.0
    %2209 = vmatprep.subr.mxu0 0.0
    %2210 = vmatpush2.msra.mxu0 0.0
    %2211 = vmatprep.subr.mxu0 0.0
    %2212 = vmatpush2.msra.mxu0 0.0
    %2213 = vmatprep.subr.mxu0 0.0
    %2214 = vmatpush2.msra.mxu0 0.0
    %2215 = vmatprep.mubr.f32.mxu0 0.0
    %2216 = vmatmul.mubr.f32.gmra.mxu0 %v2149
    %v2217 = vpop.f32.mrf.mxu0
    %v2218 = vadd.f32 %v873, %v2217
    %v2219 = vpop.f32.mrf.mxu0
    %2220 = vdwg.mxu0
    %v2221 = vxor.u32 %v2218, 2147483648
    %v2222 = vmul.f32 %v2221, 1.442695
    %v2223 = vpow.pop %v2222
    %v2224 = vadd.f32 %v2223, 1.0
    %v2225 = vrcp.pop %v2224
    %v2226 = vmul.f32 1.0, %v2225
    %v2227 = vtanh.pop %v2218
    %v2228 = vmul.f32 %v2226, %v2024
    %2230 = vrot.lane.b32.xlu0 %v2227, 32
    %v2231 = vpop.permute.xlu0 %2230
    %v2233 = vmul.f32 %v2226, %v2231
    %2235 = vrot.lane.b32.xlu0 %v2233, 32
    %v2236 = vpop.permute.xlu0 %2235
    %v2238 = vadd.f32 %v2228, %v2236
    %v2239 = vtanh.pop %v2238
    %2241 = vrot.lane.b32.xlu0 %v2239, 32
    %v2242 = vpop.permute.xlu0 %2241
    %v2244 = vmul.f32 %v2226, %v2242
    %v2245 = vrot.slane %v2136, 4
    %2246 = vrot.lane.b32.xlu0 %v2245, 64
    %v2247 = vpop.permute.xlu0 %2246
    %v2248 = vsel %vm765, %v2247, 0
    %2250 = vmatprep.subr.mxu0 0.0
    %2251 = vmatpush1.msra.mxu0 0.0
    %2252 = vmatprep.subr.mxu0 0.0
    %2253 = vmatpush1.msra.mxu0 0.0
    %2254 = vmatprep.subr.mxu0 0.0
    %2255 = vmatpush1.msra.mxu0 0.0
    %2256 = vmatprep.subr.mxu0 0.0
    %2257 = vmatpush1.msra.mxu0 0.0
    %2258 = vmatprep.subr.mxu0 0.0
    %2259 = vmatpush1.msra.mxu0 0.0
    %2260 = vmatprep.subr.mxu0 0.0
    %2261 = vmatpush1.msra.mxu0 0.0
    %2262 = vmatprep.subr.mxu0 0.0
    %2263 = vmatpush1.msra.mxu0 0.0
    %2264 = vmatprep.subr.mxu0 0.0
    %2265 = vmatpush1.msra.mxu0 0.0
    %2266 = vmatprep.subr.mxu0 0.0
    %2267 = vmatpush1.msra.mxu0 0.0
    %2268 = vmatprep.subr.mxu0 0.0
    %2269 = vmatpush1.msra.mxu0 0.0
    %2270 = vmatprep.subr.mxu0 0.0
    %2271 = vmatpush1.msra.mxu0 0.0
    %2272 = vmatprep.subr.mxu0 0.0
    %2273 = vmatpush1.msra.mxu0 0.0
    %2274 = vmatprep.subr.mxu0 0.0
    %2275 = vmatpush1.msra.mxu0 %v755
    %2276 = vmatprep.subr.mxu0 0.0
    %2277 = vmatpush1.msra.mxu0 %v754
    %2278 = vmatprep.subr.mxu0 0.0
    %2279 = vmatpush1.msra.mxu0 %v753
    %2280 = vmatprep.subr.mxu0 0.0
    %2281 = vmatpush1.msra.mxu0 %v752
    %2282 = vmatprep.subr.mxu0 0.0
    %2283 = vmatpush2.msra.mxu0 0.0
    %2284 = vmatprep.subr.mxu0 0.0
    %2285 = vmatpush2.msra.mxu0 0.0
    %2286 = vmatprep.subr.mxu0 0.0
    %2287 = vmatpush2.msra.mxu0 0.0
    %2288 = vmatprep.subr.mxu0 0.0
    %2289 = vmatpush2.msra.mxu0 0.0
    %2290 = vmatprep.subr.mxu0 0.0
    %2291 = vmatpush2.msra.mxu0 0.0
    %2292 = vmatprep.subr.mxu0 0.0
    %2293 = vmatpush2.msra.mxu0 0.0
    %2294 = vmatprep.subr.mxu0 0.0
    %2295 = vmatpush2.msra.mxu0 0.0
    %2296 = vmatprep.subr.mxu0 0.0
    %2297 = vmatpush2.msra.mxu0 0.0
    %2298 = vmatprep.subr.mxu0 0.0
    %2299 = vmatpush2.msra.mxu0 0.0
    %2300 = vmatprep.subr.mxu0 0.0
    %2301 = vmatpush2.msra.mxu0 0.0
    %2302 = vmatprep.subr.mxu0 0.0
    %2303 = vmatpush2.msra.mxu0 0.0
    %2304 = vmatprep.subr.mxu0 0.0
    %2305 = vmatpush2.msra.mxu0 0.0
    %2306 = vmatprep.subr.mxu0 0.0
    %2307 = vmatpush2.msra.mxu0 0.0
    %2308 = vmatprep.subr.mxu0 0.0
    %2309 = vmatpush2.msra.mxu0 0.0
    %2310 = vmatprep.subr.mxu0 0.0
    %2311 = vmatpush2.msra.mxu0 0.0
    %2312 = vmatprep.subr.mxu0 0.0
    %2313 = vmatpush2.msra.mxu0 0.0
    %2314 = vmatprep.mubr.f32.mxu0 0.0
    %2315 = vmatmul.mubr.f32.gmra.mxu0 %v2248
    %v2316 = vpop.f32.mrf.mxu0
    %v2317 = vadd.f32 0.0, %v2316
    %v2318 = vpop.f32.mrf.mxu0
    %2319 = vdwg.mxu0
    %v2321 = vrot.slane %v2317, 2
    %v2323 = vadd.f32 %v749, %v2321
    %v2324 = vxor.u32 %v2323, 2147483648
    %v2325 = vmul.f32 %v2324, 1.442695
    %v2326 = vpow.pop %v2325
    %v2327 = vadd.f32 %v2326, 1.0
    %v2328 = vrcp.pop %v2327
    %v2329 = vmul.f32 1.0, %v2328
    %v2330 = vtanh.pop %v2323
    %v2332 = vrot.slane %v2130, 6
    %v2334 = vmul.f32 %v2329, %v2332
    %2336 = vrot.lane.b32.xlu0 %v2330, 32
    %v2337 = vpop.permute.xlu0 %2336
    %v2339 = vmul.f32 %v2329, %v2337
    %2341 = vrot.lane.b32.xlu0 %v2339, 32
    %v2342 = vpop.permute.xlu0 %2341
    %v2344 = vadd.f32 %v2334, %v2342
    %v2345 = vtanh.pop %v2344
    %2347 = vrot.lane.b32.xlu0 %v2345, 32
    %v2348 = vpop.permute.xlu0 %2347
    %v2350 = vmul.f32 %v2329, %v2348
    %2352 = vrot.lane.b32.xlu0 %v2350, 64
    %v2353 = vpop.permute.xlu0 %2352
    %v2356 = vrot.slane %v2244, 2
    %2357 = vrot.lane.b32.xlu0 %v2356, 96
    %v2358 = vpop.permute.xlu0 %2357
    %v2360 = vsel %vm765, %v2353, %v2358
    %v2362 = vrot.slane %v2360, 6
    %v2363 = vsel %vm254, %v2362, 0
    %2365 = vmatprep.subr.mxu0 0.0
    %2366 = vmatpush1.msra.mxu0 0.0
    %2367 = vmatprep.subr.mxu0 0.0
    %2368 = vmatpush1.msra.mxu0 0.0
    %2369 = vmatprep.subr.mxu0 0.0
    %2370 = vmatpush1.msra.mxu0 0.0
    %2371 = vmatprep.subr.mxu0 0.0
    %2372 = vmatpush1.msra.mxu0 0.0
    %2373 = vmatprep.subr.mxu0 0.0
    %2374 = vmatpush1.msra.mxu0 0.0
    %2375 = vmatprep.subr.mxu0 0.0
    %2376 = vmatpush1.msra.mxu0 0.0
    %2377 = vmatprep.subr.mxu0 0.0
    %2378 = vmatpush1.msra.mxu0 0.0
    %2379 = vmatprep.subr.mxu0 0.0
    %2380 = vmatpush1.msra.mxu0 0.0
    %2381 = vmatprep.subr.mxu0 0.0
    %2382 = vmatpush1.msra.mxu0 %v763
    %2383 = vmatprep.subr.mxu0 0.0
    %2384 = vmatpush1.msra.mxu0 %v762
    %2385 = vmatprep.subr.mxu0 0.0
    %2386 = vmatpush1.msra.mxu0 %v761
    %2387 = vmatprep.subr.mxu0 0.0
    %2388 = vmatpush1.msra.mxu0 %v760
    %2389 = vmatprep.subr.mxu0 0.0
    %2390 = vmatpush1.msra.mxu0 %v759
    %2391 = vmatprep.subr.mxu0 0.0
    %2392 = vmatpush1.msra.mxu0 %v758
    %2393 = vmatprep.subr.mxu0 0.0
    %2394 = vmatpush1.msra.mxu0 %v757
    %2395 = vmatprep.subr.mxu0 0.0
    %2396 = vmatpush1.msra.mxu0 %v756
    %2397 = vmatprep.subr.mxu0 0.0
    %2398 = vmatpush2.msra.mxu0 0.0
    %2399 = vmatprep.subr.mxu0 0.0
    %2400 = vmatpush2.msra.mxu0 0.0
    %2401 = vmatprep.subr.mxu0 0.0
    %2402 = vmatpush2.msra.mxu0 0.0
    %2403 = vmatprep.subr.mxu0 0.0
    %2404 = vmatpush2.msra.mxu0 0.0
    %2405 = vmatprep.subr.mxu0 0.0
    %2406 = vmatpush2.msra.mxu0 0.0
    %2407 = vmatprep.subr.mxu0 0.0
    %2408 = vmatpush2.msra.mxu0 0.0
    %2409 = vmatprep.subr.mxu0 0.0
    %2410 = vmatpush2.msra.mxu0 0.0
    %2411 = vmatprep.subr.mxu0 0.0
    %2412 = vmatpush2.msra.mxu0 0.0
    %2413 = vmatprep.subr.mxu0 0.0
    %2414 = vmatpush2.msra.mxu0 0.0
    %2415 = vmatprep.subr.mxu0 0.0
    %2416 = vmatpush2.msra.mxu0 0.0
    %2417 = vmatprep.subr.mxu0 0.0
    %2418 = vmatpush2.msra.mxu0 0.0
    %2419 = vmatprep.subr.mxu0 0.0
    %2420 = vmatpush2.msra.mxu0 0.0
    %2421 = vmatprep.subr.mxu0 0.0
    %2422 = vmatpush2.msra.mxu0 0.0
    %2423 = vmatprep.subr.mxu0 0.0
    %2424 = vmatpush2.msra.mxu0 0.0
    %2425 = vmatprep.subr.mxu0 0.0
    %2426 = vmatpush2.msra.mxu0 0.0
    %2427 = vmatprep.subr.mxu0 0.0
    %2428 = vmatpush2.msra.mxu0 0.0
    %2429 = vmatprep.mubr.f32.mxu0 0.0
    %2430 = vmatmul.mubr.f32.gmra.mxu0 %v2363
    %v2431 = vpop.f32.mrf.mxu0
    %v2432 = vadd.f32 %v873, %v2431
    %v2433 = vpop.f32.mrf.mxu0
    %2434 = vdwg.mxu0
    %v2435 = vxor.u32 %v2432, 2147483648
    %v2436 = vmul.f32 %v2435, 1.442695
    %v2437 = vpow.pop %v2436
    %v2438 = vadd.f32 %v2437, 1.0
    %v2439 = vrcp.pop %v2438
    %v2440 = vmul.f32 1.0, %v2439
    %v2441 = vtanh.pop %v2432
    %v2442 = vmul.f32 %v2440, %v2238
    %2444 = vrot.lane.b32.xlu0 %v2441, 32
    %v2445 = vpop.permute.xlu0 %2444
    %v2447 = vmul.f32 %v2440, %v2445
    %2449 = vrot.lane.b32.xlu0 %v2447, 32
    %v2450 = vpop.permute.xlu0 %2449
    %v2452 = vadd.f32 %v2442, %v2450
    %v2453 = vtanh.pop %v2452
    %2455 = vrot.lane.b32.xlu0 %v2453, 32
    %v2456 = vpop.permute.xlu0 %2455
    %v2458 = vmul.f32 %v2440, %v2456
    %v2459 = vmul.f32 %v2458, %v2458
    %2461 = vrot.lane.b32.xlu0 %v2459, 64
    %v2462 = vpop.permute.xlu0 %2461
    %vm2464 = vcmask 254976
    %v2465 = vsel %vm2464, %v2462, 0.0
    %2466 = vadd.xlane.f32.xlu0 %v2465
    %v2467 = vpop.xlane.xlu0 %2466
    %v2468 = vadd.f32 %v2467, 1e-24
    %v2469 = vrsqrt.pop %v2468
    %v2470 = vmul.f32 %v2458, %v2469
    %2472 = vrot.lane.b32.xlu0 %v2470, 64
    %v2473 = vpop.permute.xlu0 %2472
    %2475 = vst.msk [vmem:[#allocation2] sm:$0x3] %vm2464, %v2473
    %v2476 = vld [vmem:[%s14] sm:$0xff]
    %v2477 = vld [vmem:[%s14 + $0x8] sm:$0xff]
    %v2478 = vld [vmem:[%s14 + $0x10] sm:$0xff]
    %v2479 = vld [vmem:[%s14 + $0x18] sm:$0xff]
    %v2480 = vld [vmem:[%s15] sm:$0x1]
    %v2482 = vlaneseq
    %v2483 = vshrl.u32 %v2482, 7
    %v2484 = vsub.s32 0, %v2483
    %v2485 = vrot.slane %v2480, %v2484
    %2488 = vrot.lane.b32.xlu0 %v2458, 64
    %v2489 = vpop.permute.xlu0 %2488
    %v2490 = vsel %vm765, %v2489, 0
    %2492 = vmatprep.subr.mxu0 0.0
    %2493 = vmatpush1.msra.mxu0 0.0
    %2494 = vmatprep.subr.mxu0 0.0
    %2495 = vmatpush1.msra.mxu0 0.0
    %2496 = vmatprep.subr.mxu0 0.0
    %2497 = vmatpush1.msra.mxu0 0.0
    %2498 = vmatprep.subr.mxu0 0.0
    %2499 = vmatpush1.msra.mxu0 0.0
    %2500 = vmatprep.subr.mxu0 0.0
    %2501 = vmatpush1.msra.mxu0 0.0
    %2502 = vmatprep.subr.mxu0 0.0
    %2503 = vmatpush1.msra.mxu0 0.0
    %2504 = vmatprep.subr.mxu0 0.0
    %2505 = vmatpush1.msra.mxu0 0.0
    %2506 = vmatprep.subr.mxu0 0.0
    %2507 = vmatpush1.msra.mxu0 0.0
    %2508 = vmatprep.subr.mxu0 0.0
    %2509 = vmatpush1.msra.mxu0 0.0
    %2510 = vmatprep.subr.mxu0 0.0
    %2511 = vmatpush1.msra.mxu0 0.0
    %2512 = vmatprep.subr.mxu0 0.0
    %2513 = vmatpush1.msra.mxu0 0.0
    %2514 = vmatprep.subr.mxu0 0.0
    %2515 = vmatpush1.msra.mxu0 0.0
    %2516 = vmatprep.subr.mxu0 0.0
    %2517 = vmatpush1.msra.mxu0 %v2479
    %2518 = vmatprep.subr.mxu0 0.0
    %2519 = vmatpush1.msra.mxu0 %v2478
    %2520 = vmatprep.subr.mxu0 0.0
    %2521 = vmatpush1.msra.mxu0 %v2477
    %2522 = vmatprep.subr.mxu0 0.0
    %2523 = vmatpush1.msra.mxu0 %v2476
    %2524 = vmatprep.subr.mxu0 0.0
    %2525 = vmatpush2.msra.mxu0 0.0
    %2526 = vmatprep.subr.mxu0 0.0
    %2527 = vmatpush2.msra.mxu0 0.0
    %2528 = vmatprep.subr.mxu0 0.0
    %2529 = vmatpush2.msra.mxu0 0.0
    %2530 = vmatprep.subr.mxu0 0.0
    %2531 = vmatpush2.msra.mxu0 0.0
    %2532 = vmatprep.subr.mxu0 0.0
    %2533 = vmatpush2.msra.mxu0 0.0
    %2534 = vmatprep.subr.mxu0 0.0
    %2535 = vmatpush2.msra.mxu0 0.0
    %2536 = vmatprep.subr.mxu0 0.0
    %2537 = vmatpush2.msra.mxu0 0.0
    %2538 = vmatprep.subr.mxu0 0.0
    %2539 = vmatpush2.msra.mxu0 0.0
    %2540 = vmatprep.subr.mxu0 0.0
    %2541 = vmatpush2.msra.mxu0 0.0
    %2542 = vmatprep.subr.mxu0 0.0
    %2543 = vmatpush2.msra.mxu0 0.0
    %2544 = vmatprep.subr.mxu0 0.0
    %2545 = vmatpush2.msra.mxu0 0.0
    %2546 = vmatprep.subr.mxu0 0.0
    %2547 = vmatpush2.msra.mxu0 0.0
    %2548 = vmatprep.subr.mxu0 0.0
    %2549 = vmatpush2.msra.mxu0 0.0
    %2550 = vmatprep.subr.mxu0 0.0
    %2551 = vmatpush2.msra.mxu0 0.0
    %2552 = vmatprep.subr.mxu0 0.0
    %2553 = vmatpush2.msra.mxu0 0.0
    %2554 = vmatprep.subr.mxu0 0.0
    %2555 = vmatpush2.msra.mxu0 0.0
    %2556 = vmatprep.mubr.f32.mxu0 0.0
    %2557 = vmatmul.mubr.f32.gmra.mxu0 %v2490
    %v2558 = vpop.f32.mrf.mxu0
    %v2559 = vadd.f32 %v2485, %v2558
    %v2560 = vpop.f32.mrf.mxu0
    %2561 = vdwg.mxu0
    %vm2562 = vcmask 41984
    %2563 = vst.msk [vmem:[#allocation4] sm:$0x3] %vm2562, %v2559
    // Predicated region
    $region66: #{deepconvlstm_forward.1} parent=1 // pred_check
      _
    $region67: #{deepconvlstm_forward.1} parent=1 // pred_check_branch
      %2565 = sbr.rel (0) target = $region69
    $region68: #{deepconvlstm_forward.1} parent=1 // pred_region
      %s2567 = ssub.s32 32, 32
      %2568 = vsyncadd [#allocation3], %s2567
      %s2570 = sshll.u32 [#allocation2], 4
      %s2571 = int_to_ptr.vmem [resolvable:$true] %s2570
      %2573 = dma.vmem_to_hbm [thread:$0]  %s2571, 32, %s16, [#allocation3]
    $region69: #{deepconvlstm_forward.1} parent=1 // pred_fallthru
      _
    // Predicated region
    $region70: #{deepconvlstm_forward.1} parent=1 // pred_check
      _
    $region71: #{deepconvlstm_forward.1} parent=1 // pred_check_branch
      %2575 = sbr.rel (0) target = $region73
    $region72: #{deepconvlstm_forward.1} parent=1 // pred_region
      %s2577 = ssub.s32 32, 32
      %2578 = vsyncadd [#allocation5], %s2577
      %s2580 = sshll.u32 [#allocation4], 4
      %s2581 = int_to_ptr.vmem [resolvable:$true] %s2580
      %2583 = dma.vmem_to_hbm [thread:$0]  %s2581, 32, %s17, [#allocation5]
    $region73: #{deepconvlstm_forward.1} parent=1 // pred_fallthru
      _
    // Predicated region
    $region74: #{deepconvlstm_forward.1} parent=1 // pred_check
      _
    $region75: #{deepconvlstm_forward.1} parent=1 // pred_check_branch
      %2585 = sbr.rel (0) target = $region77
    $region76: #{deepconvlstm_forward.1} parent=1 // pred_region
      %2586 = dma.done [#allocation3], 32
    $region77: #{deepconvlstm_forward.1} parent=1 // pred_fallthru
      _
    // Predicated region
    $region78: #{deepconvlstm_forward.1} parent=1 // pred_check
      _
    $region79: #{deepconvlstm_forward.1} parent=1 // pred_check_branch
      %2588 = sbr.rel (0) target = $region81
    $region80: #{deepconvlstm_forward.1} parent=1 // pred_region
      %2589 = dma.done [#allocation5], 32
    $region81: #{deepconvlstm_forward.1} parent=1 // pred_fallthru
      _
    %2590 = vsyncpa [#allocation3], 1
    %2591 = vsyncpa [#allocation5], 1

</llo_original>
